<compile_context>
chip_gen: v7x
topology: tpu7x:2x2x1
jax: 0.10.0
libtpu: 0.0.40
codegen_flags: <defaults>
</compile_context>

<pallas_src>
import functools

import jax
import jax.numpy as jnp
import numpy as np
from jax.experimental import pallas as pl
from jax.experimental.pallas import tpu as pltpu


# ----------------------------- kernel ----------------------------------------

def rssm_kernel(obs_ref, act_ref, noise_ref, h0_ref, *refs, T, B, L, H, NP):
    """Single-invocation RSSM forward.

    obs_ref/act_ref/noise_ref are time-major flattened [T*B, D].  Outputs:
      slab_o  : [T*B, 3L+H]   packed per-step [post_mean | post_std | z | h]
      prior_o : [max(T-1,1)*B, 2L]   raw prior head [mean | std_pre_softplus]
      rec_o   : [T*B, obs_dim]
    T/B/L/H/NP are static Python ints.
    """
    params = refs[:NP]
    slab_o, prior_o, rec_o = refs[NP:]

    (e1w, e1b, e2w, e2b, epw, epb, hw,
     p2w, p2b, phw, phb,
     q1w, q1b, q2w, q2b, qhw, qhb,
     t1wz, t1wa, t1b, t2w, t2b, t3w, t3b,
     d1w, d1b, d2w, d2b, d3w, d3b) = params

    f32 = jnp.float32

    def dot(x, w):
        return jnp.dot(x, w, preferred_element_type=f32)

    # ---------------- hoisted, h-independent stages over all T*B rows --------
    obs_all = obs_ref[...]                                    # (T*B, obs)
    e = jax.nn.relu(dot(obs_all, e1w[...]) + e1b[...])
    e = jax.nn.relu(dot(e, e2w[...]) + e2b[...])
    # encoder layer-3 composed with posterior layer-1 encoder part (host-side)
    ep_all = dot(e, epw[...]) + epb[...]                      # (T*B, H)
    # action contribution to transition layer-1 (h/z parts added in the loop)
    ap_all = dot(act_ref[...], t1wa[...]) + t1b[...]          # (T*B, H)
    noise_all = noise_ref[...]                                # (T*B, L)

    # ---------------- hoisted loads of recurrent-loop weights / biases -------
    hw_v = hw[...]                                            # (H, 2H) fused [p1wh | t1wh]
    p2w_v, p2b_v = p2w[...], p2b[...]
    phw_v, phb_v = phw[...], phb[...]
    t1wz_v = t1wz[...]
    t2w_v, t2b_v = t2w[...], t2b[...]
    t3w_v, t3b_v = t3w[...], t3b[...]

    h = jnp.broadcast_to(h0_ref[...], (B, H))                 # (B, H)

    # ---------------- recurrence (statically unrolled, h carried in vregs) ---
    # Per step (t < T-1): 6 serial matmuls + one packed 80-lane store.
    # TODO(synk): for large T switch to lax.fori_loop over pl.ds-indexed slabs.
    for t in range(T):
        r0, r1 = t * B, (t + 1) * B

        # single fused dot with h as LHS: [posterior-l1 part | transition-l1 part]
        hcat = dot(h, hw_v)                                   # (B, 2H)

        # posterior: relu(ep + h-part) -> relu(.@W2+b2) -> fused mean|std head
        pf = jax.nn.relu(ep_all[r0:r1] + hcat[:, :H])
        pf = jax.nn.relu(dot(pf, p2w_v) + p2b_v)
        head = dot(pf, phw_v) + phb_v                         # (B, 2L)
        post_mean = head[:, :L]
        post_std = jax.nn.softplus(head[:, L:]) + 1e-5
        z = post_mean + post_std * noise_all[r0:r1]

        # one lane-dense packed store per step: [mean | std | z | h]
        slab_o[r0:r1, :] = jnp.concatenate([post_mean, post_std, z, h], axis=-1)

        if t < T - 1:
            # transition: relu(h-part + z@W_z + a-part) -> ... -> next h
            tn = jax.nn.relu(hcat[:, H:] + dot(z, t1wz_v) + ap_all[r0:r1])
            tn = jax.nn.relu(dot(tn, t2w_v) + t2b_v)
            h = dot(tn, t3w_v) + t3b_v

    # ---------------- hoisted prior over the first (T-1)*B hidden states -----
    if T > 1:
        h_prev = slab_o[: (T - 1) * B, 3 * L:]                # (Tm1*B, H)
        pr = jax.nn.relu(dot(h_prev, q1w[...]) + q1b[...])
        pr = jax.nn.relu(dot(pr, q2w[...]) + q2b[...])
        prior_o[...] = dot(pr, qhw[...]) + qhb[...]           # raw [mean | std_pre]
    else:
        prior_o[...] = jnp.zeros(prior_o.shape, f32)

    # ---------------- hoisted decoder over all T*B rows ----------------------
    # [z | h] are contiguous slab lanes in the same order as cat([z_t, h_t]),
    # so the original (L+H, H) decoder weight is used whole.
    zh = slab_o[:, 2 * L:]                                    # (T*B, L+H)
    d = jax.nn.relu(dot(zh, d1w[...]) + d1b[...])
    d = jax.nn.relu(dot(d, d2w[...]) + d2b[...])
    rec_o[...] = dot(d, d3w[...]) + d3b[...]


# ----------------------------- param pre-processing ---------------------------

def preprocess_params(flat_params, hidden_dim, latent_dim):
    """Split concat-weights, compose linear layers, fuse heads (host side)."""
    (e1w, e1b, e2w, e2b, e3w, e3b, p1w, p1b, p2w, p2b, pmw, pmb, psw, psb,
     q1w, q1b, q2w, q2b, qmw, qmb, qsw, qsb, t1w, t1b, t2w, t2b, t3w, t3b,
     d1w, d1b, d2w, d2b, d3w, d3b) = flat_params
    H, L = hidden_dim, latent_dim

    p1we, p1wh = p1w[:H], p1w[H:]                    # posterior l1: [obs_enc | h]
    # Compose the linear (no-ReLU) encoder layer 3 with the posterior-l1
    # encoder part:  (e@e3w + e3b)@p1we + p1b == e@(e3w@p1we) + (e3b@p1we + p1b)
    epw = e3w @ p1we                                 # (H, H)
    epb = e3b @ p1we + p1b                           # (1, H)

    t1wh, t1wz, t1wa = t1w[:H], t1w[H:H + L], t1w[H + L:]   # transition l1: [h | z | a]
    hw = jnp.concatenate([p1wh, t1wh], axis=1)       # fused h-LHS weight (H, 2H)

    phw = jnp.concatenate([pmw, psw], axis=1)        # fused posterior head (H, 2L)
    phb = jnp.concatenate([pmb, psb], axis=1)
    qhw = jnp.concatenate([qmw, qsw], axis=1)        # fused prior head (H, 2L)
    qhb = jnp.concatenate([qmb, qsb], axis=1)

    return [e1w, e1b, e2w, e2b, epw, epb, hw,
            p2w, p2b, phw, phb,
            q1w, q1b, q2w, q2b, qhw, qhb,
            t1wz, t1wa, t1b, t2w, t2b, t3w, t3b,
            d1w, d1b, d2w, d2b, d3w, d3b]


# ----------------------------- wrapper ----------------------------------------

def rssm_world_model_forward(flat_params, h0, obs, actions, noise):
    """obs [B,T,obs_dim], actions [B,T,action_dim], noise [B,T,latent_dim]."""
    B, T, obs_dim = obs.shape
    latent_dim = noise.shape[-1]
    hidden_dim = h0.shape[-1]
    L, H = latent_dim, hidden_dim
    f32 = jnp.float32

    params = preprocess_params([p.astype(f32) for p in flat_params], H, L)

    def tmajor(x):  # [B,T,D] -> time-major flat [T*B, D]
        return jnp.transpose(x, (1, 0, 2)).reshape(T * B, x.shape[-1]).astype(f32)

    obs_f, act_f, noise_f = tmajor(obs), tmajor(actions), tmajor(noise)

    Tm1 = max(T - 1, 1)
    slab_w = 3 * L + H
    out_shape = (
        jax.ShapeDtypeStruct((T * B, slab_w), f32),     # packed [mean|std|z|h]
        jax.ShapeDtypeStruct((Tm1 * B, 2 * L), f32),    # raw prior head
        jax.ShapeDtypeStruct((T * B, obs_dim), f32),    # reconstructions
    )

    kernel = functools.partial(rssm_kernel, T=T, B=B, L=L, H=H, NP=len(params))
    n_in = 4 + len(params)

    # Single grid-less invocation: all inputs, params and outputs are pinned
    # VMEM-resident (explicit memory_space), total footprint << 1 MiB, well
    # under the scoped-VMEM limit on v5e/v6e/v7x alike.
    slab, prior_raw, rec = pl.pallas_call(
        kernel,
        out_shape=out_shape,
        in_specs=[pl.BlockSpec(memory_space=pltpu.MemorySpace.VMEM)
                  for _ in range(n_in)],
        out_specs=(pl.BlockSpec(memory_space=pltpu.MemorySpace.VMEM),
                   pl.BlockSpec(memory_space=pltpu.MemorySpace.VMEM),
                   pl.BlockSpec(memory_space=pltpu.MemorySpace.VMEM)),
        compiler_params=pltpu.CompilerParams(vmem_limit_bytes=32 * 1024 * 1024),
    )(obs_f, act_f, noise_f, h0.astype(f32), *params)

    def to_bt(x, steps):  # time-major flat [steps*B, D] -> [B, steps, D]
        return jnp.transpose(x.reshape(steps, B, x.shape[-1]), (1, 0, 2))

    pm = to_bt(slab[:, :L], T)
    ps = to_bt(slab[:, L:2 * L], T)
    zs = to_bt(slab[:, 2 * L:3 * L], T)
    hs = to_bt(slab[:, 3 * L:], T)
    rc = to_bt(rec, T)
    if T > 1:
        qm = to_bt(prior_raw[:, :L], T - 1)
        qs = to_bt(jax.nn.softplus(prior_raw[:, L:]) + 1e-5, T - 1)
    else:
        qm = qs = None

    return {
        "posterior_means": pm,
        "posterior_stds": ps,
        "prior_means": qm,
        "prior_stds": qs,
        "latent_samples": zs,
        "hidden_states": hs,
        "obs_reconstructions": rc,
    }


# ----------------------------- params & reference -----------------------------

def make_linear(key, fan_in, fan_out):
    kw, kb = jax.random.split(key)
    bound = 1.0 / np.sqrt(fan_in)
    w = jax.random.uniform(kw, (fan_in, fan_out), jnp.float32, -bound, bound)
    b = jax.random.uniform(kb, (1, fan_out), jnp.float32, -bound, bound)
    return w, b


def make_params(key, obs_dim, action_dim, hidden_dim, latent_dim):
    shapes = [
        (obs_dim, hidden_dim), (hidden_dim, hidden_dim), (hidden_dim, hidden_dim),   # obs_encoder
        (2 * hidden_dim, hidden_dim), (hidden_dim, hidden_dim),                      # posterior_net
        (hidden_dim, latent_dim), (hidden_dim, latent_dim),                          # posterior mean/std
        (hidden_dim, hidden_dim), (hidden_dim, hidden_dim),                          # prior_net
        (hidden_dim, latent_dim), (hidden_dim, latent_dim),                          # prior mean/std
        (hidden_dim + latent_dim + action_dim, hidden_dim),
        (hidden_dim, hidden_dim), (hidden_dim, hidden_dim),                          # transition_net
        (latent_dim + hidden_dim, hidden_dim), (hidden_dim, hidden_dim),
        (hidden_dim, obs_dim),                                                       # decoder
    ]
    keys = jax.random.split(key, len(shapes))
    flat = []
    for k, (fi, fo) in zip(keys, shapes):
        w, b = make_linear(k, fi, fo)
        flat += [w, b]
    return flat


def reference_forward(flat_params, h0, obs, actions, noise):
    (e1w, e1b, e2w, e2b, e3w, e3b, p1w, p1b, p2w, p2b, pmw, pmb, psw, psb,
     q1w, q1b, q2w, q2b, qmw, qmb, qsw, qsb, t1w, t1b, t2w, t2b, t3w, t3b,
     d1w, d1b, d2w, d2b, d3w, d3b) = flat_params
    B, T, _ = obs.shape
    h = jnp.broadcast_to(h0, (B, h0.shape[-1]))
    pm, ps, qm, qs, zs, hs, rc = [], [], [], [], [], [], []
    for t in range(T):
        e = jax.nn.relu(obs[:, t] @ e1w + e1b)
        e = jax.nn.relu(e @ e2w + e2b)
        e = e @ e3w + e3b
        pf = jax.nn.relu(jnp.concatenate([e, h], -1) @ p1w + p1b)
        pf = jax.nn.relu(pf @ p2w + p2b)
        mean = pf @ pmw + pmb
        std = jax.nn.softplus(pf @ psw + psb) + 1e-5
        z = mean + std * noise[:, t]
        d = jax.nn.relu(jnp.concatenate([z, h], -1) @ d1w + d1b)
        d = jax.nn.relu(d @ d2w + d2b)
        recon = d @ d3w + d3b
        pm.append(mean); ps.append(std); zs.append(z); hs.append(h); rc.append(recon)
        if t < T - 1:
            prf = jax.nn.relu(h @ q1w + q1b)
            prf = jax.nn.relu(prf @ q2w + q2b)
            qm.append(prf @ qmw + qmb)
            qs.append(jax.nn.softplus(prf @ qsw + qsb) + 1e-5)
            tin = jnp.concatenate([h, z, actions[:, t]], -1)
            hn = jax.nn.relu(tin @ t1w + t1b)
            hn = jax.nn.relu(hn @ t2w + t2b)
            h = hn @ t3w + t3b
    stk = lambda xs: jnp.stack(xs, axis=1)
    return {
        "posterior_means": stk(pm), "posterior_stds": stk(ps),
        "prior_means": stk(qm) if qm else None,
        "prior_stds": stk(qs) if qs else None,
        "latent_samples": stk(zs), "hidden_states": stk(hs),
        "obs_reconstructions": stk(rc),
    }


# ----------------------------- main -------------------------------------------

if __name__ == "__main__":
    B, T = 8, 6
    OBS_DIM, ACTION_DIM, HIDDEN_DIM, LATENT_DIM = 16, 8, 32, 16

    key = jax.random.PRNGKey(0)
    k_par, k_obs, k_act, k_noise = jax.random.split(key, 4)

    flat_params = make_params(k_par, OBS_DIM, ACTION_DIM, HIDDEN_DIM, LATENT_DIM)
    h0 = jnp.zeros((1, HIDDEN_DIM), jnp.float32)            # nn.Parameter(zeros)
    obs = jax.random.normal(k_obs, (B, T, OBS_DIM), jnp.float32)
    actions = jax.random.normal(k_act, (B, T, ACTION_DIM), jnp.float32)
    noise = jax.random.normal(k_noise, (B, T, LATENT_DIM), jnp.float32)

    # TODO(synk): torch.randn_like is emulated by feeding host-side Gaussian
    # noise; an in-kernel pltpu.prng_* path would not match the reference RNG.
    out = jax.jit(rssm_world_model_forward)(flat_params, h0, obs, actions, noise)
    out = jax.tree_util.tree_map(jax.block_until_ready, out)

    ref = reference_forward(flat_params, h0, obs, actions, noise)
    for name in out:
        if out[name] is None:
            assert ref[name] is None
            continue
        np.testing.assert_allclose(np.asarray(out[name]), np.asarray(ref[name]),
                                   rtol=1e-4, atol=1e-4)

    print("KERNEL_OK")
</pallas_src>

<mosaic_0001>
module attributes {stable_mosaic.version = 11 : i64} {
  func.func @rssm_kernel(%arg0: memref<48x16xf32, #tpu.memory_space<vmem>>, %arg1: memref<48x8xf32, #tpu.memory_space<vmem>>, %arg2: memref<48x16xf32, #tpu.memory_space<vmem>>, %arg3: memref<1x32xf32, #tpu.memory_space<vmem>>, %arg4: memref<16x32xf32, #tpu.memory_space<vmem>>, %arg5: memref<1x32xf32, #tpu.memory_space<vmem>>, %arg6: memref<32x32xf32, #tpu.memory_space<vmem>>, %arg7: memref<1x32xf32, #tpu.memory_space<vmem>>, %arg8: memref<32x32xf32, #tpu.memory_space<vmem>>, %arg9: memref<1x32xf32, #tpu.memory_space<vmem>>, %arg10: memref<32x64xf32, #tpu.memory_space<vmem>>, %arg11: memref<32x32xf32, #tpu.memory_space<vmem>>, %arg12: memref<1x32xf32, #tpu.memory_space<vmem>>, %arg13: memref<32x32xf32, #tpu.memory_space<vmem>>, %arg14: memref<1x32xf32, #tpu.memory_space<vmem>>, %arg15: memref<32x32xf32, #tpu.memory_space<vmem>>, %arg16: memref<1x32xf32, #tpu.memory_space<vmem>>, %arg17: memref<32x32xf32, #tpu.memory_space<vmem>>, %arg18: memref<1x32xf32, #tpu.memory_space<vmem>>, %arg19: memref<32x32xf32, #tpu.memory_space<vmem>>, %arg20: memref<1x32xf32, #tpu.memory_space<vmem>>, %arg21: memref<16x32xf32, #tpu.memory_space<vmem>>, %arg22: memref<8x32xf32, #tpu.memory_space<vmem>>, %arg23: memref<1x32xf32, #tpu.memory_space<vmem>>, %arg24: memref<32x32xf32, #tpu.memory_space<vmem>>, %arg25: memref<1x32xf32, #tpu.memory_space<vmem>>, %arg26: memref<32x32xf32, #tpu.memory_space<vmem>>, %arg27: memref<1x32xf32, #tpu.memory_space<vmem>>, %arg28: memref<48x32xf32, #tpu.memory_space<vmem>>, %arg29: memref<1x32xf32, #tpu.memory_space<vmem>>, %arg30: memref<32x32xf32, #tpu.memory_space<vmem>>, %arg31: memref<1x32xf32, #tpu.memory_space<vmem>>, %arg32: memref<32x16xf32, #tpu.memory_space<vmem>>, %arg33: memref<1x16xf32, #tpu.memory_space<vmem>>, %arg34: memref<48x80xf32, #tpu.memory_space<vmem>>, %arg35: memref<40x32xf32, #tpu.memory_space<vmem>>, %arg36: memref<48x16xf32, #tpu.memory_space<vmem>>) attributes {dimension_semantics = [], scalar_prefetch = 0 : i64, scratch_operands = 0 : i64, tpu.core_type = #tpu.core_type<tc>} {
    %c0 = arith.constant 0 : index
    %c0_0 = arith.constant 0 : index
    %0 = vector.load %arg0[%c0, %c0_0] : memref<48x16xf32, #tpu.memory_space<vmem>>, vector<48x16xf32>
    %c0_1 = arith.constant 0 : index
    %c0_2 = arith.constant 0 : index
    %1 = vector.load %arg4[%c0_1, %c0_2] : memref<16x32xf32, #tpu.memory_space<vmem>>, vector<16x32xf32>
    %cst = arith.constant dense<0.000000e+00> : vector<48x32xf32>
    %2 = tpu.matmul %0, %1, %cst {dimension_numbers = #tpu.dot_dimension_numbers<[1], [0], [0], [1], [0, 0, 1, 1], [], []>} : vector<48x16xf32>, vector<16x32xf32>, vector<48x32xf32> -> vector<48x32xf32>
    %c0_3 = arith.constant 0 : index
    %c0_4 = arith.constant 0 : index
    %3 = vector.load %arg5[%c0_3, %c0_4] : memref<1x32xf32, #tpu.memory_space<vmem>>, vector<1x32xf32>
    %4 = vector.broadcast %3 : vector<1x32xf32> to vector<48x32xf32>
    %5 = arith.addf %2, %4 : vector<48x32xf32>
    %cst_5 = arith.constant 0.000000e+00 : f32
    %6 = vector.broadcast %cst_5 : f32 to vector<48x32xf32>
    %7 = arith.maximumf %5, %6 : vector<48x32xf32>
    %c0_6 = arith.constant 0 : index
    %c0_7 = arith.constant 0 : index
    %8 = vector.load %arg6[%c0_6, %c0_7] : memref<32x32xf32, #tpu.memory_space<vmem>>, vector<32x32xf32>
    %cst_8 = arith.constant dense<0.000000e+00> : vector<48x32xf32>
    %9 = tpu.matmul %7, %8, %cst_8 {dimension_numbers = #tpu.dot_dimension_numbers<[1], [0], [0], [1], [0, 0, 1, 1], [], []>} : vector<48x32xf32>, vector<32x32xf32>, vector<48x32xf32> -> vector<48x32xf32>
    %c0_9 = arith.constant 0 : index
    %c0_10 = arith.constant 0 : index
    %10 = vector.load %arg7[%c0_9, %c0_10] : memref<1x32xf32, #tpu.memory_space<vmem>>, vector<1x32xf32>
    %11 = vector.broadcast %10 : vector<1x32xf32> to vector<48x32xf32>
    %12 = arith.addf %9, %11 : vector<48x32xf32>
    %cst_11 = arith.constant 0.000000e+00 : f32
    %13 = vector.broadcast %cst_11 : f32 to vector<48x32xf32>
    %14 = arith.maximumf %12, %13 : vector<48x32xf32>
    %c0_12 = arith.constant 0 : index
    %c0_13 = arith.constant 0 : index
    %15 = vector.load %arg8[%c0_12, %c0_13] : memref<32x32xf32, #tpu.memory_space<vmem>>, vector<32x32xf32>
    %cst_14 = arith.constant dense<0.000000e+00> : vector<48x32xf32>
    %16 = tpu.matmul %14, %15, %cst_14 {dimension_numbers = #tpu.dot_dimension_numbers<[1], [0], [0], [1], [0, 0, 1, 1], [], []>} : vector<48x32xf32>, vector<32x32xf32>, vector<48x32xf32> -> vector<48x32xf32>
    %c0_15 = arith.constant 0 : index
    %c0_16 = arith.constant 0 : index
    %17 = vector.load %arg9[%c0_15, %c0_16] : memref<1x32xf32, #tpu.memory_space<vmem>>, vector<1x32xf32>
    %18 = vector.broadcast %17 : vector<1x32xf32> to vector<48x32xf32>
    %19 = arith.addf %16, %18 : vector<48x32xf32>
    %c0_17 = arith.constant 0 : index
    %c0_18 = arith.constant 0 : index
    %20 = vector.load %arg1[%c0_17, %c0_18] : memref<48x8xf32, #tpu.memory_space<vmem>>, vector<48x8xf32>
    %c0_19 = arith.constant 0 : index
    %c0_20 = arith.constant 0 : index
    %21 = vector.load %arg22[%c0_19, %c0_20] : memref<8x32xf32, #tpu.memory_space<vmem>>, vector<8x32xf32>
    %cst_21 = arith.constant dense<0.000000e+00> : vector<48x32xf32>
    %22 = tpu.matmul %20, %21, %cst_21 {dimension_numbers = #tpu.dot_dimension_numbers<[1], [0], [0], [1], [0, 0, 1, 1], [], []>} : vector<48x8xf32>, vector<8x32xf32>, vector<48x32xf32> -> vector<48x32xf32>
    %c0_22 = arith.constant 0 : index
    %c0_23 = arith.constant 0 : index
    %23 = vector.load %arg23[%c0_22, %c0_23] : memref<1x32xf32, #tpu.memory_space<vmem>>, vector<1x32xf32>
    %24 = vector.broadcast %23 : vector<1x32xf32> to vector<48x32xf32>
    %25 = arith.addf %22, %24 : vector<48x32xf32>
    %c0_24 = arith.constant 0 : index
    %c0_25 = arith.constant 0 : index
    %26 = vector.load %arg2[%c0_24, %c0_25] : memref<48x16xf32, #tpu.memory_space<vmem>>, vector<48x16xf32>
    %c0_26 = arith.constant 0 : index
    %c0_27 = arith.constant 0 : index
    %27 = vector.load %arg10[%c0_26, %c0_27] : memref<32x64xf32, #tpu.memory_space<vmem>>, vector<32x64xf32>
    %c0_28 = arith.constant 0 : index
    %c0_29 = arith.constant 0 : index
    %28 = vector.load %arg11[%c0_28, %c0_29] : memref<32x32xf32, #tpu.memory_space<vmem>>, vector<32x32xf32>
    %c0_30 = arith.constant 0 : index
    %c0_31 = arith.constant 0 : index
    %29 = vector.load %arg12[%c0_30, %c0_31] : memref<1x32xf32, #tpu.memory_space<vmem>>, vector<1x32xf32>
    %c0_32 = arith.constant 0 : index
    %c0_33 = arith.constant 0 : index
    %30 = vector.load %arg13[%c0_32, %c0_33] : memref<32x32xf32, #tpu.memory_space<vmem>>, vector<32x32xf32>
    %c0_34 = arith.constant 0 : index
    %c0_35 = arith.constant 0 : index
    %31 = vector.load %arg14[%c0_34, %c0_35] : memref<1x32xf32, #tpu.memory_space<vmem>>, vector<1x32xf32>
    %c0_36 = arith.constant 0 : index
    %c0_37 = arith.constant 0 : index
    %32 = vector.load %arg21[%c0_36, %c0_37] : memref<16x32xf32, #tpu.memory_space<vmem>>, vector<16x32xf32>
    %c0_38 = arith.constant 0 : index
    %c0_39 = arith.constant 0 : index
    %33 = vector.load %arg24[%c0_38, %c0_39] : memref<32x32xf32, #tpu.memory_space<vmem>>, vector<32x32xf32>
    %c0_40 = arith.constant 0 : index
    %c0_41 = arith.constant 0 : index
    %34 = vector.load %arg25[%c0_40, %c0_41] : memref<1x32xf32, #tpu.memory_space<vmem>>, vector<1x32xf32>
    %c0_42 = arith.constant 0 : index
    %c0_43 = arith.constant 0 : index
    %35 = vector.load %arg26[%c0_42, %c0_43] : memref<32x32xf32, #tpu.memory_space<vmem>>, vector<32x32xf32>
    %c0_44 = arith.constant 0 : index
    %c0_45 = arith.constant 0 : index
    %36 = vector.load %arg27[%c0_44, %c0_45] : memref<1x32xf32, #tpu.memory_space<vmem>>, vector<1x32xf32>
    %c0_46 = arith.constant 0 : index
    %c0_47 = arith.constant 0 : index
    %37 = vector.load %arg3[%c0_46, %c0_47] : memref<1x32xf32, #tpu.memory_space<vmem>>, vector<1x32xf32>
    %38 = vector.shape_cast %37 : vector<1x32xf32> to vector<1x32xf32>
    %39 = vector.broadcast %38 : vector<1x32xf32> to vector<8x32xf32>
    %cst_48 = arith.constant dense<0.000000e+00> : vector<8x64xf32>
    %40 = tpu.matmul %39, %27, %cst_48 {dimension_numbers = #tpu.dot_dimension_numbers<[1], [0], [0], [1], [0, 0, 1, 1], [], []>} : vector<8x32xf32>, vector<32x64xf32>, vector<8x64xf32> -> vector<8x64xf32>
    %41 = vector.extract_strided_slice %19 {offsets = [0, 0], sizes = [8, 32], strides = [1, 1]} : vector<48x32xf32> to vector<8x32xf32>
    %42 = vector.extract_strided_slice %40 {offsets = [0, 0], sizes = [8, 32], strides = [1, 1]} : vector<8x64xf32> to vector<8x32xf32>
    %43 = arith.addf %41, %42 : vector<8x32xf32>
    %cst_49 = arith.constant 0.000000e+00 : f32
    %44 = vector.broadcast %cst_49 : f32 to vector<8x32xf32>
    %45 = arith.maximumf %43, %44 : vector<8x32xf32>
    %cst_50 = arith.constant dense<0.000000e+00> : vector<8x32xf32>
    %46 = tpu.matmul %45, %28, %cst_50 {dimension_numbers = #tpu.dot_dimension_numbers<[1], [0], [0], [1], [0, 0, 1, 1], [], []>} : vector<8x32xf32>, vector<32x32xf32>, vector<8x32xf32> -> vector<8x32xf32>
    %47 = vector.broadcast %29 : vector<1x32xf32> to vector<8x32xf32>
    %48 = arith.addf %46, %47 : vector<8x32xf32>
    %cst_51 = arith.constant 0.000000e+00 : f32
    %49 = vector.broadcast %cst_51 : f32 to vector<8x32xf32>
    %50 = arith.maximumf %48, %49 : vector<8x32xf32>
    %cst_52 = arith.constant dense<0.000000e+00> : vector<8x32xf32>
    %51 = tpu.matmul %50, %30, %cst_52 {dimension_numbers = #tpu.dot_dimension_numbers<[1], [0], [0], [1], [0, 0, 1, 1], [], []>} : vector<8x32xf32>, vector<32x32xf32>, vector<8x32xf32> -> vector<8x32xf32>
    %52 = vector.broadcast %31 : vector<1x32xf32> to vector<8x32xf32>
    %53 = arith.addf %51, %52 : vector<8x32xf32>
    %54 = vector.extract_strided_slice %53 {offsets = [0, 0], sizes = [8, 16], strides = [1, 1]} : vector<8x32xf32> to vector<8x16xf32>
    %55 = vector.extract_strided_slice %53 {offsets = [0, 16], sizes = [8, 16], strides = [1, 1]} : vector<8x32xf32> to vector<8x16xf32>
    %cst_53 = arith.constant 0.000000e+00 : f32
    %56 = vector.broadcast %cst_53 : f32 to vector<8x16xf32>
    %57 = arith.maximumf %55, %56 : vector<8x16xf32>
    %58 = vector.broadcast %cst_53 : f32 to vector<8x16xf32>
    %59 = arith.subf %55, %58 : vector<8x16xf32>
    %60 = arith.cmpf one, %59, %59 : vector<8x16xf32>
    %61 = vector.broadcast %cst_53 : f32 to vector<8x16xf32>
    %62 = arith.addf %55, %61 : vector<8x16xf32>
    %63 = math.absf %59 : vector<8x16xf32>
    %cst_54 = arith.constant 0.000000e+00 : f32
    %64 = vector.broadcast %cst_54 : f32 to vector<8x16xf32>
    %65 = arith.subf %64, %63 : vector<8x16xf32>
    %66 = math.exp %65 : vector<8x16xf32>
    %67 = math.log1p %66 : vector<8x16xf32>
    %68 = arith.addf %57, %67 : vector<8x16xf32>
    %69 = arith.select %60, %62, %68 : vector<8x16xi1>, vector<8x16xf32>
    %cst_55 = arith.constant 9.99999974E-6 : f32
    %70 = vector.broadcast %cst_55 : f32 to vector<8x16xf32>
    %71 = arith.addf %69, %70 : vector<8x16xf32>
    %72 = vector.extract_strided_slice %26 {offsets = [0, 0], sizes = [8, 16], strides = [1, 1]} : vector<48x16xf32> to vector<8x16xf32>
    %73 = arith.mulf %71, %72 : vector<8x16xf32>
    %74 = arith.addf %54, %73 : vector<8x16xf32>
    %75 = tpu.concatenate %54, %71, %74, %39 in 1 : vector<8x16xf32>, vector<8x16xf32>, vector<8x16xf32>, vector<8x32xf32> -> vector<8x80xf32>
    %c0_56 = arith.constant 0 : index
    %c0_57 = arith.constant 0 : index
    %76 = vector.load %arg34[%c0_56, %c0_57] : memref<48x80xf32, #tpu.memory_space<vmem>>, vector<8x80xf32>
    tpu.vector_store %arg34[%c0_56, %c0_57], %75 {strides = array<i32>} : memref<48x80xf32, #tpu.memory_space<vmem>>, vector<8x80xf32>,
    %77 = vector.extract_strided_slice %40 {offsets = [0, 32], sizes = [8, 32], strides = [1, 1]} : vector<8x64xf32> to vector<8x32xf32>
    %cst_58 = arith.constant dense<0.000000e+00> : vector<8x32xf32>
    %78 = tpu.matmul %74, %32, %cst_58 {dimension_numbers = #tpu.dot_dimension_numbers<[1], [0], [0], [1], [0, 0, 1, 1], [], []>} : vector<8x16xf32>, vector<16x32xf32>, vector<8x32xf32> -> vector<8x32xf32>
    %79 = arith.addf %77, %78 : vector<8x32xf32>
    %80 = vector.extract_strided_slice %25 {offsets = [0, 0], sizes = [8, 32], strides = [1, 1]} : vector<48x32xf32> to vector<8x32xf32>
    %81 = arith.addf %79, %80 : vector<8x32xf32>
    %cst_59 = arith.constant 0.000000e+00 : f32
    %82 = vector.broadcast %cst_59 : f32 to vector<8x32xf32>
    %83 = arith.maximumf %81, %82 : vector<8x32xf32>
    %cst_60 = arith.constant dense<0.000000e+00> : vector<8x32xf32>
    %84 = tpu.matmul %83, %33, %cst_60 {dimension_numbers = #tpu.dot_dimension_numbers<[1], [0], [0], [1], [0, 0, 1, 1], [], []>} : vector<8x32xf32>, vector<32x32xf32>, vector<8x32xf32> -> vector<8x32xf32>
    %85 = vector.broadcast %34 : vector<1x32xf32> to vector<8x32xf32>
    %86 = arith.addf %84, %85 : vector<8x32xf32>
    %cst_61 = arith.constant 0.000000e+00 : f32
    %87 = vector.broadcast %cst_61 : f32 to vector<8x32xf32>
    %88 = arith.maximumf %86, %87 : vector<8x32xf32>
    %cst_62 = arith.constant dense<0.000000e+00> : vector<8x32xf32>
    %89 = tpu.matmul %88, %35, %cst_62 {dimension_numbers = #tpu.dot_dimension_numbers<[1], [0], [0], [1], [0, 0, 1, 1], [], []>} : vector<8x32xf32>, vector<32x32xf32>, vector<8x32xf32> -> vector<8x32xf32>
    %90 = vector.broadcast %36 : vector<1x32xf32> to vector<8x32xf32>
    %91 = arith.addf %89, %90 : vector<8x32xf32>
    %cst_63 = arith.constant dense<0.000000e+00> : vector<8x64xf32>
    %92 = tpu.matmul %91, %27, %cst_63 {dimension_numbers = #tpu.dot_dimension_numbers<[1], [0], [0], [1], [0, 0, 1, 1], [], []>} : vector<8x32xf32>, vector<32x64xf32>, vector<8x64xf32> -> vector<8x64xf32>
    %93 = vector.extract_strided_slice %19 {offsets = [8, 0], sizes = [8, 32], strides = [1, 1]} : vector<48x32xf32> to vector<8x32xf32>
    %94 = vector.extract_strided_slice %92 {offsets = [0, 0], sizes = [8, 32], strides = [1, 1]} : vector<8x64xf32> to vector<8x32xf32>
    %95 = arith.addf %93, %94 : vector<8x32xf32>
    %cst_64 = arith.constant 0.000000e+00 : f32
    %96 = vector.broadcast %cst_64 : f32 to vector<8x32xf32>
    %97 = arith.maximumf %95, %96 : vector<8x32xf32>
    %cst_65 = arith.constant dense<0.000000e+00> : vector<8x32xf32>
    %98 = tpu.matmul %97, %28, %cst_65 {dimension_numbers = #tpu.dot_dimension_numbers<[1], [0], [0], [1], [0, 0, 1, 1], [], []>} : vector<8x32xf32>, vector<32x32xf32>, vector<8x32xf32> -> vector<8x32xf32>
    %99 = vector.broadcast %29 : vector<1x32xf32> to vector<8x32xf32>
    %100 = arith.addf %98, %99 : vector<8x32xf32>
    %cst_66 = arith.constant 0.000000e+00 : f32
    %101 = vector.broadcast %cst_66 : f32 to vector<8x32xf32>
    %102 = arith.maximumf %100, %101 : vector<8x32xf32>
    %cst_67 = arith.constant dense<0.000000e+00> : vector<8x32xf32>
    %103 = tpu.matmul %102, %30, %cst_67 {dimension_numbers = #tpu.dot_dimension_numbers<[1], [0], [0], [1], [0, 0, 1, 1], [], []>} : vector<8x32xf32>, vector<32x32xf32>, vector<8x32xf32> -> vector<8x32xf32>
    %104 = vector.broadcast %31 : vector<1x32xf32> to vector<8x32xf32>
    %105 = arith.addf %103, %104 : vector<8x32xf32>
    %106 = vector.extract_strided_slice %105 {offsets = [0, 0], sizes = [8, 16], strides = [1, 1]} : vector<8x32xf32> to vector<8x16xf32>
    %107 = vector.extract_strided_slice %105 {offsets = [0, 16], sizes = [8, 16], strides = [1, 1]} : vector<8x32xf32> to vector<8x16xf32>
    %cst_68 = arith.constant 0.000000e+00 : f32
    %108 = vector.broadcast %cst_68 : f32 to vector<8x16xf32>
    %109 = arith.maximumf %107, %108 : vector<8x16xf32>
    %110 = vector.broadcast %cst_68 : f32 to vector<8x16xf32>
    %111 = arith.subf %107, %110 : vector<8x16xf32>
    %112 = arith.cmpf one, %111, %111 : vector<8x16xf32>
    %113 = vector.broadcast %cst_68 : f32 to vector<8x16xf32>
    %114 = arith.addf %107, %113 : vector<8x16xf32>
    %115 = math.absf %111 : vector<8x16xf32>
    %cst_69 = arith.constant 0.000000e+00 : f32
    %116 = vector.broadcast %cst_69 : f32 to vector<8x16xf32>
    %117 = arith.subf %116, %115 : vector<8x16xf32>
    %118 = math.exp %117 : vector<8x16xf32>
    %119 = math.log1p %118 : vector<8x16xf32>
    %120 = arith.addf %109, %119 : vector<8x16xf32>
    %121 = arith.select %112, %114, %120 : vector<8x16xi1>, vector<8x16xf32>
    %cst_70 = arith.constant 9.99999974E-6 : f32
    %122 = vector.broadcast %cst_70 : f32 to vector<8x16xf32>
    %123 = arith.addf %121, %122 : vector<8x16xf32>
    %124 = vector.extract_strided_slice %26 {offsets = [8, 0], sizes = [8, 16], strides = [1, 1]} : vector<48x16xf32> to vector<8x16xf32>
    %125 = arith.mulf %123, %124 : vector<8x16xf32>
    %126 = arith.addf %106, %125 : vector<8x16xf32>
    %127 = tpu.concatenate %106, %123, %126, %91 in 1 : vector<8x16xf32>, vector<8x16xf32>, vector<8x16xf32>, vector<8x32xf32> -> vector<8x80xf32>
    %c8 = arith.constant 8 : index
    %c0_71 = arith.constant 0 : index
    %128 = vector.load %arg34[%c8, %c0_71] : memref<48x80xf32, #tpu.memory_space<vmem>>, vector<8x80xf32>
    tpu.vector_store %arg34[%c8, %c0_71], %127 {strides = array<i32>} : memref<48x80xf32, #tpu.memory_space<vmem>>, vector<8x80xf32>,
    %129 = vector.extract_strided_slice %92 {offsets = [0, 32], sizes = [8, 32], strides = [1, 1]} : vector<8x64xf32> to vector<8x32xf32>
    %cst_72 = arith.constant dense<0.000000e+00> : vector<8x32xf32>
    %130 = tpu.matmul %126, %32, %cst_72 {dimension_numbers = #tpu.dot_dimension_numbers<[1], [0], [0], [1], [0, 0, 1, 1], [], []>} : vector<8x16xf32>, vector<16x32xf32>, vector<8x32xf32> -> vector<8x32xf32>
    %131 = arith.addf %129, %130 : vector<8x32xf32>
    %132 = vector.extract_strided_slice %25 {offsets = [8, 0], sizes = [8, 32], strides = [1, 1]} : vector<48x32xf32> to vector<8x32xf32>
    %133 = arith.addf %131, %132 : vector<8x32xf32>
    %cst_73 = arith.constant 0.000000e+00 : f32
    %134 = vector.broadcast %cst_73 : f32 to vector<8x32xf32>
    %135 = arith.maximumf %133, %134 : vector<8x32xf32>
    %cst_74 = arith.constant dense<0.000000e+00> : vector<8x32xf32>
    %136 = tpu.matmul %135, %33, %cst_74 {dimension_numbers = #tpu.dot_dimension_numbers<[1], [0], [0], [1], [0, 0, 1, 1], [], []>} : vector<8x32xf32>, vector<32x32xf32>, vector<8x32xf32> -> vector<8x32xf32>
    %137 = vector.broadcast %34 : vector<1x32xf32> to vector<8x32xf32>
    %138 = arith.addf %136, %137 : vector<8x32xf32>
    %cst_75 = arith.constant 0.000000e+00 : f32
    %139 = vector.broadcast %cst_75 : f32 to vector<8x32xf32>
    %140 = arith.maximumf %138, %139 : vector<8x32xf32>
    %cst_76 = arith.constant dense<0.000000e+00> : vector<8x32xf32>
    %141 = tpu.matmul %140, %35, %cst_76 {dimension_numbers = #tpu.dot_dimension_numbers<[1], [0], [0], [1], [0, 0, 1, 1], [], []>} : vector<8x32xf32>, vector<32x32xf32>, vector<8x32xf32> -> vector<8x32xf32>
    %142 = vector.broadcast %36 : vector<1x32xf32> to vector<8x32xf32>
    %143 = arith.addf %141, %142 : vector<8x32xf32>
    %cst_77 = arith.constant dense<0.000000e+00> : vector<8x64xf32>
    %144 = tpu.matmul %143, %27, %cst_77 {dimension_numbers = #tpu.dot_dimension_numbers<[1], [0], [0], [1], [0, 0, 1, 1], [], []>} : vector<8x32xf32>, vector<32x64xf32>, vector<8x64xf32> -> vector<8x64xf32>
    %145 = vector.extract_strided_slice %19 {offsets = [16, 0], sizes = [8, 32], strides = [1, 1]} : vector<48x32xf32> to vector<8x32xf32>
    %146 = vector.extract_strided_slice %144 {offsets = [0, 0], sizes = [8, 32], strides = [1, 1]} : vector<8x64xf32> to vector<8x32xf32>
    %147 = arith.addf %145, %146 : vector<8x32xf32>
    %cst_78 = arith.constant 0.000000e+00 : f32
    %148 = vector.broadcast %cst_78 : f32 to vector<8x32xf32>
    %149 = arith.maximumf %147, %148 : vector<8x32xf32>
    %cst_79 = arith.constant dense<0.000000e+00> : vector<8x32xf32>
    %150 = tpu.matmul %149, %28, %cst_79 {dimension_numbers = #tpu.dot_dimension_numbers<[1], [0], [0], [1], [0, 0, 1, 1], [], []>} : vector<8x32xf32>, vector<32x32xf32>, vector<8x32xf32> -> vector<8x32xf32>
    %151 = vector.broadcast %29 : vector<1x32xf32> to vector<8x32xf32>
    %152 = arith.addf %150, %151 : vector<8x32xf32>
    %cst_80 = arith.constant 0.000000e+00 : f32
    %153 = vector.broadcast %cst_80 : f32 to vector<8x32xf32>
    %154 = arith.maximumf %152, %153 : vector<8x32xf32>
    %cst_81 = arith.constant dense<0.000000e+00> : vector<8x32xf32>
    %155 = tpu.matmul %154, %30, %cst_81 {dimension_numbers = #tpu.dot_dimension_numbers<[1], [0], [0], [1], [0, 0, 1, 1], [], []>} : vector<8x32xf32>, vector<32x32xf32>, vector<8x32xf32> -> vector<8x32xf32>
    %156 = vector.broadcast %31 : vector<1x32xf32> to vector<8x32xf32>
    %157 = arith.addf %155, %156 : vector<8x32xf32>
    %158 = vector.extract_strided_slice %157 {offsets = [0, 0], sizes = [8, 16], strides = [1, 1]} : vector<8x32xf32> to vector<8x16xf32>
    %159 = vector.extract_strided_slice %157 {offsets = [0, 16], sizes = [8, 16], strides = [1, 1]} : vector<8x32xf32> to vector<8x16xf32>
    %cst_82 = arith.constant 0.000000e+00 : f32
    %160 = vector.broadcast %cst_82 : f32 to vector<8x16xf32>
    %161 = arith.maximumf %159, %160 : vector<8x16xf32>
    %162 = vector.broadcast %cst_82 : f32 to vector<8x16xf32>
    %163 = arith.subf %159, %162 : vector<8x16xf32>
    %164 = arith.cmpf one, %163, %163 : vector<8x16xf32>
    %165 = vector.broadcast %cst_82 : f32 to vector<8x16xf32>
    %166 = arith.addf %159, %165 : vector<8x16xf32>
    %167 = math.absf %163 : vector<8x16xf32>
    %cst_83 = arith.constant 0.000000e+00 : f32
    %168 = vector.broadcast %cst_83 : f32 to vector<8x16xf32>
    %169 = arith.subf %168, %167 : vector<8x16xf32>
    %170 = math.exp %169 : vector<8x16xf32>
    %171 = math.log1p %170 : vector<8x16xf32>
    %172 = arith.addf %161, %171 : vector<8x16xf32>
    %173 = arith.select %164, %166, %172 : vector<8x16xi1>, vector<8x16xf32>
    %cst_84 = arith.constant 9.99999974E-6 : f32
    %174 = vector.broadcast %cst_84 : f32 to vector<8x16xf32>
    %175 = arith.addf %173, %174 : vector<8x16xf32>
    %176 = vector.extract_strided_slice %26 {offsets = [16, 0], sizes = [8, 16], strides = [1, 1]} : vector<48x16xf32> to vector<8x16xf32>
    %177 = arith.mulf %175, %176 : vector<8x16xf32>
    %178 = arith.addf %158, %177 : vector<8x16xf32>
    %179 = tpu.concatenate %158, %175, %178, %143 in 1 : vector<8x16xf32>, vector<8x16xf32>, vector<8x16xf32>, vector<8x32xf32> -> vector<8x80xf32>
    %c16 = arith.constant 16 : index
    %c0_85 = arith.constant 0 : index
    %180 = vector.load %arg34[%c16, %c0_85] : memref<48x80xf32, #tpu.memory_space<vmem>>, vector<8x80xf32>
    tpu.vector_store %arg34[%c16, %c0_85], %179 {strides = array<i32>} : memref<48x80xf32, #tpu.memory_space<vmem>>, vector<8x80xf32>,
    %181 = vector.extract_strided_slice %144 {offsets = [0, 32], sizes = [8, 32], strides = [1, 1]} : vector<8x64xf32> to vector<8x32xf32>
    %cst_86 = arith.constant dense<0.000000e+00> : vector<8x32xf32>
    %182 = tpu.matmul %178, %32, %cst_86 {dimension_numbers = #tpu.dot_dimension_numbers<[1], [0], [0], [1], [0, 0, 1, 1], [], []>} : vector<8x16xf32>, vector<16x32xf32>, vector<8x32xf32> -> vector<8x32xf32>
    %183 = arith.addf %181, %182 : vector<8x32xf32>
    %184 = vector.extract_strided_slice %25 {offsets = [16, 0], sizes = [8, 32], strides = [1, 1]} : vector<48x32xf32> to vector<8x32xf32>
    %185 = arith.addf %183, %184 : vector<8x32xf32>
    %cst_87 = arith.constant 0.000000e+00 : f32
    %186 = vector.broadcast %cst_87 : f32 to vector<8x32xf32>
    %187 = arith.maximumf %185, %186 : vector<8x32xf32>
    %cst_88 = arith.constant dense<0.000000e+00> : vector<8x32xf32>
    %188 = tpu.matmul %187, %33, %cst_88 {dimension_numbers = #tpu.dot_dimension_numbers<[1], [0], [0], [1], [0, 0, 1, 1], [], []>} : vector<8x32xf32>, vector<32x32xf32>, vector<8x32xf32> -> vector<8x32xf32>
    %189 = vector.broadcast %34 : vector<1x32xf32> to vector<8x32xf32>
    %190 = arith.addf %188, %189 : vector<8x32xf32>
    %cst_89 = arith.constant 0.000000e+00 : f32
    %191 = vector.broadcast %cst_89 : f32 to vector<8x32xf32>
    %192 = arith.maximumf %190, %191 : vector<8x32xf32>
    %cst_90 = arith.constant dense<0.000000e+00> : vector<8x32xf32>
    %193 = tpu.matmul %192, %35, %cst_90 {dimension_numbers = #tpu.dot_dimension_numbers<[1], [0], [0], [1], [0, 0, 1, 1], [], []>} : vector<8x32xf32>, vector<32x32xf32>, vector<8x32xf32> -> vector<8x32xf32>
    %194 = vector.broadcast %36 : vector<1x32xf32> to vector<8x32xf32>
    %195 = arith.addf %193, %194 : vector<8x32xf32>
    %cst_91 = arith.constant dense<0.000000e+00> : vector<8x64xf32>
    %196 = tpu.matmul %195, %27, %cst_91 {dimension_numbers = #tpu.dot_dimension_numbers<[1], [0], [0], [1], [0, 0, 1, 1], [], []>} : vector<8x32xf32>, vector<32x64xf32>, vector<8x64xf32> -> vector<8x64xf32>
    %197 = vector.extract_strided_slice %19 {offsets = [24, 0], sizes = [8, 32], strides = [1, 1]} : vector<48x32xf32> to vector<8x32xf32>
    %198 = vector.extract_strided_slice %196 {offsets = [0, 0], sizes = [8, 32], strides = [1, 1]} : vector<8x64xf32> to vector<8x32xf32>
    %199 = arith.addf %197, %198 : vector<8x32xf32>
    %cst_92 = arith.constant 0.000000e+00 : f32
    %200 = vector.broadcast %cst_92 : f32 to vector<8x32xf32>
    %201 = arith.maximumf %199, %200 : vector<8x32xf32>
    %cst_93 = arith.constant dense<0.000000e+00> : vector<8x32xf32>
    %202 = tpu.matmul %201, %28, %cst_93 {dimension_numbers = #tpu.dot_dimension_numbers<[1], [0], [0], [1], [0, 0, 1, 1], [], []>} : vector<8x32xf32>, vector<32x32xf32>, vector<8x32xf32> -> vector<8x32xf32>
    %203 = vector.broadcast %29 : vector<1x32xf32> to vector<8x32xf32>
    %204 = arith.addf %202, %203 : vector<8x32xf32>
    %cst_94 = arith.constant 0.000000e+00 : f32
    %205 = vector.broadcast %cst_94 : f32 to vector<8x32xf32>
    %206 = arith.maximumf %204, %205 : vector<8x32xf32>
    %cst_95 = arith.constant dense<0.000000e+00> : vector<8x32xf32>
    %207 = tpu.matmul %206, %30, %cst_95 {dimension_numbers = #tpu.dot_dimension_numbers<[1], [0], [0], [1], [0, 0, 1, 1], [], []>} : vector<8x32xf32>, vector<32x32xf32>, vector<8x32xf32> -> vector<8x32xf32>
    %208 = vector.broadcast %31 : vector<1x32xf32> to vector<8x32xf32>
    %209 = arith.addf %207, %208 : vector<8x32xf32>
    %210 = vector.extract_strided_slice %209 {offsets = [0, 0], sizes = [8, 16], strides = [1, 1]} : vector<8x32xf32> to vector<8x16xf32>
    %211 = vector.extract_strided_slice %209 {offsets = [0, 16], sizes = [8, 16], strides = [1, 1]} : vector<8x32xf32> to vector<8x16xf32>
    %cst_96 = arith.constant 0.000000e+00 : f32
    %212 = vector.broadcast %cst_96 : f32 to vector<8x16xf32>
    %213 = arith.maximumf %211, %212 : vector<8x16xf32>
    %214 = vector.broadcast %cst_96 : f32 to vector<8x16xf32>
    %215 = arith.subf %211, %214 : vector<8x16xf32>
    %216 = arith.cmpf one, %215, %215 : vector<8x16xf32>
    %217 = vector.broadcast %cst_96 : f32 to vector<8x16xf32>
    %218 = arith.addf %211, %217 : vector<8x16xf32>
    %219 = math.absf %215 : vector<8x16xf32>
    %cst_97 = arith.constant 0.000000e+00 : f32
    %220 = vector.broadcast %cst_97 : f32 to vector<8x16xf32>
    %221 = arith.subf %220, %219 : vector<8x16xf32>
    %222 = math.exp %221 : vector<8x16xf32>
    %223 = math.log1p %222 : vector<8x16xf32>
    %224 = arith.addf %213, %223 : vector<8x16xf32>
    %225 = arith.select %216, %218, %224 : vector<8x16xi1>, vector<8x16xf32>
    %cst_98 = arith.constant 9.99999974E-6 : f32
    %226 = vector.broadcast %cst_98 : f32 to vector<8x16xf32>
    %227 = arith.addf %225, %226 : vector<8x16xf32>
    %228 = vector.extract_strided_slice %26 {offsets = [24, 0], sizes = [8, 16], strides = [1, 1]} : vector<48x16xf32> to vector<8x16xf32>
    %229 = arith.mulf %227, %228 : vector<8x16xf32>
    %230 = arith.addf %210, %229 : vector<8x16xf32>
    %231 = tpu.concatenate %210, %227, %230, %195 in 1 : vector<8x16xf32>, vector<8x16xf32>, vector<8x16xf32>, vector<8x32xf32> -> vector<8x80xf32>
    %c24 = arith.constant 24 : index
    %c0_99 = arith.constant 0 : index
    %232 = vector.load %arg34[%c24, %c0_99] : memref<48x80xf32, #tpu.memory_space<vmem>>, vector<8x80xf32>
    tpu.vector_store %arg34[%c24, %c0_99], %231 {strides = array<i32>} : memref<48x80xf32, #tpu.memory_space<vmem>>, vector<8x80xf32>,
    %233 = vector.extract_strided_slice %196 {offsets = [0, 32], sizes = [8, 32], strides = [1, 1]} : vector<8x64xf32> to vector<8x32xf32>
    %cst_100 = arith.constant dense<0.000000e+00> : vector<8x32xf32>
    %234 = tpu.matmul %230, %32, %cst_100 {dimension_numbers = #tpu.dot_dimension_numbers<[1], [0], [0], [1], [0, 0, 1, 1], [], []>} : vector<8x16xf32>, vector<16x32xf32>, vector<8x32xf32> -> vector<8x32xf32>
    %235 = arith.addf %233, %234 : vector<8x32xf32>
    %236 = vector.extract_strided_slice %25 {offsets = [24, 0], sizes = [8, 32], strides = [1, 1]} : vector<48x32xf32> to vector<8x32xf32>
    %237 = arith.addf %235, %236 : vector<8x32xf32>
    %cst_101 = arith.constant 0.000000e+00 : f32
    %238 = vector.broadcast %cst_101 : f32 to vector<8x32xf32>
    %239 = arith.maximumf %237, %238 : vector<8x32xf32>
    %cst_102 = arith.constant dense<0.000000e+00> : vector<8x32xf32>
    %240 = tpu.matmul %239, %33, %cst_102 {dimension_numbers = #tpu.dot_dimension_numbers<[1], [0], [0], [1], [0, 0, 1, 1], [], []>} : vector<8x32xf32>, vector<32x32xf32>, vector<8x32xf32> -> vector<8x32xf32>
    %241 = vector.broadcast %34 : vector<1x32xf32> to vector<8x32xf32>
    %242 = arith.addf %240, %241 : vector<8x32xf32>
    %cst_103 = arith.constant 0.000000e+00 : f32
    %243 = vector.broadcast %cst_103 : f32 to vector<8x32xf32>
    %244 = arith.maximumf %242, %243 : vector<8x32xf32>
    %cst_104 = arith.constant dense<0.000000e+00> : vector<8x32xf32>
    %245 = tpu.matmul %244, %35, %cst_104 {dimension_numbers = #tpu.dot_dimension_numbers<[1], [0], [0], [1], [0, 0, 1, 1], [], []>} : vector<8x32xf32>, vector<32x32xf32>, vector<8x32xf32> -> vector<8x32xf32>
    %246 = vector.broadcast %36 : vector<1x32xf32> to vector<8x32xf32>
    %247 = arith.addf %245, %246 : vector<8x32xf32>
    %cst_105 = arith.constant dense<0.000000e+00> : vector<8x64xf32>
    %248 = tpu.matmul %247, %27, %cst_105 {dimension_numbers = #tpu.dot_dimension_numbers<[1], [0], [0], [1], [0, 0, 1, 1], [], []>} : vector<8x32xf32>, vector<32x64xf32>, vector<8x64xf32> -> vector<8x64xf32>
    %249 = vector.extract_strided_slice %19 {offsets = [32, 0], sizes = [8, 32], strides = [1, 1]} : vector<48x32xf32> to vector<8x32xf32>
    %250 = vector.extract_strided_slice %248 {offsets = [0, 0], sizes = [8, 32], strides = [1, 1]} : vector<8x64xf32> to vector<8x32xf32>
    %251 = arith.addf %249, %250 : vector<8x32xf32>
    %cst_106 = arith.constant 0.000000e+00 : f32
    %252 = vector.broadcast %cst_106 : f32 to vector<8x32xf32>
    %253 = arith.maximumf %251, %252 : vector<8x32xf32>
    %cst_107 = arith.constant dense<0.000000e+00> : vector<8x32xf32>
    %254 = tpu.matmul %253, %28, %cst_107 {dimension_numbers = #tpu.dot_dimension_numbers<[1], [0], [0], [1], [0, 0, 1, 1], [], []>} : vector<8x32xf32>, vector<32x32xf32>, vector<8x32xf32> -> vector<8x32xf32>
    %255 = vector.broadcast %29 : vector<1x32xf32> to vector<8x32xf32>
    %256 = arith.addf %254, %255 : vector<8x32xf32>
    %cst_108 = arith.constant 0.000000e+00 : f32
    %257 = vector.broadcast %cst_108 : f32 to vector<8x32xf32>
    %258 = arith.maximumf %256, %257 : vector<8x32xf32>
    %cst_109 = arith.constant dense<0.000000e+00> : vector<8x32xf32>
    %259 = tpu.matmul %258, %30, %cst_109 {dimension_numbers = #tpu.dot_dimension_numbers<[1], [0], [0], [1], [0, 0, 1, 1], [], []>} : vector<8x32xf32>, vector<32x32xf32>, vector<8x32xf32> -> vector<8x32xf32>
    %260 = vector.broadcast %31 : vector<1x32xf32> to vector<8x32xf32>
    %261 = arith.addf %259, %260 : vector<8x32xf32>
    %262 = vector.extract_strided_slice %261 {offsets = [0, 0], sizes = [8, 16], strides = [1, 1]} : vector<8x32xf32> to vector<8x16xf32>
    %263 = vector.extract_strided_slice %261 {offsets = [0, 16], sizes = [8, 16], strides = [1, 1]} : vector<8x32xf32> to vector<8x16xf32>
    %cst_110 = arith.constant 0.000000e+00 : f32
    %264 = vector.broadcast %cst_110 : f32 to vector<8x16xf32>
    %265 = arith.maximumf %263, %264 : vector<8x16xf32>
    %266 = vector.broadcast %cst_110 : f32 to vector<8x16xf32>
    %267 = arith.subf %263, %266 : vector<8x16xf32>
    %268 = arith.cmpf one, %267, %267 : vector<8x16xf32>
    %269 = vector.broadcast %cst_110 : f32 to vector<8x16xf32>
    %270 = arith.addf %263, %269 : vector<8x16xf32>
    %271 = math.absf %267 : vector<8x16xf32>
    %cst_111 = arith.constant 0.000000e+00 : f32
    %272 = vector.broadcast %cst_111 : f32 to vector<8x16xf32>
    %273 = arith.subf %272, %271 : vector<8x16xf32>
    %274 = math.exp %273 : vector<8x16xf32>
    %275 = math.log1p %274 : vector<8x16xf32>
    %276 = arith.addf %265, %275 : vector<8x16xf32>
    %277 = arith.select %268, %270, %276 : vector<8x16xi1>, vector<8x16xf32>
    %cst_112 = arith.constant 9.99999974E-6 : f32
    %278 = vector.broadcast %cst_112 : f32 to vector<8x16xf32>
    %279 = arith.addf %277, %278 : vector<8x16xf32>
    %280 = vector.extract_strided_slice %26 {offsets = [32, 0], sizes = [8, 16], strides = [1, 1]} : vector<48x16xf32> to vector<8x16xf32>
    %281 = arith.mulf %279, %280 : vector<8x16xf32>
    %282 = arith.addf %262, %281 : vector<8x16xf32>
    %283 = tpu.concatenate %262, %279, %282, %247 in 1 : vector<8x16xf32>, vector<8x16xf32>, vector<8x16xf32>, vector<8x32xf32> -> vector<8x80xf32>
    %c32 = arith.constant 32 : index
    %c0_113 = arith.constant 0 : index
    %284 = vector.load %arg34[%c32, %c0_113] : memref<48x80xf32, #tpu.memory_space<vmem>>, vector<8x80xf32>
    tpu.vector_store %arg34[%c32, %c0_113], %283 {strides = array<i32>} : memref<48x80xf32, #tpu.memory_space<vmem>>, vector<8x80xf32>,
    %285 = vector.extract_strided_slice %248 {offsets = [0, 32], sizes = [8, 32], strides = [1, 1]} : vector<8x64xf32> to vector<8x32xf32>
    %cst_114 = arith.constant dense<0.000000e+00> : vector<8x32xf32>
    %286 = tpu.matmul %282, %32, %cst_114 {dimension_numbers = #tpu.dot_dimension_numbers<[1], [0], [0], [1], [0, 0, 1, 1], [], []>} : vector<8x16xf32>, vector<16x32xf32>, vector<8x32xf32> -> vector<8x32xf32>
    %287 = arith.addf %285, %286 : vector<8x32xf32>
    %288 = vector.extract_strided_slice %25 {offsets = [32, 0], sizes = [8, 32], strides = [1, 1]} : vector<48x32xf32> to vector<8x32xf32>
    %289 = arith.addf %287, %288 : vector<8x32xf32>
    %cst_115 = arith.constant 0.000000e+00 : f32
    %290 = vector.broadcast %cst_115 : f32 to vector<8x32xf32>
    %291 = arith.maximumf %289, %290 : vector<8x32xf32>
    %cst_116 = arith.constant dense<0.000000e+00> : vector<8x32xf32>
    %292 = tpu.matmul %291, %33, %cst_116 {dimension_numbers = #tpu.dot_dimension_numbers<[1], [0], [0], [1], [0, 0, 1, 1], [], []>} : vector<8x32xf32>, vector<32x32xf32>, vector<8x32xf32> -> vector<8x32xf32>
    %293 = vector.broadcast %34 : vector<1x32xf32> to vector<8x32xf32>
    %294 = arith.addf %292, %293 : vector<8x32xf32>
    %cst_117 = arith.constant 0.000000e+00 : f32
    %295 = vector.broadcast %cst_117 : f32 to vector<8x32xf32>
    %296 = arith.maximumf %294, %295 : vector<8x32xf32>
    %cst_118 = arith.constant dense<0.000000e+00> : vector<8x32xf32>
    %297 = tpu.matmul %296, %35, %cst_118 {dimension_numbers = #tpu.dot_dimension_numbers<[1], [0], [0], [1], [0, 0, 1, 1], [], []>} : vector<8x32xf32>, vector<32x32xf32>, vector<8x32xf32> -> vector<8x32xf32>
    %298 = vector.broadcast %36 : vector<1x32xf32> to vector<8x32xf32>
    %299 = arith.addf %297, %298 : vector<8x32xf32>
    %cst_119 = arith.constant dense<0.000000e+00> : vector<8x64xf32>
    %300 = tpu.matmul %299, %27, %cst_119 {dimension_numbers = #tpu.dot_dimension_numbers<[1], [0], [0], [1], [0, 0, 1, 1], [], []>} : vector<8x32xf32>, vector<32x64xf32>, vector<8x64xf32> -> vector<8x64xf32>
    %301 = vector.extract_strided_slice %19 {offsets = [40, 0], sizes = [8, 32], strides = [1, 1]} : vector<48x32xf32> to vector<8x32xf32>
    %302 = vector.extract_strided_slice %300 {offsets = [0, 0], sizes = [8, 32], strides = [1, 1]} : vector<8x64xf32> to vector<8x32xf32>
    %303 = arith.addf %301, %302 : vector<8x32xf32>
    %cst_120 = arith.constant 0.000000e+00 : f32
    %304 = vector.broadcast %cst_120 : f32 to vector<8x32xf32>
    %305 = arith.maximumf %303, %304 : vector<8x32xf32>
    %cst_121 = arith.constant dense<0.000000e+00> : vector<8x32xf32>
    %306 = tpu.matmul %305, %28, %cst_121 {dimension_numbers = #tpu.dot_dimension_numbers<[1], [0], [0], [1], [0, 0, 1, 1], [], []>} : vector<8x32xf32>, vector<32x32xf32>, vector<8x32xf32> -> vector<8x32xf32>
    %307 = vector.broadcast %29 : vector<1x32xf32> to vector<8x32xf32>
    %308 = arith.addf %306, %307 : vector<8x32xf32>
    %cst_122 = arith.constant 0.000000e+00 : f32
    %309 = vector.broadcast %cst_122 : f32 to vector<8x32xf32>
    %310 = arith.maximumf %308, %309 : vector<8x32xf32>
    %cst_123 = arith.constant dense<0.000000e+00> : vector<8x32xf32>
    %311 = tpu.matmul %310, %30, %cst_123 {dimension_numbers = #tpu.dot_dimension_numbers<[1], [0], [0], [1], [0, 0, 1, 1], [], []>} : vector<8x32xf32>, vector<32x32xf32>, vector<8x32xf32> -> vector<8x32xf32>
    %312 = vector.broadcast %31 : vector<1x32xf32> to vector<8x32xf32>
    %313 = arith.addf %311, %312 : vector<8x32xf32>
    %314 = vector.extract_strided_slice %313 {offsets = [0, 0], sizes = [8, 16], strides = [1, 1]} : vector<8x32xf32> to vector<8x16xf32>
    %315 = vector.extract_strided_slice %313 {offsets = [0, 16], sizes = [8, 16], strides = [1, 1]} : vector<8x32xf32> to vector<8x16xf32>
    %cst_124 = arith.constant 0.000000e+00 : f32
    %316 = vector.broadcast %cst_124 : f32 to vector<8x16xf32>
    %317 = arith.maximumf %315, %316 : vector<8x16xf32>
    %318 = vector.broadcast %cst_124 : f32 to vector<8x16xf32>
    %319 = arith.subf %315, %318 : vector<8x16xf32>
    %320 = arith.cmpf one, %319, %319 : vector<8x16xf32>
    %321 = vector.broadcast %cst_124 : f32 to vector<8x16xf32>
    %322 = arith.addf %315, %321 : vector<8x16xf32>
    %323 = math.absf %319 : vector<8x16xf32>
    %cst_125 = arith.constant 0.000000e+00 : f32
    %324 = vector.broadcast %cst_125 : f32 to vector<8x16xf32>
    %325 = arith.subf %324, %323 : vector<8x16xf32>
    %326 = math.exp %325 : vector<8x16xf32>
    %327 = math.log1p %326 : vector<8x16xf32>
    %328 = arith.addf %317, %327 : vector<8x16xf32>
    %329 = arith.select %320, %322, %328 : vector<8x16xi1>, vector<8x16xf32>
    %cst_126 = arith.constant 9.99999974E-6 : f32
    %330 = vector.broadcast %cst_126 : f32 to vector<8x16xf32>
    %331 = arith.addf %329, %330 : vector<8x16xf32>
    %332 = vector.extract_strided_slice %26 {offsets = [40, 0], sizes = [8, 16], strides = [1, 1]} : vector<48x16xf32> to vector<8x16xf32>
    %333 = arith.mulf %331, %332 : vector<8x16xf32>
    %334 = arith.addf %314, %333 : vector<8x16xf32>
    %335 = tpu.concatenate %314, %331, %334, %299 in 1 : vector<8x16xf32>, vector<8x16xf32>, vector<8x16xf32>, vector<8x32xf32> -> vector<8x80xf32>
    %c40 = arith.constant 40 : index
    %c0_127 = arith.constant 0 : index
    %336 = vector.load %arg34[%c40, %c0_127] : memref<48x80xf32, #tpu.memory_space<vmem>>, vector<8x80xf32>
    tpu.vector_store %arg34[%c40, %c0_127], %335 {strides = array<i32>} : memref<48x80xf32, #tpu.memory_space<vmem>>, vector<8x80xf32>,
    %c0_128 = arith.constant 0 : index
    %c48 = arith.constant 48 : index
    %337 = vector.load %arg34[%c0_128, %c48] : memref<48x80xf32, #tpu.memory_space<vmem>>, vector<40x32xf32>
    %c0_129 = arith.constant 0 : index
    %c0_130 = arith.constant 0 : index
    %338 = vector.load %arg15[%c0_129, %c0_130] : memref<32x32xf32, #tpu.memory_space<vmem>>, vector<32x32xf32>
    %cst_131 = arith.constant dense<0.000000e+00> : vector<40x32xf32>
    %339 = tpu.matmul %337, %338, %cst_131 {dimension_numbers = #tpu.dot_dimension_numbers<[1], [0], [0], [1], [0, 0, 1, 1], [], []>} : vector<40x32xf32>, vector<32x32xf32>, vector<40x32xf32> -> vector<40x32xf32>
    %c0_132 = arith.constant 0 : index
    %c0_133 = arith.constant 0 : index
    %340 = vector.load %arg16[%c0_132, %c0_133] : memref<1x32xf32, #tpu.memory_space<vmem>>, vector<1x32xf32>
    %341 = vector.broadcast %340 : vector<1x32xf32> to vector<40x32xf32>
    %342 = arith.addf %339, %341 : vector<40x32xf32>
    %cst_134 = arith.constant 0.000000e+00 : f32
    %343 = vector.broadcast %cst_134 : f32 to vector<40x32xf32>
    %344 = arith.maximumf %342, %343 : vector<40x32xf32>
    %c0_135 = arith.constant 0 : index
    %c0_136 = arith.constant 0 : index
    %345 = vector.load %arg17[%c0_135, %c0_136] : memref<32x32xf32, #tpu.memory_space<vmem>>, vector<32x32xf32>
    %cst_137 = arith.constant dense<0.000000e+00> : vector<40x32xf32>
    %346 = tpu.matmul %344, %345, %cst_137 {dimension_numbers = #tpu.dot_dimension_numbers<[1], [0], [0], [1], [0, 0, 1, 1], [], []>} : vector<40x32xf32>, vector<32x32xf32>, vector<40x32xf32> -> vector<40x32xf32>
    %c0_138 = arith.constant 0 : index
    %c0_139 = arith.constant 0 : index
    %347 = vector.load %arg18[%c0_138, %c0_139] : memref<1x32xf32, #tpu.memory_space<vmem>>, vector<1x32xf32>
    %348 = vector.broadcast %347 : vector<1x32xf32> to vector<40x32xf32>
    %349 = arith.addf %346, %348 : vector<40x32xf32>
    %cst_140 = arith.constant 0.000000e+00 : f32
    %350 = vector.broadcast %cst_140 : f32 to vector<40x32xf32>
    %351 = arith.maximumf %349, %350 : vector<40x32xf32>
    %c0_141 = arith.constant 0 : index
    %c0_142 = arith.constant 0 : index
    %352 = vector.load %arg19[%c0_141, %c0_142] : memref<32x32xf32, #tpu.memory_space<vmem>>, vector<32x32xf32>
    %cst_143 = arith.constant dense<0.000000e+00> : vector<40x32xf32>
    %353 = tpu.matmul %351, %352, %cst_143 {dimension_numbers = #tpu.dot_dimension_numbers<[1], [0], [0], [1], [0, 0, 1, 1], [], []>} : vector<40x32xf32>, vector<32x32xf32>, vector<40x32xf32> -> vector<40x32xf32>
    %c0_144 = arith.constant 0 : index
    %c0_145 = arith.constant 0 : index
    %354 = vector.load %arg20[%c0_144, %c0_145] : memref<1x32xf32, #tpu.memory_space<vmem>>, vector<1x32xf32>
    %355 = vector.broadcast %354 : vector<1x32xf32> to vector<40x32xf32>
    %356 = arith.addf %353, %355 : vector<40x32xf32>
    %c0_146 = arith.constant 0 : index
    %c0_147 = arith.constant 0 : index
    %357 = vector.load %arg35[%c0_146, %c0_147] : memref<40x32xf32, #tpu.memory_space<vmem>>, vector<40x32xf32>
    tpu.vector_store %arg35[%c0_146, %c0_147], %356 {strides = array<i32>} : memref<40x32xf32, #tpu.memory_space<vmem>>, vector<40x32xf32>,
    %c0_148 = arith.constant 0 : index
    %c32_149 = arith.constant 32 : index
    %358 = vector.load %arg34[%c0_148, %c32_149] : memref<48x80xf32, #tpu.memory_space<vmem>>, vector<48x48xf32>
    %c0_150 = arith.constant 0 : index
    %c0_151 = arith.constant 0 : index
    %359 = vector.load %arg28[%c0_150, %c0_151] : memref<48x32xf32, #tpu.memory_space<vmem>>, vector<48x32xf32>
    %cst_152 = arith.constant dense<0.000000e+00> : vector<48x32xf32>
    %360 = tpu.matmul %358, %359, %cst_152 {dimension_numbers = #tpu.dot_dimension_numbers<[1], [0], [0], [1], [0, 0, 1, 1], [], []>} : vector<48x48xf32>, vector<48x32xf32>, vector<48x32xf32> -> vector<48x32xf32>
    %c0_153 = arith.constant 0 : index
    %c0_154 = arith.constant 0 : index
    %361 = vector.load %arg29[%c0_153, %c0_154] : memref<1x32xf32, #tpu.memory_space<vmem>>, vector<1x32xf32>
    %362 = vector.broadcast %361 : vector<1x32xf32> to vector<48x32xf32>
    %363 = arith.addf %360, %362 : vector<48x32xf32>
    %cst_155 = arith.constant 0.000000e+00 : f32
    %364 = vector.broadcast %cst_155 : f32 to vector<48x32xf32>
    %365 = arith.maximumf %363, %364 : vector<48x32xf32>
    %c0_156 = arith.constant 0 : index
    %c0_157 = arith.constant 0 : index
    %366 = vector.load %arg30[%c0_156, %c0_157] : memref<32x32xf32, #tpu.memory_space<vmem>>, vector<32x32xf32>
    %cst_158 = arith.constant dense<0.000000e+00> : vector<48x32xf32>
    %367 = tpu.matmul %365, %366, %cst_158 {dimension_numbers = #tpu.dot_dimension_numbers<[1], [0], [0], [1], [0, 0, 1, 1], [], []>} : vector<48x32xf32>, vector<32x32xf32>, vector<48x32xf32> -> vector<48x32xf32>
    %c0_159 = arith.constant 0 : index
    %c0_160 = arith.constant 0 : index
    %368 = vector.load %arg31[%c0_159, %c0_160] : memref<1x32xf32, #tpu.memory_space<vmem>>, vector<1x32xf32>
    %369 = vector.broadcast %368 : vector<1x32xf32> to vector<48x32xf32>
    %370 = arith.addf %367, %369 : vector<48x32xf32>
    %cst_161 = arith.constant 0.000000e+00 : f32
    %371 = vector.broadcast %cst_161 : f32 to vector<48x32xf32>
    %372 = arith.maximumf %370, %371 : vector<48x32xf32>
    %c0_162 = arith.constant 0 : index
    %c0_163 = arith.constant 0 : index
    %373 = vector.load %arg32[%c0_162, %c0_163] : memref<32x16xf32, #tpu.memory_space<vmem>>, vector<32x16xf32>
    %cst_164 = arith.constant dense<0.000000e+00> : vector<48x16xf32>
    %374 = tpu.matmul %372, %373, %cst_164 {dimension_numbers = #tpu.dot_dimension_numbers<[1], [0], [0], [1], [0, 0, 1, 1], [], []>} : vector<48x32xf32>, vector<32x16xf32>, vector<48x16xf32> -> vector<48x16xf32>
    %c0_165 = arith.constant 0 : index
    %c0_166 = arith.constant 0 : index
    %375 = vector.load %arg33[%c0_165, %c0_166] : memref<1x16xf32, #tpu.memory_space<vmem>>, vector<1x16xf32>
    %376 = vector.broadcast %375 : vector<1x16xf32> to vector<48x16xf32>
    %377 = arith.addf %374, %376 : vector<48x16xf32>
    %c0_167 = arith.constant 0 : index
    %c0_168 = arith.constant 0 : index
    %378 = vector.load %arg36[%c0_167, %c0_168] : memref<48x16xf32, #tpu.memory_space<vmem>>, vector<48x16xf32>
    tpu.vector_store %arg36[%c0_167, %c0_168], %377 {strides = array<i32>} : memref<48x16xf32, #tpu.memory_space<vmem>>, vector<48x16xf32>,
    return
  }
}

</mosaic_0001>

<llo_original>
// kernel: rssm_world_model_forward.1
$region0: #{rssm_world_model_forward.1}
  #allocation0 [shape = 'u32[]', space=smem, size = 0x4, offset = 0x4, fixed_abs, tag = 'smem constant byte address 0x4 - core index']
  #allocation1 [shape = 'u32[144,128]{1,0:T(1,128)}', space=vmem, size = 0x12000, scoped, tag = 'internal scratch']
  %s0 = inlined_call_operand.smem [shape: u32[37], index: -1, kind: input, shape index: {}]
  %s1 = sld [smem:[%s0]]
  %s2 = scalar_lea.smem %s0, 1
  %s3 = sld [smem:[%s2]]
  %s4 = scalar_lea.smem %s0, 2
  %s5 = sld [smem:[%s4]]
  %s6 = scalar_lea.smem %s0, 3
  %s7 = sld [smem:[%s6]]
  %s8 = scalar_lea.smem %s0, 4
  %s9 = sld [smem:[%s8]]
  %s10 = scalar_lea.smem %s0, 5
  %s11 = sld [smem:[%s10]]
  %s12 = scalar_lea.smem %s0, 6
  %s13 = sld [smem:[%s12]]
  %s14 = scalar_lea.smem %s0, 7
  %s15 = sld [smem:[%s14]]
  %s16 = scalar_lea.smem %s0, 8
  %s17 = sld [smem:[%s16]]
  %s18 = scalar_lea.smem %s0, 9
  %s19 = sld [smem:[%s18]]
  %s20 = scalar_lea.smem %s0, 10
  %s21 = sld [smem:[%s20]]
  %s22 = scalar_lea.smem %s0, 11
  %s23 = sld [smem:[%s22]]
  %s24 = scalar_lea.smem %s0, 12
  %s25 = sld [smem:[%s24]]
  %s26 = scalar_lea.smem %s0, 13
  %s27 = sld [smem:[%s26]]
  %s28 = scalar_lea.smem %s0, 14
  %s29 = sld [smem:[%s28]]
  %s30 = scalar_lea.smem %s0, 15
  %s31 = sld [smem:[%s30]]
  %s32 = scalar_lea.smem %s0, 16
  %s33 = sld [smem:[%s32]]
  %s34 = scalar_lea.smem %s0, 17
  %s35 = sld [smem:[%s34]]
  %s36 = scalar_lea.smem %s0, 18
  %s37 = sld [smem:[%s36]]
  %s38 = scalar_lea.smem %s0, 19
  %s39 = sld [smem:[%s38]]
  %s40 = scalar_lea.smem %s0, 20
  %s41 = sld [smem:[%s40]]
  %s42 = scalar_lea.smem %s0, 21
  %s43 = sld [smem:[%s42]]
  %s44 = scalar_lea.smem %s0, 22
  %s45 = sld [smem:[%s44]]
  %s46 = scalar_lea.smem %s0, 23
  %s47 = sld [smem:[%s46]]
  %s48 = scalar_lea.smem %s0, 24
  %s49 = sld [smem:[%s48]]
  %s50 = scalar_lea.smem %s0, 25
  %s51 = sld [smem:[%s50]]
  %s52 = scalar_lea.smem %s0, 26
  %s53 = sld [smem:[%s52]]
  %s54 = scalar_lea.smem %s0, 27
  %s55 = sld [smem:[%s54]]
  %s56 = scalar_lea.smem %s0, 28
  %s57 = sld [smem:[%s56]]
  %s58 = scalar_lea.smem %s0, 29
  %s59 = sld [smem:[%s58]]
  %s60 = scalar_lea.smem %s0, 30
  %s61 = sld [smem:[%s60]]
  %s62 = scalar_lea.smem %s0, 31
  %s63 = sld [smem:[%s62]]
  %s64 = scalar_lea.smem %s0, 32
  %s65 = sld [smem:[%s64]]
  %s66 = scalar_lea.smem %s0, 33
  %s67 = sld [smem:[%s66]]
  %s68 = scalar_lea.smem %s0, 34
  %s69 = sld [smem:[%s68]]
  %s70 = scalar_lea.smem %s0, 35
  %s71 = sld [smem:[%s70]]
  %s72 = scalar_lea.smem %s0, 36
  %s73 = sld [smem:[%s72]]
  %74 = xla_tuple %s69, %s71, %s73
  %s75 = sld [smem:[#allocation0]]
  $region162: #{rssm_world_model_forward.1} parent=0
    _
  %s77 = ssub.s32 1, %s75
  %s78 = scalar_select 0, %s77, %s75
  $region1: #{rssm_world_model_forward.1} parent=0
    #allocation2 [shape = 'u8[24576]{0}', space=vmem, size = 0x6000, scoped, tag = 'output window, operand 2, single buffered']
    #allocation3 [shape = 's32[1]{0}', space=sflag, size = 0x4, scoped, tag = 'scoped memory for rssm_world_model_forward.1']
    %79 = vsyncpa [#allocation3], 0
    // Predicated region
    $region2: #{rssm_world_model_forward.1} parent=1 // pred_check
      _
    $region3: #{rssm_world_model_forward.1} parent=1 // pred_check_branch
      %81 = sbr.rel (0) target = $region5
    $region4: #{rssm_world_model_forward.1} parent=1 // pred_region
      _
    $region5: #{rssm_world_model_forward.1} parent=1 // pred_fallthru
      _
    // Predicated region
    $region6: #{rssm_world_model_forward.1} parent=1 // pred_check
      _
    $region7: #{rssm_world_model_forward.1} parent=1 // pred_check_branch
      %83 = sbr.rel (0) target = $region9
    $region8: #{rssm_world_model_forward.1} parent=1 // pred_region
      _
    $region9: #{rssm_world_model_forward.1} parent=1 // pred_fallthru
      _
    // Predicated region
    $region10: #{rssm_world_model_forward.1} parent=1 // pred_check
      _
    $region11: #{rssm_world_model_forward.1} parent=1 // pred_check_branch
      %85 = sbr.rel (0) target = $region13
    $region12: #{rssm_world_model_forward.1} parent=1 // pred_region
      _
    $region13: #{rssm_world_model_forward.1} parent=1 // pred_fallthru
      _
    // Predicated region
    $region14: #{rssm_world_model_forward.1} parent=1 // pred_check
      _
    $region15: #{rssm_world_model_forward.1} parent=1 // pred_check_branch
      %87 = sbr.rel (0) target = $region17
    $region16: #{rssm_world_model_forward.1} parent=1 // pred_region
      _
    $region17: #{rssm_world_model_forward.1} parent=1 // pred_fallthru
      _
    // Predicated region
    $region18: #{rssm_world_model_forward.1} parent=1 // pred_check
      _
    $region19: #{rssm_world_model_forward.1} parent=1 // pred_check_branch
      %89 = sbr.rel (0) target = $region21
    $region20: #{rssm_world_model_forward.1} parent=1 // pred_region
      _
    $region21: #{rssm_world_model_forward.1} parent=1 // pred_fallthru
      _
    // Predicated region
    $region22: #{rssm_world_model_forward.1} parent=1 // pred_check
      _
    $region23: #{rssm_world_model_forward.1} parent=1 // pred_check_branch
      %91 = sbr.rel (0) target = $region25
    $region24: #{rssm_world_model_forward.1} parent=1 // pred_region
      _
    $region25: #{rssm_world_model_forward.1} parent=1 // pred_fallthru
      _
    // Predicated region
    $region26: #{rssm_world_model_forward.1} parent=1 // pred_check
      _
    $region27: #{rssm_world_model_forward.1} parent=1 // pred_check_branch
      %93 = sbr.rel (0) target = $region29
    $region28: #{rssm_world_model_forward.1} parent=1 // pred_region
      _
    $region29: #{rssm_world_model_forward.1} parent=1 // pred_fallthru
      _
    // Predicated region
    $region30: #{rssm_world_model_forward.1} parent=1 // pred_check
      _
    $region31: #{rssm_world_model_forward.1} parent=1 // pred_check_branch
      %95 = sbr.rel (0) target = $region33
    $region32: #{rssm_world_model_forward.1} parent=1 // pred_region
      _
    $region33: #{rssm_world_model_forward.1} parent=1 // pred_fallthru
      _
    // Predicated region
    $region34: #{rssm_world_model_forward.1} parent=1 // pred_check
      _
    $region35: #{rssm_world_model_forward.1} parent=1 // pred_check_branch
      %97 = sbr.rel (0) target = $region37
    $region36: #{rssm_world_model_forward.1} parent=1 // pred_region
      _
    $region37: #{rssm_world_model_forward.1} parent=1 // pred_fallthru
      _
    // Predicated region
    $region38: #{rssm_world_model_forward.1} parent=1 // pred_check
      _
    $region39: #{rssm_world_model_forward.1} parent=1 // pred_check_branch
      %99 = sbr.rel (0) target = $region41
    $region40: #{rssm_world_model_forward.1} parent=1 // pred_region
      _
    $region41: #{rssm_world_model_forward.1} parent=1 // pred_fallthru
      _
    // Predicated region
    $region42: #{rssm_world_model_forward.1} parent=1 // pred_check
      _
    $region43: #{rssm_world_model_forward.1} parent=1 // pred_check_branch
      %101 = sbr.rel (0) target = $region45
    $region44: #{rssm_world_model_forward.1} parent=1 // pred_region
      _
    $region45: #{rssm_world_model_forward.1} parent=1 // pred_fallthru
      _
    // Predicated region
    $region46: #{rssm_world_model_forward.1} parent=1 // pred_check
      _
    $region47: #{rssm_world_model_forward.1} parent=1 // pred_check_branch
      %103 = sbr.rel (0) target = $region49
    $region48: #{rssm_world_model_forward.1} parent=1 // pred_region
      _
    $region49: #{rssm_world_model_forward.1} parent=1 // pred_fallthru
      _
    // Predicated region
    $region50: #{rssm_world_model_forward.1} parent=1 // pred_check
      _
    $region51: #{rssm_world_model_forward.1} parent=1 // pred_check_branch
      %105 = sbr.rel (0) target = $region53
    $region52: #{rssm_world_model_forward.1} parent=1 // pred_region
      _
    $region53: #{rssm_world_model_forward.1} parent=1 // pred_fallthru
      _
    // Predicated region
    $region54: #{rssm_world_model_forward.1} parent=1 // pred_check
      _
    $region55: #{rssm_world_model_forward.1} parent=1 // pred_check_branch
      %107 = sbr.rel (0) target = $region57
    $region56: #{rssm_world_model_forward.1} parent=1 // pred_region
      _
    $region57: #{rssm_world_model_forward.1} parent=1 // pred_fallthru
      _
    // Predicated region
    $region58: #{rssm_world_model_forward.1} parent=1 // pred_check
      _
    $region59: #{rssm_world_model_forward.1} parent=1 // pred_check_branch
      %109 = sbr.rel (0) target = $region61
    $region60: #{rssm_world_model_forward.1} parent=1 // pred_region
      _
    $region61: #{rssm_world_model_forward.1} parent=1 // pred_fallthru
      _
    // Predicated region
    $region62: #{rssm_world_model_forward.1} parent=1 // pred_check
      _
    $region63: #{rssm_world_model_forward.1} parent=1 // pred_check_branch
      %111 = sbr.rel (0) target = $region65
    $region64: #{rssm_world_model_forward.1} parent=1 // pred_region
      _
    $region65: #{rssm_world_model_forward.1} parent=1 // pred_fallthru
      _
    // Predicated region
    $region66: #{rssm_world_model_forward.1} parent=1 // pred_check
      _
    $region67: #{rssm_world_model_forward.1} parent=1 // pred_check_branch
      %113 = sbr.rel (0) target = $region69
    $region68: #{rssm_world_model_forward.1} parent=1 // pred_region
      _
    $region69: #{rssm_world_model_forward.1} parent=1 // pred_fallthru
      _
    // Predicated region
    $region70: #{rssm_world_model_forward.1} parent=1 // pred_check
      _
    $region71: #{rssm_world_model_forward.1} parent=1 // pred_check_branch
      %115 = sbr.rel (0) target = $region73
    $region72: #{rssm_world_model_forward.1} parent=1 // pred_region
      _
    $region73: #{rssm_world_model_forward.1} parent=1 // pred_fallthru
      _
    // Predicated region
    $region74: #{rssm_world_model_forward.1} parent=1 // pred_check
      _
    $region75: #{rssm_world_model_forward.1} parent=1 // pred_check_branch
      %117 = sbr.rel (0) target = $region77
    $region76: #{rssm_world_model_forward.1} parent=1 // pred_region
      _
    $region77: #{rssm_world_model_forward.1} parent=1 // pred_fallthru
      _
    // Predicated region
    $region78: #{rssm_world_model_forward.1} parent=1 // pred_check
      _
    $region79: #{rssm_world_model_forward.1} parent=1 // pred_check_branch
      %119 = sbr.rel (0) target = $region81
    $region80: #{rssm_world_model_forward.1} parent=1 // pred_region
      _
    $region81: #{rssm_world_model_forward.1} parent=1 // pred_fallthru
      _
    // Predicated region
    $region82: #{rssm_world_model_forward.1} parent=1 // pred_check
      _
    $region83: #{rssm_world_model_forward.1} parent=1 // pred_check_branch
      %121 = sbr.rel (0) target = $region85
    $region84: #{rssm_world_model_forward.1} parent=1 // pred_region
      _
    $region85: #{rssm_world_model_forward.1} parent=1 // pred_fallthru
      _
    // Predicated region
    $region86: #{rssm_world_model_forward.1} parent=1 // pred_check
      _
    $region87: #{rssm_world_model_forward.1} parent=1 // pred_check_branch
      %123 = sbr.rel (0) target = $region89
    $region88: #{rssm_world_model_forward.1} parent=1 // pred_region
      _
    $region89: #{rssm_world_model_forward.1} parent=1 // pred_fallthru
      _
    // Predicated region
    $region90: #{rssm_world_model_forward.1} parent=1 // pred_check
      _
    $region91: #{rssm_world_model_forward.1} parent=1 // pred_check_branch
      %125 = sbr.rel (0) target = $region93
    $region92: #{rssm_world_model_forward.1} parent=1 // pred_region
      _
    $region93: #{rssm_world_model_forward.1} parent=1 // pred_fallthru
      _
    // Predicated region
    $region94: #{rssm_world_model_forward.1} parent=1 // pred_check
      _
    $region95: #{rssm_world_model_forward.1} parent=1 // pred_check_branch
      %127 = sbr.rel (0) target = $region97
    $region96: #{rssm_world_model_forward.1} parent=1 // pred_region
      _
    $region97: #{rssm_world_model_forward.1} parent=1 // pred_fallthru
      _
    // Predicated region
    $region98: #{rssm_world_model_forward.1} parent=1 // pred_check
      _
    $region99: #{rssm_world_model_forward.1} parent=1 // pred_check_branch
      %129 = sbr.rel (0) target = $region101
    $region100: #{rssm_world_model_forward.1} parent=1 // pred_region
      _
    $region101: #{rssm_world_model_forward.1} parent=1 // pred_fallthru
      _
    // Predicated region
    $region102: #{rssm_world_model_forward.1} parent=1 // pred_check
      _
    $region103: #{rssm_world_model_forward.1} parent=1 // pred_check_branch
      %131 = sbr.rel (0) target = $region105
    $region104: #{rssm_world_model_forward.1} parent=1 // pred_region
      _
    $region105: #{rssm_world_model_forward.1} parent=1 // pred_fallthru
      _
    // Predicated region
    $region106: #{rssm_world_model_forward.1} parent=1 // pred_check
      _
    $region107: #{rssm_world_model_forward.1} parent=1 // pred_check_branch
      %133 = sbr.rel (0) target = $region109
    $region108: #{rssm_world_model_forward.1} parent=1 // pred_region
      _
    $region109: #{rssm_world_model_forward.1} parent=1 // pred_fallthru
      _
    // Predicated region
    $region110: #{rssm_world_model_forward.1} parent=1 // pred_check
      _
    $region111: #{rssm_world_model_forward.1} parent=1 // pred_check_branch
      %135 = sbr.rel (0) target = $region113
    $region112: #{rssm_world_model_forward.1} parent=1 // pred_region
      _
    $region113: #{rssm_world_model_forward.1} parent=1 // pred_fallthru
      _
    // Predicated region
    $region114: #{rssm_world_model_forward.1} parent=1 // pred_check
      _
    $region115: #{rssm_world_model_forward.1} parent=1 // pred_check_branch
      %137 = sbr.rel (0) target = $region117
    $region116: #{rssm_world_model_forward.1} parent=1 // pred_region
      _
    $region117: #{rssm_world_model_forward.1} parent=1 // pred_fallthru
      _
    // Predicated region
    $region118: #{rssm_world_model_forward.1} parent=1 // pred_check
      _
    $region119: #{rssm_world_model_forward.1} parent=1 // pred_check_branch
      %139 = sbr.rel (0) target = $region121
    $region120: #{rssm_world_model_forward.1} parent=1 // pred_region
      _
    $region121: #{rssm_world_model_forward.1} parent=1 // pred_fallthru
      _
    // Predicated region
    $region122: #{rssm_world_model_forward.1} parent=1 // pred_check
      _
    $region123: #{rssm_world_model_forward.1} parent=1 // pred_check_branch
      %141 = sbr.rel (0) target = $region125
    $region124: #{rssm_world_model_forward.1} parent=1 // pred_region
      _
    $region125: #{rssm_world_model_forward.1} parent=1 // pred_fallthru
      _
    // Predicated region
    $region126: #{rssm_world_model_forward.1} parent=1 // pred_check
      _
    $region127: #{rssm_world_model_forward.1} parent=1 // pred_check_branch
      %143 = sbr.rel (0) target = $region129
    $region128: #{rssm_world_model_forward.1} parent=1 // pred_region
      _
    $region129: #{rssm_world_model_forward.1} parent=1 // pred_fallthru
      _
    // Predicated region
    $region130: #{rssm_world_model_forward.1} parent=1 // pred_check
      _
    $region131: #{rssm_world_model_forward.1} parent=1 // pred_check_branch
      %145 = sbr.rel (0) target = $region133
    $region132: #{rssm_world_model_forward.1} parent=1 // pred_region
      _
    $region133: #{rssm_world_model_forward.1} parent=1 // pred_fallthru
      _
    // Predicated region
    $region134: #{rssm_world_model_forward.1} parent=1 // pred_check
      _
    $region135: #{rssm_world_model_forward.1} parent=1 // pred_check_branch
      %147 = sbr.rel (0) target = $region137
    $region136: #{rssm_world_model_forward.1} parent=1 // pred_region
      _
    $region137: #{rssm_world_model_forward.1} parent=1 // pred_fallthru
      _
    %v148 = vld [vmem:[%s1] sm:$0xff]
    %v149 = vld [vmem:[%s1 + $0x8] sm:$0xff]
    %v150 = vld [vmem:[%s1 + $0x10] sm:$0xff]
    %v151 = vld [vmem:[%s1 + $0x18] sm:$0xff]
    %v152 = vld [vmem:[%s1 + $0x20] sm:$0xff]
    %v153 = vld [vmem:[%s1 + $0x28] sm:$0xff]
    %v154 = vld [vmem:[%s9] sm:$0xff]
    %v155 = vld [vmem:[%s9 + $0x8] sm:$0xff]
    %v156 = vld [vmem:[%s11] sm:$0x1]
    %v158 = vlaneseq
    %v159 = vshrl.u32 %v158, 7
    %v160 = vsub.s32 0, %v159
    %v161 = vrot.slane %v156, %v160
    %vm163 = vcmask 130048
    %v165 = vsel %vm163, %v148, 0
    %v168 = vsel %vm163, %v149, 0
    %v171 = vsel %vm163, %v150, 0
    %v174 = vsel %vm163, %v151, 0
    %v177 = vsel %vm163, %v152, 0
    %v180 = vsel %vm163, %v153, 0
    %182 = vmatprep.subr.mxu0 0.0
    %183 = vmatpush1.msra.mxu0 %v154
    %184 = vmatprep.subr.mxu0 0.0
    %185 = vmatpush1.msra.mxu0 %v155
    %186 = vmatprep.subr.mxu0 0.0
    %187 = vmatpush1.msra.mxu0 0.0
    %188 = vmatprep.subr.mxu0 0.0
    %189 = vmatpush1.msra.mxu0 0.0
    %190 = vmatprep.subr.mxu0 0.0
    %191 = vmatpush1.msra.mxu0 0.0
    %192 = vmatprep.subr.mxu0 0.0
    %193 = vmatpush1.msra.mxu0 0.0
    %194 = vmatprep.subr.mxu0 0.0
    %195 = vmatpush1.msra.mxu0 0.0
    %196 = vmatprep.subr.mxu0 0.0
    %197 = vmatpush1.msra.mxu0 0.0
    %198 = vmatprep.subr.mxu0 0.0
    %199 = vmatpush1.msra.mxu0 0.0
    %200 = vmatprep.subr.mxu0 0.0
    %201 = vmatpush1.msra.mxu0 0.0
    %202 = vmatprep.subr.mxu0 0.0
    %203 = vmatpush1.msra.mxu0 0.0
    %204 = vmatprep.subr.mxu0 0.0
    %205 = vmatpush1.msra.mxu0 0.0
    %206 = vmatprep.subr.mxu0 0.0
    %207 = vmatpush1.msra.mxu0 0.0
    %208 = vmatprep.subr.mxu0 0.0
    %209 = vmatpush1.msra.mxu0 0.0
    %210 = vmatprep.subr.mxu0 0.0
    %211 = vmatpush1.msra.mxu0 0.0
    %212 = vmatprep.subr.mxu0 0.0
    %213 = vmatpush1.msra.mxu0 0.0
    %214 = vmatprep.subr.mxu0 0.0
    %215 = vmatpush1.msra.mxu0 0.0
    %216 = vmatprep.subr.mxu0 0.0
    %217 = vmatpush1.msra.mxu0 0.0
    %218 = vmatprep.subr.mxu0 0.0
    %219 = vmatpush1.msra.mxu0 0.0
    %220 = vmatprep.subr.mxu0 0.0
    %221 = vmatpush1.msra.mxu0 0.0
    %222 = vmatprep.subr.mxu0 0.0
    %223 = vmatpush1.msra.mxu0 0.0
    %224 = vmatprep.subr.mxu0 0.0
    %225 = vmatpush1.msra.mxu0 0.0
    %226 = vmatprep.subr.mxu0 0.0
    %227 = vmatpush1.msra.mxu0 0.0
    %228 = vmatprep.subr.mxu0 0.0
    %229 = vmatpush1.msra.mxu0 0.0
    %230 = vmatprep.subr.mxu0 0.0
    %231 = vmatpush1.msra.mxu0 0.0
    %232 = vmatprep.subr.mxu0 0.0
    %233 = vmatpush1.msra.mxu0 0.0
    %234 = vmatprep.subr.mxu0 0.0
    %235 = vmatpush1.msra.mxu0 0.0
    %236 = vmatprep.subr.mxu0 0.0
    %237 = vmatpush1.msra.mxu0 0.0
    %238 = vmatprep.subr.mxu0 0.0
    %239 = vmatpush1.msra.mxu0 0.0
    %240 = vmatprep.subr.mxu0 0.0
    %241 = vmatpush1.msra.mxu0 0.0
    %242 = vmatprep.subr.mxu0 0.0
    %243 = vmatpush1.msra.mxu0 0.0
    %244 = vmatprep.subr.mxu0 0.0
    %245 = vmatpush1.msra.mxu0 0.0
    %246 = vmatprep.mubr.f32.mxu0 0.0
    %247 = vmatmul.mubr.f32.gmra.mrb[0].mxu0 %v165
    %v248 = vpop.f32.mrb[0].mxu0
    %v249 = vadd.f32 %v161, %v248
    %v250 = vpop.f32.mrb[0].mxu0
    %251 = vmatprep.mubr.f32.mxu0 0.0
    %252 = vmatmul.mubr.f32.gmra.mrb[0].mxu0 %v168
    %v253 = vpop.f32.mrb[0].mxu0
    %v254 = vadd.f32 %v161, %v253
    %v255 = vpop.f32.mrb[0].mxu0
    %256 = vmatprep.mubr.f32.mxu0 0.0
    %257 = vmatmul.mubr.f32.gmra.mrb[0].mxu0 %v171
    %v258 = vpop.f32.mrb[0].mxu0
    %v259 = vadd.f32 %v161, %v258
    %v260 = vpop.f32.mrb[0].mxu0
    %261 = vmatprep.mubr.f32.mxu0 0.0
    %262 = vmatmul.mubr.f32.gmra.mrb[0].mxu0 %v174
    %v263 = vpop.f32.mrb[0].mxu0
    %v264 = vadd.f32 %v161, %v263
    %v265 = vpop.f32.mrb[0].mxu0
    %266 = vmatprep.mubr.f32.mxu0 0.0
    %267 = vmatmul.mubr.f32.gmra.mrb[0].mxu0 %v177
    %v268 = vpop.f32.mrb[0].mxu0
    %v269 = vadd.f32 %v161, %v268
    %v270 = vpop.f32.mrb[0].mxu0
    %271 = vmatprep.mubr.f32.mxu0 0.0
    %272 = vmatmul.mubr.f32.gmra.mrb[0].mxu0 %v180
    %v273 = vpop.f32.mrb[0].mxu0
    %v274 = vadd.f32 %v161, %v273
    %v275 = vpop.f32.mrb[0].mxu0
    %276 = vdwg.mxu0
    %v277 = vmax.f32 %v249, 0.0
    %v278 = vmax.f32 %v254, 0.0
    %v279 = vmax.f32 %v259, 0.0
    %v280 = vmax.f32 %v264, 0.0
    %v281 = vmax.f32 %v269, 0.0
    %v282 = vmax.f32 %v274, 0.0
    %v283 = vld [vmem:[%s13] sm:$0xff]
    %v284 = vld [vmem:[%s13 + $0x8] sm:$0xff]
    %v285 = vld [vmem:[%s13 + $0x10] sm:$0xff]
    %v286 = vld [vmem:[%s13 + $0x18] sm:$0xff]
    %v287 = vld [vmem:[%s15] sm:$0x1]
    %v289 = vlaneseq
    %v290 = vshrl.u32 %v289, 7
    %v291 = vsub.s32 0, %v290
    %v292 = vrot.slane %v287, %v291
    %vm294 = vcmask 261120
    %v296 = vsel %vm294, %v277, 0
    %v299 = vsel %vm294, %v278, 0
    %v302 = vsel %vm294, %v279, 0
    %v305 = vsel %vm294, %v280, 0
    %v308 = vsel %vm294, %v281, 0
    %v311 = vsel %vm294, %v282, 0
    %313 = vmatprep.subr.mxu0 0.0
    %314 = vmatpush1.msra.mxu0 %v283
    %315 = vmatprep.subr.mxu0 0.0
    %316 = vmatpush1.msra.mxu0 %v284
    %317 = vmatprep.subr.mxu0 0.0
    %318 = vmatpush1.msra.mxu0 %v285
    %319 = vmatprep.subr.mxu0 0.0
    %320 = vmatpush1.msra.mxu0 %v286
    %321 = vmatprep.subr.mxu0 0.0
    %322 = vmatpush1.msra.mxu0 0.0
    %323 = vmatprep.subr.mxu0 0.0
    %324 = vmatpush1.msra.mxu0 0.0
    %325 = vmatprep.subr.mxu0 0.0
    %326 = vmatpush1.msra.mxu0 0.0
    %327 = vmatprep.subr.mxu0 0.0
    %328 = vmatpush1.msra.mxu0 0.0
    %329 = vmatprep.subr.mxu0 0.0
    %330 = vmatpush1.msra.mxu0 0.0
    %331 = vmatprep.subr.mxu0 0.0
    %332 = vmatpush1.msra.mxu0 0.0
    %333 = vmatprep.subr.mxu0 0.0
    %334 = vmatpush1.msra.mxu0 0.0
    %335 = vmatprep.subr.mxu0 0.0
    %336 = vmatpush1.msra.mxu0 0.0
    %337 = vmatprep.subr.mxu0 0.0
    %338 = vmatpush1.msra.mxu0 0.0
    %339 = vmatprep.subr.mxu0 0.0
    %340 = vmatpush1.msra.mxu0 0.0
    %341 = vmatprep.subr.mxu0 0.0
    %342 = vmatpush1.msra.mxu0 0.0
    %343 = vmatprep.subr.mxu0 0.0
    %344 = vmatpush1.msra.mxu0 0.0
    %345 = vmatprep.subr.mxu0 0.0
    %346 = vmatpush1.msra.mxu0 0.0
    %347 = vmatprep.subr.mxu0 0.0
    %348 = vmatpush1.msra.mxu0 0.0
    %349 = vmatprep.subr.mxu0 0.0
    %350 = vmatpush1.msra.mxu0 0.0
    %351 = vmatprep.subr.mxu0 0.0
    %352 = vmatpush1.msra.mxu0 0.0
    %353 = vmatprep.subr.mxu0 0.0
    %354 = vmatpush1.msra.mxu0 0.0
    %355 = vmatprep.subr.mxu0 0.0
    %356 = vmatpush1.msra.mxu0 0.0
    %357 = vmatprep.subr.mxu0 0.0
    %358 = vmatpush1.msra.mxu0 0.0
    %359 = vmatprep.subr.mxu0 0.0
    %360 = vmatpush1.msra.mxu0 0.0
    %361 = vmatprep.subr.mxu0 0.0
    %362 = vmatpush1.msra.mxu0 0.0
    %363 = vmatprep.subr.mxu0 0.0
    %364 = vmatpush1.msra.mxu0 0.0
    %365 = vmatprep.subr.mxu0 0.0
    %366 = vmatpush1.msra.mxu0 0.0
    %367 = vmatprep.subr.mxu0 0.0
    %368 = vmatpush1.msra.mxu0 0.0
    %369 = vmatprep.subr.mxu0 0.0
    %370 = vmatpush1.msra.mxu0 0.0
    %371 = vmatprep.subr.mxu0 0.0
    %372 = vmatpush1.msra.mxu0 0.0
    %373 = vmatprep.subr.mxu0 0.0
    %374 = vmatpush1.msra.mxu0 0.0
    %375 = vmatprep.subr.mxu0 0.0
    %376 = vmatpush1.msra.mxu0 0.0
    %377 = vmatprep.mubr.f32.mxu0 0.0
    %378 = vmatmul.mubr.f32.gmra.mrb[0].mxu0 %v296
    %v379 = vpop.f32.mrb[0].mxu0
    %v380 = vadd.f32 %v292, %v379
    %v381 = vpop.f32.mrb[0].mxu0
    %382 = vmatprep.mubr.f32.mxu0 0.0
    %383 = vmatmul.mubr.f32.gmra.mrb[0].mxu0 %v299
    %v384 = vpop.f32.mrb[0].mxu0
    %v385 = vadd.f32 %v292, %v384
    %v386 = vpop.f32.mrb[0].mxu0
    %387 = vmatprep.mubr.f32.mxu0 0.0
    %388 = vmatmul.mubr.f32.gmra.mrb[0].mxu0 %v302
    %v389 = vpop.f32.mrb[0].mxu0
    %v390 = vadd.f32 %v292, %v389
    %v391 = vpop.f32.mrb[0].mxu0
    %392 = vmatprep.mubr.f32.mxu0 0.0
    %393 = vmatmul.mubr.f32.gmra.mrb[0].mxu0 %v305
    %v394 = vpop.f32.mrb[0].mxu0
    %v395 = vadd.f32 %v292, %v394
    %v396 = vpop.f32.mrb[0].mxu0
    %397 = vmatprep.mubr.f32.mxu0 0.0
    %398 = vmatmul.mubr.f32.gmra.mrb[0].mxu0 %v308
    %v399 = vpop.f32.mrb[0].mxu0
    %v400 = vadd.f32 %v292, %v399
    %v401 = vpop.f32.mrb[0].mxu0
    %402 = vmatprep.mubr.f32.mxu0 0.0
    %403 = vmatmul.mubr.f32.gmra.mrb[0].mxu0 %v311
    %v404 = vpop.f32.mrb[0].mxu0
    %v405 = vadd.f32 %v292, %v404
    %v406 = vpop.f32.mrb[0].mxu0
    %407 = vdwg.mxu0
    %v408 = vmax.f32 %v380, 0.0
    %v409 = vmax.f32 %v385, 0.0
    %v410 = vmax.f32 %v390, 0.0
    %v411 = vmax.f32 %v395, 0.0
    %v412 = vmax.f32 %v400, 0.0
    %v413 = vmax.f32 %v405, 0.0
    %v414 = vld [vmem:[%s17] sm:$0xff]
    %v415 = vld [vmem:[%s17 + $0x8] sm:$0xff]
    %v416 = vld [vmem:[%s17 + $0x10] sm:$0xff]
    %v417 = vld [vmem:[%s17 + $0x18] sm:$0xff]
    %v418 = vld [vmem:[%s19] sm:$0x1]
    %v420 = vlaneseq
    %v421 = vshrl.u32 %v420, 7
    %v422 = vsub.s32 0, %v421
    %v423 = vrot.slane %v418, %v422
    %v426 = vsel %vm294, %v408, 0
    %v429 = vsel %vm294, %v409, 0
    %v432 = vsel %vm294, %v410, 0
    %v435 = vsel %vm294, %v411, 0
    %v438 = vsel %vm294, %v412, 0
    %v441 = vsel %vm294, %v413, 0
    %443 = vmatprep.subr.mxu0 0.0
    %444 = vmatpush1.msra.mxu0 %v414
    %445 = vmatprep.subr.mxu0 0.0
    %446 = vmatpush1.msra.mxu0 %v415
    %447 = vmatprep.subr.mxu0 0.0
    %448 = vmatpush1.msra.mxu0 %v416
    %449 = vmatprep.subr.mxu0 0.0
    %450 = vmatpush1.msra.mxu0 %v417
    %451 = vmatprep.subr.mxu0 0.0
    %452 = vmatpush1.msra.mxu0 0.0
    %453 = vmatprep.subr.mxu0 0.0
    %454 = vmatpush1.msra.mxu0 0.0
    %455 = vmatprep.subr.mxu0 0.0
    %456 = vmatpush1.msra.mxu0 0.0
    %457 = vmatprep.subr.mxu0 0.0
    %458 = vmatpush1.msra.mxu0 0.0
    %459 = vmatprep.subr.mxu0 0.0
    %460 = vmatpush1.msra.mxu0 0.0
    %461 = vmatprep.subr.mxu0 0.0
    %462 = vmatpush1.msra.mxu0 0.0
    %463 = vmatprep.subr.mxu0 0.0
    %464 = vmatpush1.msra.mxu0 0.0
    %465 = vmatprep.subr.mxu0 0.0
    %466 = vmatpush1.msra.mxu0 0.0
    %467 = vmatprep.subr.mxu0 0.0
    %468 = vmatpush1.msra.mxu0 0.0
    %469 = vmatprep.subr.mxu0 0.0
    %470 = vmatpush1.msra.mxu0 0.0
    %471 = vmatprep.subr.mxu0 0.0
    %472 = vmatpush1.msra.mxu0 0.0
    %473 = vmatprep.subr.mxu0 0.0
    %474 = vmatpush1.msra.mxu0 0.0
    %475 = vmatprep.subr.mxu0 0.0
    %476 = vmatpush1.msra.mxu0 0.0
    %477 = vmatprep.subr.mxu0 0.0
    %478 = vmatpush1.msra.mxu0 0.0
    %479 = vmatprep.subr.mxu0 0.0
    %480 = vmatpush1.msra.mxu0 0.0
    %481 = vmatprep.subr.mxu0 0.0
    %482 = vmatpush1.msra.mxu0 0.0
    %483 = vmatprep.subr.mxu0 0.0
    %484 = vmatpush1.msra.mxu0 0.0
    %485 = vmatprep.subr.mxu0 0.0
    %486 = vmatpush1.msra.mxu0 0.0
    %487 = vmatprep.subr.mxu0 0.0
    %488 = vmatpush1.msra.mxu0 0.0
    %489 = vmatprep.subr.mxu0 0.0
    %490 = vmatpush1.msra.mxu0 0.0
    %491 = vmatprep.subr.mxu0 0.0
    %492 = vmatpush1.msra.mxu0 0.0
    %493 = vmatprep.subr.mxu0 0.0
    %494 = vmatpush1.msra.mxu0 0.0
    %495 = vmatprep.subr.mxu0 0.0
    %496 = vmatpush1.msra.mxu0 0.0
    %497 = vmatprep.subr.mxu0 0.0
    %498 = vmatpush1.msra.mxu0 0.0
    %499 = vmatprep.subr.mxu0 0.0
    %500 = vmatpush1.msra.mxu0 0.0
    %501 = vmatprep.subr.mxu0 0.0
    %502 = vmatpush1.msra.mxu0 0.0
    %503 = vmatprep.subr.mxu0 0.0
    %504 = vmatpush1.msra.mxu0 0.0
    %505 = vmatprep.subr.mxu0 0.0
    %506 = vmatpush1.msra.mxu0 0.0
    %507 = vmatprep.mubr.f32.mxu0 0.0
    %508 = vmatmul.mubr.f32.gmra.mrb[0].mxu0 %v426
    %v509 = vpop.f32.mrb[0].mxu0
    %v510 = vadd.f32 %v423, %v509
    %v511 = vpop.f32.mrb[0].mxu0
    %512 = vmatprep.mubr.f32.mxu0 0.0
    %513 = vmatmul.mubr.f32.gmra.mrb[0].mxu0 %v429
    %v514 = vpop.f32.mrb[0].mxu0
    %v515 = vadd.f32 %v423, %v514
    %v516 = vpop.f32.mrb[0].mxu0
    %517 = vmatprep.mubr.f32.mxu0 0.0
    %518 = vmatmul.mubr.f32.gmra.mrb[0].mxu0 %v432
    %v519 = vpop.f32.mrb[0].mxu0
    %v520 = vadd.f32 %v423, %v519
    %v521 = vpop.f32.mrb[0].mxu0
    %522 = vmatprep.mubr.f32.mxu0 0.0
    %523 = vmatmul.mubr.f32.gmra.mrb[0].mxu0 %v435
    %v524 = vpop.f32.mrb[0].mxu0
    %v525 = vadd.f32 %v423, %v524
    %v526 = vpop.f32.mrb[0].mxu0
    %527 = vmatprep.mubr.f32.mxu0 0.0
    %528 = vmatmul.mubr.f32.gmra.mrb[0].mxu0 %v438
    %v529 = vpop.f32.mrb[0].mxu0
    %v530 = vadd.f32 %v423, %v529
    %v531 = vpop.f32.mrb[0].mxu0
    %532 = vmatprep.mubr.f32.mxu0 0.0
    %533 = vmatmul.mubr.f32.gmra.mrb[0].mxu0 %v441
    %v534 = vpop.f32.mrb[0].mxu0
    %v535 = vadd.f32 %v423, %v534
    %v536 = vpop.f32.mrb[0].mxu0
    %537 = vdwg.mxu0
    %v538 = vld [vmem:[%s3] sm:$0xff]
    %v539 = vld [vmem:[%s3 + $0x8] sm:$0xff]
    %v540 = vld [vmem:[%s3 + $0x10] sm:$0xff]
    %v541 = vld [vmem:[%s3 + $0x18] sm:$0xff]
    %v542 = vld [vmem:[%s3 + $0x20] sm:$0xff]
    %v543 = vld [vmem:[%s3 + $0x28] sm:$0xff]
    %v544 = vld [vmem:[%s45] sm:$0xff]
    %v545 = vld [vmem:[%s47] sm:$0x1]
    %v547 = vlaneseq
    %v548 = vshrl.u32 %v547, 7
    %v549 = vsub.s32 0, %v548
    %v550 = vrot.slane %v545, %v549
    %vm552 = vcmask 64512
    %v554 = vsel %vm552, %v538, 0
    %v557 = vsel %vm552, %v539, 0
    %v560 = vsel %vm552, %v540, 0
    %v563 = vsel %vm552, %v541, 0
    %v566 = vsel %vm552, %v542, 0
    %v569 = vsel %vm552, %v543, 0
    %571 = vmatprep.subr.mxu0 0.0
    %572 = vmatpush1.msra.mxu0 %v544
    %573 = vmatprep.subr.mxu0 0.0
    %574 = vmatpush1.msra.mxu0 0.0
    %575 = vmatprep.subr.mxu0 0.0
    %576 = vmatpush1.msra.mxu0 0.0
    %577 = vmatprep.subr.mxu0 0.0
    %578 = vmatpush1.msra.mxu0 0.0
    %579 = vmatprep.subr.mxu0 0.0
    %580 = vmatpush1.msra.mxu0 0.0
    %581 = vmatprep.subr.mxu0 0.0
    %582 = vmatpush1.msra.mxu0 0.0
    %583 = vmatprep.subr.mxu0 0.0
    %584 = vmatpush1.msra.mxu0 0.0
    %585 = vmatprep.subr.mxu0 0.0
    %586 = vmatpush1.msra.mxu0 0.0
    %587 = vmatprep.subr.mxu0 0.0
    %588 = vmatpush1.msra.mxu0 0.0
    %589 = vmatprep.subr.mxu0 0.0
    %590 = vmatpush1.msra.mxu0 0.0
    %591 = vmatprep.subr.mxu0 0.0
    %592 = vmatpush1.msra.mxu0 0.0
    %593 = vmatprep.subr.mxu0 0.0
    %594 = vmatpush1.msra.mxu0 0.0
    %595 = vmatprep.subr.mxu0 0.0
    %596 = vmatpush1.msra.mxu0 0.0
    %597 = vmatprep.subr.mxu0 0.0
    %598 = vmatpush1.msra.mxu0 0.0
    %599 = vmatprep.subr.mxu0 0.0
    %600 = vmatpush1.msra.mxu0 0.0
    %601 = vmatprep.subr.mxu0 0.0
    %602 = vmatpush1.msra.mxu0 0.0
    %603 = vmatprep.subr.mxu0 0.0
    %604 = vmatpush1.msra.mxu0 0.0
    %605 = vmatprep.subr.mxu0 0.0
    %606 = vmatpush1.msra.mxu0 0.0
    %607 = vmatprep.subr.mxu0 0.0
    %608 = vmatpush1.msra.mxu0 0.0
    %609 = vmatprep.subr.mxu0 0.0
    %610 = vmatpush1.msra.mxu0 0.0
    %611 = vmatprep.subr.mxu0 0.0
    %612 = vmatpush1.msra.mxu0 0.0
    %613 = vmatprep.subr.mxu0 0.0
    %614 = vmatpush1.msra.mxu0 0.0
    %615 = vmatprep.subr.mxu0 0.0
    %616 = vmatpush1.msra.mxu0 0.0
    %617 = vmatprep.subr.mxu0 0.0
    %618 = vmatpush1.msra.mxu0 0.0
    %619 = vmatprep.subr.mxu0 0.0
    %620 = vmatpush1.msra.mxu0 0.0
    %621 = vmatprep.subr.mxu0 0.0
    %622 = vmatpush1.msra.mxu0 0.0
    %623 = vmatprep.subr.mxu0 0.0
    %624 = vmatpush1.msra.mxu0 0.0
    %625 = vmatprep.subr.mxu0 0.0
    %626 = vmatpush1.msra.mxu0 0.0
    %627 = vmatprep.subr.mxu0 0.0
    %628 = vmatpush1.msra.mxu0 0.0
    %629 = vmatprep.subr.mxu0 0.0
    %630 = vmatpush1.msra.mxu0 0.0
    %631 = vmatprep.subr.mxu0 0.0
    %632 = vmatpush1.msra.mxu0 0.0
    %633 = vmatprep.subr.mxu0 0.0
    %634 = vmatpush1.msra.mxu0 0.0
    %635 = vmatprep.mubr.f32.mxu0 0.0
    %636 = vmatmul.mubr.f32.gmra.mrb[0].mxu0 %v554
    %v637 = vpop.f32.mrb[0].mxu0
    %v638 = vadd.f32 %v550, %v637
    %v639 = vpop.f32.mrb[0].mxu0
    %640 = vmatprep.mubr.f32.mxu0 0.0
    %641 = vmatmul.mubr.f32.gmra.mrb[0].mxu0 %v557
    %v642 = vpop.f32.mrb[0].mxu0
    %v643 = vadd.f32 %v550, %v642
    %v644 = vpop.f32.mrb[0].mxu0
    %645 = vmatprep.mubr.f32.mxu0 0.0
    %646 = vmatmul.mubr.f32.gmra.mrb[0].mxu0 %v560
    %v647 = vpop.f32.mrb[0].mxu0
    %v648 = vadd.f32 %v550, %v647
    %v649 = vpop.f32.mrb[0].mxu0
    %650 = vmatprep.mubr.f32.mxu0 0.0
    %651 = vmatmul.mubr.f32.gmra.mrb[0].mxu0 %v563
    %v652 = vpop.f32.mrb[0].mxu0
    %v653 = vadd.f32 %v550, %v652
    %v654 = vpop.f32.mrb[0].mxu0
    %655 = vmatprep.mubr.f32.mxu0 0.0
    %656 = vmatmul.mubr.f32.gmra.mrb[0].mxu0 %v566
    %v657 = vpop.f32.mrb[0].mxu0
    %v658 = vadd.f32 %v550, %v657
    %v659 = vpop.f32.mrb[0].mxu0
    %660 = vmatprep.mubr.f32.mxu0 0.0
    %661 = vmatmul.mubr.f32.gmra.mrb[0].mxu0 %v569
    %v662 = vpop.f32.mrb[0].mxu0
    %v663 = vpop.f32.mrb[0].mxu0
    %664 = vdwg.mxu0
    %v665 = vld [vmem:[%s5] sm:$0xff]
    %v666 = vld [vmem:[%s5 + $0x8] sm:$0xff]
    %v667 = vld [vmem:[%s5 + $0x10] sm:$0xff]
    %v668 = vld [vmem:[%s5 + $0x18] sm:$0xff]
    %v669 = vld [vmem:[%s5 + $0x20] sm:$0xff]
    %v670 = vld [vmem:[%s5 + $0x28] sm:$0xff]
    %v671 = vld [vmem:[%s21] sm:$0xff]
    %v672 = vld [vmem:[%s21 + $0x8] sm:$0xff]
    %v673 = vld [vmem:[%s21 + $0x10] sm:$0xff]
    %v674 = vld [vmem:[%s21 + $0x18] sm:$0xff]
    %v675 = vld [vmem:[%s23] sm:$0xff]
    %v676 = vld [vmem:[%s23 + $0x8] sm:$0xff]
    %v677 = vld [vmem:[%s23 + $0x10] sm:$0xff]
    %v678 = vld [vmem:[%s23 + $0x18] sm:$0xff]
    %v679 = vld [vmem:[%s25] sm:$0x1]
    %v680 = vld [vmem:[%s27] sm:$0xff]
    %v681 = vld [vmem:[%s27 + $0x8] sm:$0xff]
    %v682 = vld [vmem:[%s27 + $0x10] sm:$0xff]
    %v683 = vld [vmem:[%s27 + $0x18] sm:$0xff]
    %v684 = vld [vmem:[%s29] sm:$0x1]
    %v685 = vld [vmem:[%s43] sm:$0xff]
    %v686 = vld [vmem:[%s43 + $0x8] sm:$0xff]
    %v687 = vld [vmem:[%s49] sm:$0xff]
    %v688 = vld [vmem:[%s49 + $0x8] sm:$0xff]
    %v689 = vld [vmem:[%s49 + $0x10] sm:$0xff]
    %v690 = vld [vmem:[%s49 + $0x18] sm:$0xff]
    %v691 = vld [vmem:[%s51] sm:$0x1]
    %v692 = vld [vmem:[%s53] sm:$0xff]
    %v693 = vld [vmem:[%s53 + $0x8] sm:$0xff]
    %v694 = vld [vmem:[%s53 + $0x10] sm:$0xff]
    %v695 = vld [vmem:[%s53 + $0x18] sm:$0xff]
    %v696 = vld [vmem:[%s55] sm:$0x1]
    %v697 = vld [vmem:[%s7] sm:$0x1]
    %v699 = vlaneseq
    %v700 = vshrl.u32 %v699, 7
    %v701 = vsub.s32 0, %v700
    %v702 = vrot.slane %v697, %v701
    %v703 = vsel %vm294, %v702, 0
    %705 = vmatprep.subr.mxu0 0.0
    %706 = vmatpush1.msra.mxu0 %v671
    %707 = vmatprep.subr.mxu0 0.0
    %708 = vmatpush1.msra.mxu0 %v672
    %709 = vmatprep.subr.mxu0 0.0
    %710 = vmatpush1.msra.mxu0 %v673
    %711 = vmatprep.subr.mxu0 0.0
    %712 = vmatpush1.msra.mxu0 %v674
    %713 = vmatprep.subr.mxu0 0.0
    %714 = vmatpush1.msra.mxu0 0.0
    %715 = vmatprep.subr.mxu0 0.0
    %716 = vmatpush1.msra.mxu0 0.0
    %717 = vmatprep.subr.mxu0 0.0
    %718 = vmatpush1.msra.mxu0 0.0
    %719 = vmatprep.subr.mxu0 0.0
    %720 = vmatpush1.msra.mxu0 0.0
    %721 = vmatprep.subr.mxu0 0.0
    %722 = vmatpush1.msra.mxu0 0.0
    %723 = vmatprep.subr.mxu0 0.0
    %724 = vmatpush1.msra.mxu0 0.0
    %725 = vmatprep.subr.mxu0 0.0
    %726 = vmatpush1.msra.mxu0 0.0
    %727 = vmatprep.subr.mxu0 0.0
    %728 = vmatpush1.msra.mxu0 0.0
    %729 = vmatprep.subr.mxu0 0.0
    %730 = vmatpush1.msra.mxu0 0.0
    %731 = vmatprep.subr.mxu0 0.0
    %732 = vmatpush1.msra.mxu0 0.0
    %733 = vmatprep.subr.mxu0 0.0
    %734 = vmatpush1.msra.mxu0 0.0
    %735 = vmatprep.subr.mxu0 0.0
    %736 = vmatpush1.msra.mxu0 0.0
    %737 = vmatprep.subr.mxu0 0.0
    %738 = vmatpush1.msra.mxu0 0.0
    %739 = vmatprep.subr.mxu0 0.0
    %740 = vmatpush1.msra.mxu0 0.0
    %741 = vmatprep.subr.mxu0 0.0
    %742 = vmatpush1.msra.mxu0 0.0
    %743 = vmatprep.subr.mxu0 0.0
    %744 = vmatpush1.msra.mxu0 0.0
    %745 = vmatprep.subr.mxu0 0.0
    %746 = vmatpush1.msra.mxu0 0.0
    %747 = vmatprep.subr.mxu0 0.0
    %748 = vmatpush1.msra.mxu0 0.0
    %749 = vmatprep.subr.mxu0 0.0
    %750 = vmatpush1.msra.mxu0 0.0
    %751 = vmatprep.subr.mxu0 0.0
    %752 = vmatpush1.msra.mxu0 0.0
    %753 = vmatprep.subr.mxu0 0.0
    %754 = vmatpush1.msra.mxu0 0.0
    %755 = vmatprep.subr.mxu0 0.0
    %756 = vmatpush1.msra.mxu0 0.0
    %757 = vmatprep.subr.mxu0 0.0
    %758 = vmatpush1.msra.mxu0 0.0
    %759 = vmatprep.subr.mxu0 0.0
    %760 = vmatpush1.msra.mxu0 0.0
    %761 = vmatprep.subr.mxu0 0.0
    %762 = vmatpush1.msra.mxu0 0.0
    %763 = vmatprep.subr.mxu0 0.0
    %764 = vmatpush1.msra.mxu0 0.0
    %765 = vmatprep.subr.mxu0 0.0
    %766 = vmatpush1.msra.mxu0 0.0
    %767 = vmatprep.subr.mxu0 0.0
    %768 = vmatpush1.msra.mxu0 0.0
    %769 = vmatprep.mubr.f32.mxu0 0.0
    %770 = vmatmul.mubr.f32.gmra.mrb[0].mxu0 %v703
    %v771 = vpop.f32.mrb[0].mxu0
    %v772 = vadd.f32 0.0, %v771
    %v773 = vpop.f32.mrb[0].mxu0
    %774 = vdwg.mxu0
    %v775 = vadd.f32 %v510, %v772
    %v776 = vmax.f32 %v775, 0.0
    %v778 = vlaneseq
    %v779 = vshrl.u32 %v778, 7
    %v780 = vsub.s32 0, %v779
    %v781 = vrot.slane %v679, %v780
    %v784 = vsel %vm294, %v776, 0
    %786 = vmatprep.subr.mxu0 0.0
    %787 = vmatpush1.msra.mxu0 %v675
    %788 = vmatprep.subr.mxu0 0.0
    %789 = vmatpush1.msra.mxu0 %v676
    %790 = vmatprep.subr.mxu0 0.0
    %791 = vmatpush1.msra.mxu0 %v677
    %792 = vmatprep.subr.mxu0 0.0
    %793 = vmatpush1.msra.mxu0 %v678
    %794 = vmatprep.subr.mxu0 0.0
    %795 = vmatpush1.msra.mxu0 0.0
    %796 = vmatprep.subr.mxu0 0.0
    %797 = vmatpush1.msra.mxu0 0.0
    %798 = vmatprep.subr.mxu0 0.0
    %799 = vmatpush1.msra.mxu0 0.0
    %800 = vmatprep.subr.mxu0 0.0
    %801 = vmatpush1.msra.mxu0 0.0
    %802 = vmatprep.subr.mxu0 0.0
    %803 = vmatpush1.msra.mxu0 0.0
    %804 = vmatprep.subr.mxu0 0.0
    %805 = vmatpush1.msra.mxu0 0.0
    %806 = vmatprep.subr.mxu0 0.0
    %807 = vmatpush1.msra.mxu0 0.0
    %808 = vmatprep.subr.mxu0 0.0
    %809 = vmatpush1.msra.mxu0 0.0
    %810 = vmatprep.subr.mxu0 0.0
    %811 = vmatpush1.msra.mxu0 0.0
    %812 = vmatprep.subr.mxu0 0.0
    %813 = vmatpush1.msra.mxu0 0.0
    %814 = vmatprep.subr.mxu0 0.0
    %815 = vmatpush1.msra.mxu0 0.0
    %816 = vmatprep.subr.mxu0 0.0
    %817 = vmatpush1.msra.mxu0 0.0
    %818 = vmatprep.subr.mxu0 0.0
    %819 = vmatpush1.msra.mxu0 0.0
    %820 = vmatprep.subr.mxu0 0.0
    %821 = vmatpush1.msra.mxu0 0.0
    %822 = vmatprep.subr.mxu0 0.0
    %823 = vmatpush1.msra.mxu0 0.0
    %824 = vmatprep.subr.mxu0 0.0
    %825 = vmatpush1.msra.mxu0 0.0
    %826 = vmatprep.subr.mxu0 0.0
    %827 = vmatpush1.msra.mxu0 0.0
    %828 = vmatprep.subr.mxu0 0.0
    %829 = vmatpush1.msra.mxu0 0.0
    %830 = vmatprep.subr.mxu0 0.0
    %831 = vmatpush1.msra.mxu0 0.0
    %832 = vmatprep.subr.mxu0 0.0
    %833 = vmatpush1.msra.mxu0 0.0
    %834 = vmatprep.subr.mxu0 0.0
    %835 = vmatpush1.msra.mxu0 0.0
    %836 = vmatprep.subr.mxu0 0.0
    %837 = vmatpush1.msra.mxu0 0.0
    %838 = vmatprep.subr.mxu0 0.0
    %839 = vmatpush1.msra.mxu0 0.0
    %840 = vmatprep.subr.mxu0 0.0
    %841 = vmatpush1.msra.mxu0 0.0
    %842 = vmatprep.subr.mxu0 0.0
    %843 = vmatpush1.msra.mxu0 0.0
    %844 = vmatprep.subr.mxu0 0.0
    %845 = vmatpush1.msra.mxu0 0.0
    %846 = vmatprep.subr.mxu0 0.0
    %847 = vmatpush1.msra.mxu0 0.0
    %848 = vmatprep.subr.mxu0 0.0
    %849 = vmatpush1.msra.mxu0 0.0
    %850 = vmatprep.mubr.f32.mxu0 0.0
    %851 = vmatmul.mubr.f32.gmra.mrb[0].mxu0 %v784
    %v852 = vpop.f32.mrb[0].mxu0
    %v853 = vadd.f32 %v781, %v852
    %v854 = vpop.f32.mrb[0].mxu0
    %855 = vdwg.mxu0
    %v856 = vmax.f32 %v853, 0.0
    %v858 = vlaneseq
    %v859 = vshrl.u32 %v858, 7
    %v860 = vsub.s32 0, %v859
    %v861 = vrot.slane %v684, %v860
    %v864 = vsel %vm294, %v856, 0
    %866 = vmatprep.subr.mxu0 0.0
    %867 = vmatpush1.msra.mxu0 %v680
    %868 = vmatprep.subr.mxu0 0.0
    %869 = vmatpush1.msra.mxu0 %v681
    %870 = vmatprep.subr.mxu0 0.0
    %871 = vmatpush1.msra.mxu0 %v682
    %872 = vmatprep.subr.mxu0 0.0
    %873 = vmatpush1.msra.mxu0 %v683
    %874 = vmatprep.subr.mxu0 0.0
    %875 = vmatpush1.msra.mxu0 0.0
    %876 = vmatprep.subr.mxu0 0.0
    %877 = vmatpush1.msra.mxu0 0.0
    %878 = vmatprep.subr.mxu0 0.0
    %879 = vmatpush1.msra.mxu0 0.0
    %880 = vmatprep.subr.mxu0 0.0
    %881 = vmatpush1.msra.mxu0 0.0
    %882 = vmatprep.subr.mxu0 0.0
    %883 = vmatpush1.msra.mxu0 0.0
    %884 = vmatprep.subr.mxu0 0.0
    %885 = vmatpush1.msra.mxu0 0.0
    %886 = vmatprep.subr.mxu0 0.0
    %887 = vmatpush1.msra.mxu0 0.0
    %888 = vmatprep.subr.mxu0 0.0
    %889 = vmatpush1.msra.mxu0 0.0
    %890 = vmatprep.subr.mxu0 0.0
    %891 = vmatpush1.msra.mxu0 0.0
    %892 = vmatprep.subr.mxu0 0.0
    %893 = vmatpush1.msra.mxu0 0.0
    %894 = vmatprep.subr.mxu0 0.0
    %895 = vmatpush1.msra.mxu0 0.0
    %896 = vmatprep.subr.mxu0 0.0
    %897 = vmatpush1.msra.mxu0 0.0
    %898 = vmatprep.subr.mxu0 0.0
    %899 = vmatpush1.msra.mxu0 0.0
    %900 = vmatprep.subr.mxu0 0.0
    %901 = vmatpush1.msra.mxu0 0.0
    %902 = vmatprep.subr.mxu0 0.0
    %903 = vmatpush1.msra.mxu0 0.0
    %904 = vmatprep.subr.mxu0 0.0
    %905 = vmatpush1.msra.mxu0 0.0
    %906 = vmatprep.subr.mxu0 0.0
    %907 = vmatpush1.msra.mxu0 0.0
    %908 = vmatprep.subr.mxu0 0.0
    %909 = vmatpush1.msra.mxu0 0.0
    %910 = vmatprep.subr.mxu0 0.0
    %911 = vmatpush1.msra.mxu0 0.0
    %912 = vmatprep.subr.mxu0 0.0
    %913 = vmatpush1.msra.mxu0 0.0
    %914 = vmatprep.subr.mxu0 0.0
    %915 = vmatpush1.msra.mxu0 0.0
    %916 = vmatprep.subr.mxu0 0.0
    %917 = vmatpush1.msra.mxu0 0.0
    %918 = vmatprep.subr.mxu0 0.0
    %919 = vmatpush1.msra.mxu0 0.0
    %920 = vmatprep.subr.mxu0 0.0
    %921 = vmatpush1.msra.mxu0 0.0
    %922 = vmatprep.subr.mxu0 0.0
    %923 = vmatpush1.msra.mxu0 0.0
    %924 = vmatprep.subr.mxu0 0.0
    %925 = vmatpush1.msra.mxu0 0.0
    %926 = vmatprep.subr.mxu0 0.0
    %927 = vmatpush1.msra.mxu0 0.0
    %928 = vmatprep.subr.mxu0 0.0
    %929 = vmatpush1.msra.mxu0 0.0
    %930 = vmatprep.mubr.f32.mxu0 0.0
    %931 = vmatmul.mubr.f32.gmra.mrb[0].mxu0 %v864
    %v932 = vpop.f32.mrb[0].mxu0
    %v933 = vadd.f32 %v861, %v932
    %v934 = vpop.f32.mrb[0].mxu0
    %935 = vdwg.mxu0
    %v936 = vmax.f32 %v933, 0.0
    %vm937 = vcmp.ne.f32.partialorder %v933, %v933
    %v938 = vadd.f32 %v933, 0.0
    %v939 = vand.u32 2147483647, %v933
    %v940 = vsub.f32 0.0, %v939
    %v941 = vmul.f32 %v940, 1.442695
    %v942 = vpow.pop %v941
    %v943 = vadd.f32 %v942, 1.0
    %v944 = vlog2.pop %v943
    %v945 = vmul.f32 %v944, 0.6931472
    %v946 = vmul.f32 -0.5, %v942
    %v947 = vadd.f32 %v946, 1.0
    %v948 = vmul.f32 %v947, %v942
    %v949 = vand.u32 2147483647, %v942
    %vm950 = vcmp.lt.f32.partialorder %v949, 0.0004427343
    %v951 = vsel %vm950, %v948, %v945
    %v952 = vadd.f32 %v936, %v951
    %v953 = vsel %vm937, %v938, %v952
    %v954 = vadd.f32 %v953, 1e-05
    %956 = vrot.lane.b32.xlu0 %v665, 16
    %v957 = vpop.permute.xlu0 %956
    %v959 = vmul.f32 %v954, %v957
    %961 = vrot.lane.b32.xlu0 %v959, 112
    %v962 = vpop.permute.xlu0 %961
    %v964 = vadd.f32 %v933, %v962
    %966 = vrot.lane.b32.xlu0 %v964, 32
    %v967 = vpop.permute.xlu0 %966
    %969 = vrot.lane.b32.xlu0 %v702, 48
    %v970 = vpop.permute.xlu0 %969
    %v972 = vsel %vm163, %v933, %v954
    %v973 = vsel %vm294, %v972, %v967
    %vm974 = vcmask 392192
    %v975 = vsel %vm974, %v973, %v970
    %vm976 = vcmask 654336
    %977 = vst.msk [vmem:[%s69] sm:$0xff] %vm976, %v975
    %v978 = vsel %vm163, %v964, 0
    %980 = vmatprep.subr.mxu0 0.0
    %981 = vmatpush1.msra.mxu0 %v685
    %982 = vmatprep.subr.mxu0 0.0
    %983 = vmatpush1.msra.mxu0 %v686
    %984 = vmatprep.subr.mxu0 0.0
    %985 = vmatpush1.msra.mxu0 0.0
    %986 = vmatprep.subr.mxu0 0.0
    %987 = vmatpush1.msra.mxu0 0.0
    %988 = vmatprep.subr.mxu0 0.0
    %989 = vmatpush1.msra.mxu0 0.0
    %990 = vmatprep.subr.mxu0 0.0
    %991 = vmatpush1.msra.mxu0 0.0
    %992 = vmatprep.subr.mxu0 0.0
    %993 = vmatpush1.msra.mxu0 0.0
    %994 = vmatprep.subr.mxu0 0.0
    %995 = vmatpush1.msra.mxu0 0.0
    %996 = vmatprep.subr.mxu0 0.0
    %997 = vmatpush1.msra.mxu0 0.0
    %998 = vmatprep.subr.mxu0 0.0
    %999 = vmatpush1.msra.mxu0 0.0
    %1000 = vmatprep.subr.mxu0 0.0
    %1001 = vmatpush1.msra.mxu0 0.0
    %1002 = vmatprep.subr.mxu0 0.0
    %1003 = vmatpush1.msra.mxu0 0.0
    %1004 = vmatprep.subr.mxu0 0.0
    %1005 = vmatpush1.msra.mxu0 0.0
    %1006 = vmatprep.subr.mxu0 0.0
    %1007 = vmatpush1.msra.mxu0 0.0
    %1008 = vmatprep.subr.mxu0 0.0
    %1009 = vmatpush1.msra.mxu0 0.0
    %1010 = vmatprep.subr.mxu0 0.0
    %1011 = vmatpush1.msra.mxu0 0.0
    %1012 = vmatprep.subr.mxu0 0.0
    %1013 = vmatpush1.msra.mxu0 0.0
    %1014 = vmatprep.subr.mxu0 0.0
    %1015 = vmatpush1.msra.mxu0 0.0
    %1016 = vmatprep.subr.mxu0 0.0
    %1017 = vmatpush1.msra.mxu0 0.0
    %1018 = vmatprep.subr.mxu0 0.0
    %1019 = vmatpush1.msra.mxu0 0.0
    %1020 = vmatprep.subr.mxu0 0.0
    %1021 = vmatpush1.msra.mxu0 0.0
    %1022 = vmatprep.subr.mxu0 0.0
    %1023 = vmatpush1.msra.mxu0 0.0
    %1024 = vmatprep.subr.mxu0 0.0
    %1025 = vmatpush1.msra.mxu0 0.0
    %1026 = vmatprep.subr.mxu0 0.0
    %1027 = vmatpush1.msra.mxu0 0.0
    %1028 = vmatprep.subr.mxu0 0.0
    %1029 = vmatpush1.msra.mxu0 0.0
    %1030 = vmatprep.subr.mxu0 0.0
    %1031 = vmatpush1.msra.mxu0 0.0
    %1032 = vmatprep.subr.mxu0 0.0
    %1033 = vmatpush1.msra.mxu0 0.0
    %1034 = vmatprep.subr.mxu0 0.0
    %1035 = vmatpush1.msra.mxu0 0.0
    %1036 = vmatprep.subr.mxu0 0.0
    %1037 = vmatpush1.msra.mxu0 0.0
    %1038 = vmatprep.subr.mxu0 0.0
    %1039 = vmatpush1.msra.mxu0 0.0
    %1040 = vmatprep.subr.mxu0 0.0
    %1041 = vmatpush1.msra.mxu0 0.0
    %1042 = vmatprep.subr.mxu0 0.0
    %1043 = vmatpush1.msra.mxu0 0.0
    %1044 = vmatprep.mubr.f32.mxu0 0.0
    %1045 = vmatmul.mubr.f32.gmra.mrb[0].mxu0 %v978
    %v1046 = vpop.f32.mrb[0].mxu0
    %v1047 = vadd.f32 0.0, %v1046
    %v1048 = vpop.f32.mrb[0].mxu0
    %1049 = vdwg.mxu0
    %1051 = vrot.lane.b32.xlu0 %v1047, 32
    %v1052 = vpop.permute.xlu0 %1051
    %v1054 = vadd.f32 %v772, %v1052
    %1056 = vrot.lane.b32.xlu0 %v638, 32
    %v1057 = vpop.permute.xlu0 %1056
    %v1059 = vadd.f32 %v1054, %v1057
    %v1060 = vmax.f32 %v1059, 0.0
    %v1062 = vlaneseq
    %v1063 = vshrl.u32 %v1062, 7
    %v1064 = vsub.s32 0, %v1063
    %v1065 = vrot.slane %v691, %v1064
    %1068 = vrot.lane.b32.xlu0 %v1060, 96
    %v1069 = vpop.permute.xlu0 %1068
    %v1070 = vsel %vm294, %v1069, 0
    %1072 = vmatprep.subr.mxu0 0.0
    %1073 = vmatpush1.msra.mxu0 %v687
    %1074 = vmatprep.subr.mxu0 0.0
    %1075 = vmatpush1.msra.mxu0 %v688
    %1076 = vmatprep.subr.mxu0 0.0
    %1077 = vmatpush1.msra.mxu0 %v689
    %1078 = vmatprep.subr.mxu0 0.0
    %1079 = vmatpush1.msra.mxu0 %v690
    %1080 = vmatprep.subr.mxu0 0.0
    %1081 = vmatpush1.msra.mxu0 0.0
    %1082 = vmatprep.subr.mxu0 0.0
    %1083 = vmatpush1.msra.mxu0 0.0
    %1084 = vmatprep.subr.mxu0 0.0
    %1085 = vmatpush1.msra.mxu0 0.0
    %1086 = vmatprep.subr.mxu0 0.0
    %1087 = vmatpush1.msra.mxu0 0.0
    %1088 = vmatprep.subr.mxu0 0.0
    %1089 = vmatpush1.msra.mxu0 0.0
    %1090 = vmatprep.subr.mxu0 0.0
    %1091 = vmatpush1.msra.mxu0 0.0
    %1092 = vmatprep.subr.mxu0 0.0
    %1093 = vmatpush1.msra.mxu0 0.0
    %1094 = vmatprep.subr.mxu0 0.0
    %1095 = vmatpush1.msra.mxu0 0.0
    %1096 = vmatprep.subr.mxu0 0.0
    %1097 = vmatpush1.msra.mxu0 0.0
    %1098 = vmatprep.subr.mxu0 0.0
    %1099 = vmatpush1.msra.mxu0 0.0
    %1100 = vmatprep.subr.mxu0 0.0
    %1101 = vmatpush1.msra.mxu0 0.0
    %1102 = vmatprep.subr.mxu0 0.0
    %1103 = vmatpush1.msra.mxu0 0.0
    %1104 = vmatprep.subr.mxu0 0.0
    %1105 = vmatpush1.msra.mxu0 0.0
    %1106 = vmatprep.subr.mxu0 0.0
    %1107 = vmatpush1.msra.mxu0 0.0
    %1108 = vmatprep.subr.mxu0 0.0
    %1109 = vmatpush1.msra.mxu0 0.0
    %1110 = vmatprep.subr.mxu0 0.0
    %1111 = vmatpush1.msra.mxu0 0.0
    %1112 = vmatprep.subr.mxu0 0.0
    %1113 = vmatpush1.msra.mxu0 0.0
    %1114 = vmatprep.subr.mxu0 0.0
    %1115 = vmatpush1.msra.mxu0 0.0
    %1116 = vmatprep.subr.mxu0 0.0
    %1117 = vmatpush1.msra.mxu0 0.0
    %1118 = vmatprep.subr.mxu0 0.0
    %1119 = vmatpush1.msra.mxu0 0.0
    %1120 = vmatprep.subr.mxu0 0.0
    %1121 = vmatpush1.msra.mxu0 0.0
    %1122 = vmatprep.subr.mxu0 0.0
    %1123 = vmatpush1.msra.mxu0 0.0
    %1124 = vmatprep.subr.mxu0 0.0
    %1125 = vmatpush1.msra.mxu0 0.0
    %1126 = vmatprep.subr.mxu0 0.0
    %1127 = vmatpush1.msra.mxu0 0.0
    %1128 = vmatprep.subr.mxu0 0.0
    %1129 = vmatpush1.msra.mxu0 0.0
    %1130 = vmatprep.subr.mxu0 0.0
    %1131 = vmatpush1.msra.mxu0 0.0
    %1132 = vmatprep.subr.mxu0 0.0
    %1133 = vmatpush1.msra.mxu0 0.0
    %1134 = vmatprep.subr.mxu0 0.0
    %1135 = vmatpush1.msra.mxu0 0.0
    %1136 = vmatprep.mubr.f32.mxu0 0.0
    %1137 = vmatmul.mubr.f32.gmra.mrb[0].mxu0 %v1070
    %v1138 = vpop.f32.mrb[0].mxu0
    %v1139 = vadd.f32 %v1065, %v1138
    %v1140 = vpop.f32.mrb[0].mxu0
    %1141 = vdwg.mxu0
    %v1142 = vmax.f32 %v1139, 0.0
    %v1144 = vlaneseq
    %v1145 = vshrl.u32 %v1144, 7
    %v1146 = vsub.s32 0, %v1145
    %v1147 = vrot.slane %v696, %v1146
    %v1150 = vsel %vm294, %v1142, 0
    %1152 = vmatprep.subr.mxu0 0.0
    %1153 = vmatpush1.msra.mxu0 %v692
    %1154 = vmatprep.subr.mxu0 0.0
    %1155 = vmatpush1.msra.mxu0 %v693
    %1156 = vmatprep.subr.mxu0 0.0
    %1157 = vmatpush1.msra.mxu0 %v694
    %1158 = vmatprep.subr.mxu0 0.0
    %1159 = vmatpush1.msra.mxu0 %v695
    %1160 = vmatprep.subr.mxu0 0.0
    %1161 = vmatpush1.msra.mxu0 0.0
    %1162 = vmatprep.subr.mxu0 0.0
    %1163 = vmatpush1.msra.mxu0 0.0
    %1164 = vmatprep.subr.mxu0 0.0
    %1165 = vmatpush1.msra.mxu0 0.0
    %1166 = vmatprep.subr.mxu0 0.0
    %1167 = vmatpush1.msra.mxu0 0.0
    %1168 = vmatprep.subr.mxu0 0.0
    %1169 = vmatpush1.msra.mxu0 0.0
    %1170 = vmatprep.subr.mxu0 0.0
    %1171 = vmatpush1.msra.mxu0 0.0
    %1172 = vmatprep.subr.mxu0 0.0
    %1173 = vmatpush1.msra.mxu0 0.0
    %1174 = vmatprep.subr.mxu0 0.0
    %1175 = vmatpush1.msra.mxu0 0.0
    %1176 = vmatprep.subr.mxu0 0.0
    %1177 = vmatpush1.msra.mxu0 0.0
    %1178 = vmatprep.subr.mxu0 0.0
    %1179 = vmatpush1.msra.mxu0 0.0
    %1180 = vmatprep.subr.mxu0 0.0
    %1181 = vmatpush1.msra.mxu0 0.0
    %1182 = vmatprep.subr.mxu0 0.0
    %1183 = vmatpush1.msra.mxu0 0.0
    %1184 = vmatprep.subr.mxu0 0.0
    %1185 = vmatpush1.msra.mxu0 0.0
    %1186 = vmatprep.subr.mxu0 0.0
    %1187 = vmatpush1.msra.mxu0 0.0
    %1188 = vmatprep.subr.mxu0 0.0
    %1189 = vmatpush1.msra.mxu0 0.0
    %1190 = vmatprep.subr.mxu0 0.0
    %1191 = vmatpush1.msra.mxu0 0.0
    %1192 = vmatprep.subr.mxu0 0.0
    %1193 = vmatpush1.msra.mxu0 0.0
    %1194 = vmatprep.subr.mxu0 0.0
    %1195 = vmatpush1.msra.mxu0 0.0
    %1196 = vmatprep.subr.mxu0 0.0
    %1197 = vmatpush1.msra.mxu0 0.0
    %1198 = vmatprep.subr.mxu0 0.0
    %1199 = vmatpush1.msra.mxu0 0.0
    %1200 = vmatprep.subr.mxu0 0.0
    %1201 = vmatpush1.msra.mxu0 0.0
    %1202 = vmatprep.subr.mxu0 0.0
    %1203 = vmatpush1.msra.mxu0 0.0
    %1204 = vmatprep.subr.mxu0 0.0
    %1205 = vmatpush1.msra.mxu0 0.0
    %1206 = vmatprep.subr.mxu0 0.0
    %1207 = vmatpush1.msra.mxu0 0.0
    %1208 = vmatprep.subr.mxu0 0.0
    %1209 = vmatpush1.msra.mxu0 0.0
    %1210 = vmatprep.subr.mxu0 0.0
    %1211 = vmatpush1.msra.mxu0 0.0
    %1212 = vmatprep.subr.mxu0 0.0
    %1213 = vmatpush1.msra.mxu0 0.0
    %1214 = vmatprep.subr.mxu0 0.0
    %1215 = vmatpush1.msra.mxu0 0.0
    %1216 = vmatprep.mubr.f32.mxu0 0.0
    %1217 = vmatmul.mubr.f32.gmra.mrb[0].mxu0 %v1150
    %v1218 = vpop.f32.mrb[0].mxu0
    %v1219 = vadd.f32 %v1147, %v1218
    %v1220 = vpop.f32.mrb[0].mxu0
    %1221 = vdwg.mxu0
    %v1223 = vsel %vm294, %v1219, 0
    %1225 = vmatprep.subr.mxu0 0.0
    %1226 = vmatpush1.msra.mxu0 %v671
    %1227 = vmatprep.subr.mxu0 0.0
    %1228 = vmatpush1.msra.mxu0 %v672
    %1229 = vmatprep.subr.mxu0 0.0
    %1230 = vmatpush1.msra.mxu0 %v673
    %1231 = vmatprep.subr.mxu0 0.0
    %1232 = vmatpush1.msra.mxu0 %v674
    %1233 = vmatprep.subr.mxu0 0.0
    %1234 = vmatpush1.msra.mxu0 0.0
    %1235 = vmatprep.subr.mxu0 0.0
    %1236 = vmatpush1.msra.mxu0 0.0
    %1237 = vmatprep.subr.mxu0 0.0
    %1238 = vmatpush1.msra.mxu0 0.0
    %1239 = vmatprep.subr.mxu0 0.0
    %1240 = vmatpush1.msra.mxu0 0.0
    %1241 = vmatprep.subr.mxu0 0.0
    %1242 = vmatpush1.msra.mxu0 0.0
    %1243 = vmatprep.subr.mxu0 0.0
    %1244 = vmatpush1.msra.mxu0 0.0
    %1245 = vmatprep.subr.mxu0 0.0
    %1246 = vmatpush1.msra.mxu0 0.0
    %1247 = vmatprep.subr.mxu0 0.0
    %1248 = vmatpush1.msra.mxu0 0.0
    %1249 = vmatprep.subr.mxu0 0.0
    %1250 = vmatpush1.msra.mxu0 0.0
    %1251 = vmatprep.subr.mxu0 0.0
    %1252 = vmatpush1.msra.mxu0 0.0
    %1253 = vmatprep.subr.mxu0 0.0
    %1254 = vmatpush1.msra.mxu0 0.0
    %1255 = vmatprep.subr.mxu0 0.0
    %1256 = vmatpush1.msra.mxu0 0.0
    %1257 = vmatprep.subr.mxu0 0.0
    %1258 = vmatpush1.msra.mxu0 0.0
    %1259 = vmatprep.subr.mxu0 0.0
    %1260 = vmatpush1.msra.mxu0 0.0
    %1261 = vmatprep.subr.mxu0 0.0
    %1262 = vmatpush1.msra.mxu0 0.0
    %1263 = vmatprep.subr.mxu0 0.0
    %1264 = vmatpush1.msra.mxu0 0.0
    %1265 = vmatprep.subr.mxu0 0.0
    %1266 = vmatpush1.msra.mxu0 0.0
    %1267 = vmatprep.subr.mxu0 0.0
    %1268 = vmatpush1.msra.mxu0 0.0
    %1269 = vmatprep.subr.mxu0 0.0
    %1270 = vmatpush1.msra.mxu0 0.0
    %1271 = vmatprep.subr.mxu0 0.0
    %1272 = vmatpush1.msra.mxu0 0.0
    %1273 = vmatprep.subr.mxu0 0.0
    %1274 = vmatpush1.msra.mxu0 0.0
    %1275 = vmatprep.subr.mxu0 0.0
    %1276 = vmatpush1.msra.mxu0 0.0
    %1277 = vmatprep.subr.mxu0 0.0
    %1278 = vmatpush1.msra.mxu0 0.0
    %1279 = vmatprep.subr.mxu0 0.0
    %1280 = vmatpush1.msra.mxu0 0.0
    %1281 = vmatprep.subr.mxu0 0.0
    %1282 = vmatpush1.msra.mxu0 0.0
    %1283 = vmatprep.subr.mxu0 0.0
    %1284 = vmatpush1.msra.mxu0 0.0
    %1285 = vmatprep.subr.mxu0 0.0
    %1286 = vmatpush1.msra.mxu0 0.0
    %1287 = vmatprep.subr.mxu0 0.0
    %1288 = vmatpush1.msra.mxu0 0.0
    %1289 = vmatprep.mubr.f32.mxu0 0.0
    %1290 = vmatmul.mubr.f32.gmra.mrb[0].mxu0 %v1223
    %v1291 = vpop.f32.mrb[0].mxu0
    %v1292 = vadd.f32 0.0, %v1291
    %v1293 = vpop.f32.mrb[0].mxu0
    %1294 = vdwg.mxu0
    %v1295 = vadd.f32 %v515, %v1292
    %v1296 = vmax.f32 %v1295, 0.0
    %v1298 = vsel %vm294, %v1296, 0
    %1300 = vmatprep.subr.mxu0 0.0
    %1301 = vmatpush1.msra.mxu0 %v675
    %1302 = vmatprep.subr.mxu0 0.0
    %1303 = vmatpush1.msra.mxu0 %v676
    %1304 = vmatprep.subr.mxu0 0.0
    %1305 = vmatpush1.msra.mxu0 %v677
    %1306 = vmatprep.subr.mxu0 0.0
    %1307 = vmatpush1.msra.mxu0 %v678
    %1308 = vmatprep.subr.mxu0 0.0
    %1309 = vmatpush1.msra.mxu0 0.0
    %1310 = vmatprep.subr.mxu0 0.0
    %1311 = vmatpush1.msra.mxu0 0.0
    %1312 = vmatprep.subr.mxu0 0.0
    %1313 = vmatpush1.msra.mxu0 0.0
    %1314 = vmatprep.subr.mxu0 0.0
    %1315 = vmatpush1.msra.mxu0 0.0
    %1316 = vmatprep.subr.mxu0 0.0
    %1317 = vmatpush1.msra.mxu0 0.0
    %1318 = vmatprep.subr.mxu0 0.0
    %1319 = vmatpush1.msra.mxu0 0.0
    %1320 = vmatprep.subr.mxu0 0.0
    %1321 = vmatpush1.msra.mxu0 0.0
    %1322 = vmatprep.subr.mxu0 0.0
    %1323 = vmatpush1.msra.mxu0 0.0
    %1324 = vmatprep.subr.mxu0 0.0
    %1325 = vmatpush1.msra.mxu0 0.0
    %1326 = vmatprep.subr.mxu0 0.0
    %1327 = vmatpush1.msra.mxu0 0.0
    %1328 = vmatprep.subr.mxu0 0.0
    %1329 = vmatpush1.msra.mxu0 0.0
    %1330 = vmatprep.subr.mxu0 0.0
    %1331 = vmatpush1.msra.mxu0 0.0
    %1332 = vmatprep.subr.mxu0 0.0
    %1333 = vmatpush1.msra.mxu0 0.0
    %1334 = vmatprep.subr.mxu0 0.0
    %1335 = vmatpush1.msra.mxu0 0.0
    %1336 = vmatprep.subr.mxu0 0.0
    %1337 = vmatpush1.msra.mxu0 0.0
    %1338 = vmatprep.subr.mxu0 0.0
    %1339 = vmatpush1.msra.mxu0 0.0
    %1340 = vmatprep.subr.mxu0 0.0
    %1341 = vmatpush1.msra.mxu0 0.0
    %1342 = vmatprep.subr.mxu0 0.0
    %1343 = vmatpush1.msra.mxu0 0.0
    %1344 = vmatprep.subr.mxu0 0.0
    %1345 = vmatpush1.msra.mxu0 0.0
    %1346 = vmatprep.subr.mxu0 0.0
    %1347 = vmatpush1.msra.mxu0 0.0
    %1348 = vmatprep.subr.mxu0 0.0
    %1349 = vmatpush1.msra.mxu0 0.0
    %1350 = vmatprep.subr.mxu0 0.0
    %1351 = vmatpush1.msra.mxu0 0.0
    %1352 = vmatprep.subr.mxu0 0.0
    %1353 = vmatpush1.msra.mxu0 0.0
    %1354 = vmatprep.subr.mxu0 0.0
    %1355 = vmatpush1.msra.mxu0 0.0
    %1356 = vmatprep.subr.mxu0 0.0
    %1357 = vmatpush1.msra.mxu0 0.0
    %1358 = vmatprep.subr.mxu0 0.0
    %1359 = vmatpush1.msra.mxu0 0.0
    %1360 = vmatprep.subr.mxu0 0.0
    %1361 = vmatpush1.msra.mxu0 0.0
    %1362 = vmatprep.subr.mxu0 0.0
    %1363 = vmatpush1.msra.mxu0 0.0
    %1364 = vmatprep.mubr.f32.mxu0 0.0
    %1365 = vmatmul.mubr.f32.gmra.mrb[0].mxu0 %v1298
    %v1366 = vpop.f32.mrb[0].mxu0
    %v1367 = vadd.f32 %v781, %v1366
    %v1368 = vpop.f32.mrb[0].mxu0
    %1369 = vdwg.mxu0
    %v1370 = vmax.f32 %v1367, 0.0
    %v1372 = vsel %vm294, %v1370, 0
    %1374 = vmatprep.subr.mxu0 0.0
    %1375 = vmatpush1.msra.mxu0 %v680
    %1376 = vmatprep.subr.mxu0 0.0
    %1377 = vmatpush1.msra.mxu0 %v681
    %1378 = vmatprep.subr.mxu0 0.0
    %1379 = vmatpush1.msra.mxu0 %v682
    %1380 = vmatprep.subr.mxu0 0.0
    %1381 = vmatpush1.msra.mxu0 %v683
    %1382 = vmatprep.subr.mxu0 0.0
    %1383 = vmatpush1.msra.mxu0 0.0
    %1384 = vmatprep.subr.mxu0 0.0
    %1385 = vmatpush1.msra.mxu0 0.0
    %1386 = vmatprep.subr.mxu0 0.0
    %1387 = vmatpush1.msra.mxu0 0.0
    %1388 = vmatprep.subr.mxu0 0.0
    %1389 = vmatpush1.msra.mxu0 0.0
    %1390 = vmatprep.subr.mxu0 0.0
    %1391 = vmatpush1.msra.mxu0 0.0
    %1392 = vmatprep.subr.mxu0 0.0
    %1393 = vmatpush1.msra.mxu0 0.0
    %1394 = vmatprep.subr.mxu0 0.0
    %1395 = vmatpush1.msra.mxu0 0.0
    %1396 = vmatprep.subr.mxu0 0.0
    %1397 = vmatpush1.msra.mxu0 0.0
    %1398 = vmatprep.subr.mxu0 0.0
    %1399 = vmatpush1.msra.mxu0 0.0
    %1400 = vmatprep.subr.mxu0 0.0
    %1401 = vmatpush1.msra.mxu0 0.0
    %1402 = vmatprep.subr.mxu0 0.0
    %1403 = vmatpush1.msra.mxu0 0.0
    %1404 = vmatprep.subr.mxu0 0.0
    %1405 = vmatpush1.msra.mxu0 0.0
    %1406 = vmatprep.subr.mxu0 0.0
    %1407 = vmatpush1.msra.mxu0 0.0
    %1408 = vmatprep.subr.mxu0 0.0
    %1409 = vmatpush1.msra.mxu0 0.0
    %1410 = vmatprep.subr.mxu0 0.0
    %1411 = vmatpush1.msra.mxu0 0.0
    %1412 = vmatprep.subr.mxu0 0.0
    %1413 = vmatpush1.msra.mxu0 0.0
    %1414 = vmatprep.subr.mxu0 0.0
    %1415 = vmatpush1.msra.mxu0 0.0
    %1416 = vmatprep.subr.mxu0 0.0
    %1417 = vmatpush1.msra.mxu0 0.0
    %1418 = vmatprep.subr.mxu0 0.0
    %1419 = vmatpush1.msra.mxu0 0.0
    %1420 = vmatprep.subr.mxu0 0.0
    %1421 = vmatpush1.msra.mxu0 0.0
    %1422 = vmatprep.subr.mxu0 0.0
    %1423 = vmatpush1.msra.mxu0 0.0
    %1424 = vmatprep.subr.mxu0 0.0
    %1425 = vmatpush1.msra.mxu0 0.0
    %1426 = vmatprep.subr.mxu0 0.0
    %1427 = vmatpush1.msra.mxu0 0.0
    %1428 = vmatprep.subr.mxu0 0.0
    %1429 = vmatpush1.msra.mxu0 0.0
    %1430 = vmatprep.subr.mxu0 0.0
    %1431 = vmatpush1.msra.mxu0 0.0
    %1432 = vmatprep.subr.mxu0 0.0
    %1433 = vmatpush1.msra.mxu0 0.0
    %1434 = vmatprep.subr.mxu0 0.0
    %1435 = vmatpush1.msra.mxu0 0.0
    %1436 = vmatprep.subr.mxu0 0.0
    %1437 = vmatpush1.msra.mxu0 0.0
    %1438 = vmatprep.mubr.f32.mxu0 0.0
    %1439 = vmatmul.mubr.f32.gmra.mrb[0].mxu0 %v1372
    %v1440 = vpop.f32.mrb[0].mxu0
    %v1441 = vadd.f32 %v861, %v1440
    %v1442 = vpop.f32.mrb[0].mxu0
    %1443 = vdwg.mxu0
    %v1444 = vmax.f32 %v1441, 0.0
    %vm1445 = vcmp.ne.f32.partialorder %v1441, %v1441
    %v1446 = vadd.f32 %v1441, 0.0
    %v1447 = vand.u32 2147483647, %v1441
    %v1448 = vsub.f32 0.0, %v1447
    %v1449 = vmul.f32 %v1448, 1.442695
    %v1450 = vpow.pop %v1449
    %v1451 = vadd.f32 %v1450, 1.0
    %v1452 = vlog2.pop %v1451
    %v1453 = vmul.f32 %v1452, 0.6931472
    %v1454 = vmul.f32 -0.5, %v1450
    %v1455 = vadd.f32 %v1454, 1.0
    %v1456 = vmul.f32 %v1455, %v1450
    %v1457 = vand.u32 2147483647, %v1450
    %vm1458 = vcmp.lt.f32.partialorder %v1457, 0.0004427343
    %v1459 = vsel %vm1458, %v1456, %v1453
    %v1460 = vadd.f32 %v1444, %v1459
    %v1461 = vsel %vm1445, %v1446, %v1460
    %v1462 = vadd.f32 %v1461, 1e-05
    %1464 = vrot.lane.b32.xlu0 %v666, 16
    %v1465 = vpop.permute.xlu0 %1464
    %v1467 = vmul.f32 %v1462, %v1465
    %1469 = vrot.lane.b32.xlu0 %v1467, 112
    %v1470 = vpop.permute.xlu0 %1469
    %v1472 = vadd.f32 %v1441, %v1470
    %1474 = vrot.lane.b32.xlu0 %v1472, 32
    %v1475 = vpop.permute.xlu0 %1474
    %1477 = vrot.lane.b32.xlu0 %v1219, 48
    %v1478 = vpop.permute.xlu0 %1477
    %v1480 = vsel %vm163, %v1441, %v1462
    %v1481 = vsel %vm294, %v1480, %v1475
    %v1482 = vsel %vm974, %v1481, %v1478
    %1483 = vst.msk [vmem:[%s69 + $0x8] sm:$0xff] %vm976, %v1482
    %v1484 = vsel %vm163, %v1472, 0
    %1486 = vmatprep.subr.mxu0 0.0
    %1487 = vmatpush1.msra.mxu0 %v685
    %1488 = vmatprep.subr.mxu0 0.0
    %1489 = vmatpush1.msra.mxu0 %v686
    %1490 = vmatprep.subr.mxu0 0.0
    %1491 = vmatpush1.msra.mxu0 0.0
    %1492 = vmatprep.subr.mxu0 0.0
    %1493 = vmatpush1.msra.mxu0 0.0
    %1494 = vmatprep.subr.mxu0 0.0
    %1495 = vmatpush1.msra.mxu0 0.0
    %1496 = vmatprep.subr.mxu0 0.0
    %1497 = vmatpush1.msra.mxu0 0.0
    %1498 = vmatprep.subr.mxu0 0.0
    %1499 = vmatpush1.msra.mxu0 0.0
    %1500 = vmatprep.subr.mxu0 0.0
    %1501 = vmatpush1.msra.mxu0 0.0
    %1502 = vmatprep.subr.mxu0 0.0
    %1503 = vmatpush1.msra.mxu0 0.0
    %1504 = vmatprep.subr.mxu0 0.0
    %1505 = vmatpush1.msra.mxu0 0.0
    %1506 = vmatprep.subr.mxu0 0.0
    %1507 = vmatpush1.msra.mxu0 0.0
    %1508 = vmatprep.subr.mxu0 0.0
    %1509 = vmatpush1.msra.mxu0 0.0
    %1510 = vmatprep.subr.mxu0 0.0
    %1511 = vmatpush1.msra.mxu0 0.0
    %1512 = vmatprep.subr.mxu0 0.0
    %1513 = vmatpush1.msra.mxu0 0.0
    %1514 = vmatprep.subr.mxu0 0.0
    %1515 = vmatpush1.msra.mxu0 0.0
    %1516 = vmatprep.subr.mxu0 0.0
    %1517 = vmatpush1.msra.mxu0 0.0
    %1518 = vmatprep.subr.mxu0 0.0
    %1519 = vmatpush1.msra.mxu0 0.0
    %1520 = vmatprep.subr.mxu0 0.0
    %1521 = vmatpush1.msra.mxu0 0.0
    %1522 = vmatprep.subr.mxu0 0.0
    %1523 = vmatpush1.msra.mxu0 0.0
    %1524 = vmatprep.subr.mxu0 0.0
    %1525 = vmatpush1.msra.mxu0 0.0
    %1526 = vmatprep.subr.mxu0 0.0
    %1527 = vmatpush1.msra.mxu0 0.0
    %1528 = vmatprep.subr.mxu0 0.0
    %1529 = vmatpush1.msra.mxu0 0.0
    %1530 = vmatprep.subr.mxu0 0.0
    %1531 = vmatpush1.msra.mxu0 0.0
    %1532 = vmatprep.subr.mxu0 0.0
    %1533 = vmatpush1.msra.mxu0 0.0
    %1534 = vmatprep.subr.mxu0 0.0
    %1535 = vmatpush1.msra.mxu0 0.0
    %1536 = vmatprep.subr.mxu0 0.0
    %1537 = vmatpush1.msra.mxu0 0.0
    %1538 = vmatprep.subr.mxu0 0.0
    %1539 = vmatpush1.msra.mxu0 0.0
    %1540 = vmatprep.subr.mxu0 0.0
    %1541 = vmatpush1.msra.mxu0 0.0
    %1542 = vmatprep.subr.mxu0 0.0
    %1543 = vmatpush1.msra.mxu0 0.0
    %1544 = vmatprep.subr.mxu0 0.0
    %1545 = vmatpush1.msra.mxu0 0.0
    %1546 = vmatprep.subr.mxu0 0.0
    %1547 = vmatpush1.msra.mxu0 0.0
    %1548 = vmatprep.subr.mxu0 0.0
    %1549 = vmatpush1.msra.mxu0 0.0
    %1550 = vmatprep.mubr.f32.mxu0 0.0
    %1551 = vmatmul.mubr.f32.gmra.mrb[0].mxu0 %v1484
    %v1552 = vpop.f32.mrb[0].mxu0
    %v1553 = vadd.f32 0.0, %v1552
    %v1554 = vpop.f32.mrb[0].mxu0
    %1555 = vdwg.mxu0
    %1557 = vrot.lane.b32.xlu0 %v1553, 32
    %v1558 = vpop.permute.xlu0 %1557
    %v1560 = vadd.f32 %v1292, %v1558
    %1562 = vrot.lane.b32.xlu0 %v643, 32
    %v1563 = vpop.permute.xlu0 %1562
    %v1565 = vadd.f32 %v1560, %v1563
    %v1566 = vmax.f32 %v1565, 0.0
    %1568 = vrot.lane.b32.xlu0 %v1566, 96
    %v1569 = vpop.permute.xlu0 %1568
    %v1570 = vsel %vm294, %v1569, 0
    %1572 = vmatprep.subr.mxu0 0.0
    %1573 = vmatpush1.msra.mxu0 %v687
    %1574 = vmatprep.subr.mxu0 0.0
    %1575 = vmatpush1.msra.mxu0 %v688
    %1576 = vmatprep.subr.mxu0 0.0
    %1577 = vmatpush1.msra.mxu0 %v689
    %1578 = vmatprep.subr.mxu0 0.0
    %1579 = vmatpush1.msra.mxu0 %v690
    %1580 = vmatprep.subr.mxu0 0.0
    %1581 = vmatpush1.msra.mxu0 0.0
    %1582 = vmatprep.subr.mxu0 0.0
    %1583 = vmatpush1.msra.mxu0 0.0
    %1584 = vmatprep.subr.mxu0 0.0
    %1585 = vmatpush1.msra.mxu0 0.0
    %1586 = vmatprep.subr.mxu0 0.0
    %1587 = vmatpush1.msra.mxu0 0.0
    %1588 = vmatprep.subr.mxu0 0.0
    %1589 = vmatpush1.msra.mxu0 0.0
    %1590 = vmatprep.subr.mxu0 0.0
    %1591 = vmatpush1.msra.mxu0 0.0
    %1592 = vmatprep.subr.mxu0 0.0
    %1593 = vmatpush1.msra.mxu0 0.0
    %1594 = vmatprep.subr.mxu0 0.0
    %1595 = vmatpush1.msra.mxu0 0.0
    %1596 = vmatprep.subr.mxu0 0.0
    %1597 = vmatpush1.msra.mxu0 0.0
    %1598 = vmatprep.subr.mxu0 0.0
    %1599 = vmatpush1.msra.mxu0 0.0
    %1600 = vmatprep.subr.mxu0 0.0
    %1601 = vmatpush1.msra.mxu0 0.0
    %1602 = vmatprep.subr.mxu0 0.0
    %1603 = vmatpush1.msra.mxu0 0.0
    %1604 = vmatprep.subr.mxu0 0.0
    %1605 = vmatpush1.msra.mxu0 0.0
    %1606 = vmatprep.subr.mxu0 0.0
    %1607 = vmatpush1.msra.mxu0 0.0
    %1608 = vmatprep.subr.mxu0 0.0
    %1609 = vmatpush1.msra.mxu0 0.0
    %1610 = vmatprep.subr.mxu0 0.0
    %1611 = vmatpush1.msra.mxu0 0.0
    %1612 = vmatprep.subr.mxu0 0.0
    %1613 = vmatpush1.msra.mxu0 0.0
    %1614 = vmatprep.subr.mxu0 0.0
    %1615 = vmatpush1.msra.mxu0 0.0
    %1616 = vmatprep.subr.mxu0 0.0
    %1617 = vmatpush1.msra.mxu0 0.0
    %1618 = vmatprep.subr.mxu0 0.0
    %1619 = vmatpush1.msra.mxu0 0.0
    %1620 = vmatprep.subr.mxu0 0.0
    %1621 = vmatpush1.msra.mxu0 0.0
    %1622 = vmatprep.subr.mxu0 0.0
    %1623 = vmatpush1.msra.mxu0 0.0
    %1624 = vmatprep.subr.mxu0 0.0
    %1625 = vmatpush1.msra.mxu0 0.0
    %1626 = vmatprep.subr.mxu0 0.0
    %1627 = vmatpush1.msra.mxu0 0.0
    %1628 = vmatprep.subr.mxu0 0.0
    %1629 = vmatpush1.msra.mxu0 0.0
    %1630 = vmatprep.subr.mxu0 0.0
    %1631 = vmatpush1.msra.mxu0 0.0
    %1632 = vmatprep.subr.mxu0 0.0
    %1633 = vmatpush1.msra.mxu0 0.0
    %1634 = vmatprep.subr.mxu0 0.0
    %1635 = vmatpush1.msra.mxu0 0.0
    %1636 = vmatprep.mubr.f32.mxu0 0.0
    %1637 = vmatmul.mubr.f32.gmra.mrb[0].mxu0 %v1570
    %v1638 = vpop.f32.mrb[0].mxu0
    %v1639 = vadd.f32 %v1065, %v1638
    %v1640 = vpop.f32.mrb[0].mxu0
    %1641 = vdwg.mxu0
    %v1642 = vmax.f32 %v1639, 0.0
    %v1644 = vsel %vm294, %v1642, 0
    %1646 = vmatprep.subr.mxu0 0.0
    %1647 = vmatpush1.msra.mxu0 %v692
    %1648 = vmatprep.subr.mxu0 0.0
    %1649 = vmatpush1.msra.mxu0 %v693
    %1650 = vmatprep.subr.mxu0 0.0
    %1651 = vmatpush1.msra.mxu0 %v694
    %1652 = vmatprep.subr.mxu0 0.0
    %1653 = vmatpush1.msra.mxu0 %v695
    %1654 = vmatprep.subr.mxu0 0.0
    %1655 = vmatpush1.msra.mxu0 0.0
    %1656 = vmatprep.subr.mxu0 0.0
    %1657 = vmatpush1.msra.mxu0 0.0
    %1658 = vmatprep.subr.mxu0 0.0
    %1659 = vmatpush1.msra.mxu0 0.0
    %1660 = vmatprep.subr.mxu0 0.0
    %1661 = vmatpush1.msra.mxu0 0.0
    %1662 = vmatprep.subr.mxu0 0.0
    %1663 = vmatpush1.msra.mxu0 0.0
    %1664 = vmatprep.subr.mxu0 0.0
    %1665 = vmatpush1.msra.mxu0 0.0
    %1666 = vmatprep.subr.mxu0 0.0
    %1667 = vmatpush1.msra.mxu0 0.0
    %1668 = vmatprep.subr.mxu0 0.0
    %1669 = vmatpush1.msra.mxu0 0.0
    %1670 = vmatprep.subr.mxu0 0.0
    %1671 = vmatpush1.msra.mxu0 0.0
    %1672 = vmatprep.subr.mxu0 0.0
    %1673 = vmatpush1.msra.mxu0 0.0
    %1674 = vmatprep.subr.mxu0 0.0
    %1675 = vmatpush1.msra.mxu0 0.0
    %1676 = vmatprep.subr.mxu0 0.0
    %1677 = vmatpush1.msra.mxu0 0.0
    %1678 = vmatprep.subr.mxu0 0.0
    %1679 = vmatpush1.msra.mxu0 0.0
    %1680 = vmatprep.subr.mxu0 0.0
    %1681 = vmatpush1.msra.mxu0 0.0
    %1682 = vmatprep.subr.mxu0 0.0
    %1683 = vmatpush1.msra.mxu0 0.0
    %1684 = vmatprep.subr.mxu0 0.0
    %1685 = vmatpush1.msra.mxu0 0.0
    %1686 = vmatprep.subr.mxu0 0.0
    %1687 = vmatpush1.msra.mxu0 0.0
    %1688 = vmatprep.subr.mxu0 0.0
    %1689 = vmatpush1.msra.mxu0 0.0
    %1690 = vmatprep.subr.mxu0 0.0
    %1691 = vmatpush1.msra.mxu0 0.0
    %1692 = vmatprep.subr.mxu0 0.0
    %1693 = vmatpush1.msra.mxu0 0.0
    %1694 = vmatprep.subr.mxu0 0.0
    %1695 = vmatpush1.msra.mxu0 0.0
    %1696 = vmatprep.subr.mxu0 0.0
    %1697 = vmatpush1.msra.mxu0 0.0
    %1698 = vmatprep.subr.mxu0 0.0
    %1699 = vmatpush1.msra.mxu0 0.0
    %1700 = vmatprep.subr.mxu0 0.0
    %1701 = vmatpush1.msra.mxu0 0.0
    %1702 = vmatprep.subr.mxu0 0.0
    %1703 = vmatpush1.msra.mxu0 0.0
    %1704 = vmatprep.subr.mxu0 0.0
    %1705 = vmatpush1.msra.mxu0 0.0
    %1706 = vmatprep.subr.mxu0 0.0
    %1707 = vmatpush1.msra.mxu0 0.0
    %1708 = vmatprep.subr.mxu0 0.0
    %1709 = vmatpush1.msra.mxu0 0.0
    %1710 = vmatprep.mubr.f32.mxu0 0.0
    %1711 = vmatmul.mubr.f32.gmra.mrb[0].mxu0 %v1644
    %v1712 = vpop.f32.mrb[0].mxu0
    %v1713 = vadd.f32 %v1147, %v1712
    %v1714 = vpop.f32.mrb[0].mxu0
    %1715 = vdwg.mxu0
    %v1717 = vsel %vm294, %v1713, 0
    %1719 = vmatprep.subr.mxu0 0.0
    %1720 = vmatpush1.msra.mxu0 %v671
    %1721 = vmatprep.subr.mxu0 0.0
    %1722 = vmatpush1.msra.mxu0 %v672
    %1723 = vmatprep.subr.mxu0 0.0
    %1724 = vmatpush1.msra.mxu0 %v673
    %1725 = vmatprep.subr.mxu0 0.0
    %1726 = vmatpush1.msra.mxu0 %v674
    %1727 = vmatprep.subr.mxu0 0.0
    %1728 = vmatpush1.msra.mxu0 0.0
    %1729 = vmatprep.subr.mxu0 0.0
    %1730 = vmatpush1.msra.mxu0 0.0
    %1731 = vmatprep.subr.mxu0 0.0
    %1732 = vmatpush1.msra.mxu0 0.0
    %1733 = vmatprep.subr.mxu0 0.0
    %1734 = vmatpush1.msra.mxu0 0.0
    %1735 = vmatprep.subr.mxu0 0.0
    %1736 = vmatpush1.msra.mxu0 0.0
    %1737 = vmatprep.subr.mxu0 0.0
    %1738 = vmatpush1.msra.mxu0 0.0
    %1739 = vmatprep.subr.mxu0 0.0
    %1740 = vmatpush1.msra.mxu0 0.0
    %1741 = vmatprep.subr.mxu0 0.0
    %1742 = vmatpush1.msra.mxu0 0.0
    %1743 = vmatprep.subr.mxu0 0.0
    %1744 = vmatpush1.msra.mxu0 0.0
    %1745 = vmatprep.subr.mxu0 0.0
    %1746 = vmatpush1.msra.mxu0 0.0
    %1747 = vmatprep.subr.mxu0 0.0
    %1748 = vmatpush1.msra.mxu0 0.0
    %1749 = vmatprep.subr.mxu0 0.0
    %1750 = vmatpush1.msra.mxu0 0.0
    %1751 = vmatprep.subr.mxu0 0.0
    %1752 = vmatpush1.msra.mxu0 0.0
    %1753 = vmatprep.subr.mxu0 0.0
    %1754 = vmatpush1.msra.mxu0 0.0
    %1755 = vmatprep.subr.mxu0 0.0
    %1756 = vmatpush1.msra.mxu0 0.0
    %1757 = vmatprep.subr.mxu0 0.0
    %1758 = vmatpush1.msra.mxu0 0.0
    %1759 = vmatprep.subr.mxu0 0.0
    %1760 = vmatpush1.msra.mxu0 0.0
    %1761 = vmatprep.subr.mxu0 0.0
    %1762 = vmatpush1.msra.mxu0 0.0
    %1763 = vmatprep.subr.mxu0 0.0
    %1764 = vmatpush1.msra.mxu0 0.0
    %1765 = vmatprep.subr.mxu0 0.0
    %1766 = vmatpush1.msra.mxu0 0.0
    %1767 = vmatprep.subr.mxu0 0.0
    %1768 = vmatpush1.msra.mxu0 0.0
    %1769 = vmatprep.subr.mxu0 0.0
    %1770 = vmatpush1.msra.mxu0 0.0
    %1771 = vmatprep.subr.mxu0 0.0
    %1772 = vmatpush1.msra.mxu0 0.0
    %1773 = vmatprep.subr.mxu0 0.0
    %1774 = vmatpush1.msra.mxu0 0.0
    %1775 = vmatprep.subr.mxu0 0.0
    %1776 = vmatpush1.msra.mxu0 0.0
    %1777 = vmatprep.subr.mxu0 0.0
    %1778 = vmatpush1.msra.mxu0 0.0
    %1779 = vmatprep.subr.mxu0 0.0
    %1780 = vmatpush1.msra.mxu0 0.0
    %1781 = vmatprep.subr.mxu0 0.0
    %1782 = vmatpush1.msra.mxu0 0.0
    %1783 = vmatprep.mubr.f32.mxu0 0.0
    %1784 = vmatmul.mubr.f32.gmra.mrb[0].mxu0 %v1717
    %v1785 = vpop.f32.mrb[0].mxu0
    %v1786 = vadd.f32 0.0, %v1785
    %v1787 = vpop.f32.mrb[0].mxu0
    %1788 = vdwg.mxu0
    %v1789 = vadd.f32 %v520, %v1786
    %v1790 = vmax.f32 %v1789, 0.0
    %v1792 = vsel %vm294, %v1790, 0
    %1794 = vmatprep.subr.mxu0 0.0
    %1795 = vmatpush1.msra.mxu0 %v675
    %1796 = vmatprep.subr.mxu0 0.0
    %1797 = vmatpush1.msra.mxu0 %v676
    %1798 = vmatprep.subr.mxu0 0.0
    %1799 = vmatpush1.msra.mxu0 %v677
    %1800 = vmatprep.subr.mxu0 0.0
    %1801 = vmatpush1.msra.mxu0 %v678
    %1802 = vmatprep.subr.mxu0 0.0
    %1803 = vmatpush1.msra.mxu0 0.0
    %1804 = vmatprep.subr.mxu0 0.0
    %1805 = vmatpush1.msra.mxu0 0.0
    %1806 = vmatprep.subr.mxu0 0.0
    %1807 = vmatpush1.msra.mxu0 0.0
    %1808 = vmatprep.subr.mxu0 0.0
    %1809 = vmatpush1.msra.mxu0 0.0
    %1810 = vmatprep.subr.mxu0 0.0
    %1811 = vmatpush1.msra.mxu0 0.0
    %1812 = vmatprep.subr.mxu0 0.0
    %1813 = vmatpush1.msra.mxu0 0.0
    %1814 = vmatprep.subr.mxu0 0.0
    %1815 = vmatpush1.msra.mxu0 0.0
    %1816 = vmatprep.subr.mxu0 0.0
    %1817 = vmatpush1.msra.mxu0 0.0
    %1818 = vmatprep.subr.mxu0 0.0
    %1819 = vmatpush1.msra.mxu0 0.0
    %1820 = vmatprep.subr.mxu0 0.0
    %1821 = vmatpush1.msra.mxu0 0.0
    %1822 = vmatprep.subr.mxu0 0.0
    %1823 = vmatpush1.msra.mxu0 0.0
    %1824 = vmatprep.subr.mxu0 0.0
    %1825 = vmatpush1.msra.mxu0 0.0
    %1826 = vmatprep.subr.mxu0 0.0
    %1827 = vmatpush1.msra.mxu0 0.0
    %1828 = vmatprep.subr.mxu0 0.0
    %1829 = vmatpush1.msra.mxu0 0.0
    %1830 = vmatprep.subr.mxu0 0.0
    %1831 = vmatpush1.msra.mxu0 0.0
    %1832 = vmatprep.subr.mxu0 0.0
    %1833 = vmatpush1.msra.mxu0 0.0
    %1834 = vmatprep.subr.mxu0 0.0
    %1835 = vmatpush1.msra.mxu0 0.0
    %1836 = vmatprep.subr.mxu0 0.0
    %1837 = vmatpush1.msra.mxu0 0.0
    %1838 = vmatprep.subr.mxu0 0.0
    %1839 = vmatpush1.msra.mxu0 0.0
    %1840 = vmatprep.subr.mxu0 0.0
    %1841 = vmatpush1.msra.mxu0 0.0
    %1842 = vmatprep.subr.mxu0 0.0
    %1843 = vmatpush1.msra.mxu0 0.0
    %1844 = vmatprep.subr.mxu0 0.0
    %1845 = vmatpush1.msra.mxu0 0.0
    %1846 = vmatprep.subr.mxu0 0.0
    %1847 = vmatpush1.msra.mxu0 0.0
    %1848 = vmatprep.subr.mxu0 0.0
    %1849 = vmatpush1.msra.mxu0 0.0
    %1850 = vmatprep.subr.mxu0 0.0
    %1851 = vmatpush1.msra.mxu0 0.0
    %1852 = vmatprep.subr.mxu0 0.0
    %1853 = vmatpush1.msra.mxu0 0.0
    %1854 = vmatprep.subr.mxu0 0.0
    %1855 = vmatpush1.msra.mxu0 0.0
    %1856 = vmatprep.subr.mxu0 0.0
    %1857 = vmatpush1.msra.mxu0 0.0
    %1858 = vmatprep.mubr.f32.mxu0 0.0
    %1859 = vmatmul.mubr.f32.gmra.mrb[0].mxu0 %v1792
    %v1860 = vpop.f32.mrb[0].mxu0
    %v1861 = vadd.f32 %v781, %v1860
    %v1862 = vpop.f32.mrb[0].mxu0
    %1863 = vdwg.mxu0
    %v1864 = vmax.f32 %v1861, 0.0
    %v1866 = vsel %vm294, %v1864, 0
    %1868 = vmatprep.subr.mxu0 0.0
    %1869 = vmatpush1.msra.mxu0 %v680
    %1870 = vmatprep.subr.mxu0 0.0
    %1871 = vmatpush1.msra.mxu0 %v681
    %1872 = vmatprep.subr.mxu0 0.0
    %1873 = vmatpush1.msra.mxu0 %v682
    %1874 = vmatprep.subr.mxu0 0.0
    %1875 = vmatpush1.msra.mxu0 %v683
    %1876 = vmatprep.subr.mxu0 0.0
    %1877 = vmatpush1.msra.mxu0 0.0
    %1878 = vmatprep.subr.mxu0 0.0
    %1879 = vmatpush1.msra.mxu0 0.0
    %1880 = vmatprep.subr.mxu0 0.0
    %1881 = vmatpush1.msra.mxu0 0.0
    %1882 = vmatprep.subr.mxu0 0.0
    %1883 = vmatpush1.msra.mxu0 0.0
    %1884 = vmatprep.subr.mxu0 0.0
    %1885 = vmatpush1.msra.mxu0 0.0
    %1886 = vmatprep.subr.mxu0 0.0
    %1887 = vmatpush1.msra.mxu0 0.0
    %1888 = vmatprep.subr.mxu0 0.0
    %1889 = vmatpush1.msra.mxu0 0.0
    %1890 = vmatprep.subr.mxu0 0.0
    %1891 = vmatpush1.msra.mxu0 0.0
    %1892 = vmatprep.subr.mxu0 0.0
    %1893 = vmatpush1.msra.mxu0 0.0
    %1894 = vmatprep.subr.mxu0 0.0
    %1895 = vmatpush1.msra.mxu0 0.0
    %1896 = vmatprep.subr.mxu0 0.0
    %1897 = vmatpush1.msra.mxu0 0.0
    %1898 = vmatprep.subr.mxu0 0.0
    %1899 = vmatpush1.msra.mxu0 0.0
    %1900 = vmatprep.subr.mxu0 0.0
    %1901 = vmatpush1.msra.mxu0 0.0
    %1902 = vmatprep.subr.mxu0 0.0
    %1903 = vmatpush1.msra.mxu0 0.0
    %1904 = vmatprep.subr.mxu0 0.0
    %1905 = vmatpush1.msra.mxu0 0.0
    %1906 = vmatprep.subr.mxu0 0.0
    %1907 = vmatpush1.msra.mxu0 0.0
    %1908 = vmatprep.subr.mxu0 0.0
    %1909 = vmatpush1.msra.mxu0 0.0
    %1910 = vmatprep.subr.mxu0 0.0
    %1911 = vmatpush1.msra.mxu0 0.0
    %1912 = vmatprep.subr.mxu0 0.0
    %1913 = vmatpush1.msra.mxu0 0.0
    %1914 = vmatprep.subr.mxu0 0.0
    %1915 = vmatpush1.msra.mxu0 0.0
    %1916 = vmatprep.subr.mxu0 0.0
    %1917 = vmatpush1.msra.mxu0 0.0
    %1918 = vmatprep.subr.mxu0 0.0
    %1919 = vmatpush1.msra.mxu0 0.0
    %1920 = vmatprep.subr.mxu0 0.0
    %1921 = vmatpush1.msra.mxu0 0.0
    %1922 = vmatprep.subr.mxu0 0.0
    %1923 = vmatpush1.msra.mxu0 0.0
    %1924 = vmatprep.subr.mxu0 0.0
    %1925 = vmatpush1.msra.mxu0 0.0
    %1926 = vmatprep.subr.mxu0 0.0
    %1927 = vmatpush1.msra.mxu0 0.0
    %1928 = vmatprep.subr.mxu0 0.0
    %1929 = vmatpush1.msra.mxu0 0.0
    %1930 = vmatprep.subr.mxu0 0.0
    %1931 = vmatpush1.msra.mxu0 0.0
    %1932 = vmatprep.mubr.f32.mxu0 0.0
    %1933 = vmatmul.mubr.f32.gmra.mrb[0].mxu0 %v1866
    %v1934 = vpop.f32.mrb[0].mxu0
    %v1935 = vadd.f32 %v861, %v1934
    %v1936 = vpop.f32.mrb[0].mxu0
    %1937 = vdwg.mxu0
    %v1938 = vmax.f32 %v1935, 0.0
    %vm1939 = vcmp.ne.f32.partialorder %v1935, %v1935
    %v1940 = vadd.f32 %v1935, 0.0
    %v1941 = vand.u32 2147483647, %v1935
    %v1942 = vsub.f32 0.0, %v1941
    %v1943 = vmul.f32 %v1942, 1.442695
    %v1944 = vpow.pop %v1943
    %v1945 = vadd.f32 %v1944, 1.0
    %v1946 = vlog2.pop %v1945
    %v1947 = vmul.f32 %v1946, 0.6931472
    %v1948 = vmul.f32 -0.5, %v1944
    %v1949 = vadd.f32 %v1948, 1.0
    %v1950 = vmul.f32 %v1949, %v1944
    %v1951 = vand.u32 2147483647, %v1944
    %vm1952 = vcmp.lt.f32.partialorder %v1951, 0.0004427343
    %v1953 = vsel %vm1952, %v1950, %v1947
    %v1954 = vadd.f32 %v1938, %v1953
    %v1955 = vsel %vm1939, %v1940, %v1954
    %v1956 = vadd.f32 %v1955, 1e-05
    %1958 = vrot.lane.b32.xlu0 %v667, 16
    %v1959 = vpop.permute.xlu0 %1958
    %v1961 = vmul.f32 %v1956, %v1959
    %1963 = vrot.lane.b32.xlu0 %v1961, 112
    %v1964 = vpop.permute.xlu0 %1963
    %v1966 = vadd.f32 %v1935, %v1964
    %1968 = vrot.lane.b32.xlu0 %v1966, 32
    %v1969 = vpop.permute.xlu0 %1968
    %1971 = vrot.lane.b32.xlu0 %v1713, 48
    %v1972 = vpop.permute.xlu0 %1971
    %v1974 = vsel %vm163, %v1935, %v1956
    %v1975 = vsel %vm294, %v1974, %v1969
    %v1976 = vsel %vm974, %v1975, %v1972
    %1977 = vst.msk [vmem:[%s69 + $0x10] sm:$0xff] %vm976, %v1976
    %v1978 = vsel %vm163, %v1966, 0
    %1980 = vmatprep.subr.mxu0 0.0
    %1981 = vmatpush1.msra.mxu0 %v685
    %1982 = vmatprep.subr.mxu0 0.0
    %1983 = vmatpush1.msra.mxu0 %v686
    %1984 = vmatprep.subr.mxu0 0.0
    %1985 = vmatpush1.msra.mxu0 0.0
    %1986 = vmatprep.subr.mxu0 0.0
    %1987 = vmatpush1.msra.mxu0 0.0
    %1988 = vmatprep.subr.mxu0 0.0
    %1989 = vmatpush1.msra.mxu0 0.0
    %1990 = vmatprep.subr.mxu0 0.0
    %1991 = vmatpush1.msra.mxu0 0.0
    %1992 = vmatprep.subr.mxu0 0.0
    %1993 = vmatpush1.msra.mxu0 0.0
    %1994 = vmatprep.subr.mxu0 0.0
    %1995 = vmatpush1.msra.mxu0 0.0
    %1996 = vmatprep.subr.mxu0 0.0
    %1997 = vmatpush1.msra.mxu0 0.0
    %1998 = vmatprep.subr.mxu0 0.0
    %1999 = vmatpush1.msra.mxu0 0.0
    %2000 = vmatprep.subr.mxu0 0.0
    %2001 = vmatpush1.msra.mxu0 0.0
    %2002 = vmatprep.subr.mxu0 0.0
    %2003 = vmatpush1.msra.mxu0 0.0
    %2004 = vmatprep.subr.mxu0 0.0
    %2005 = vmatpush1.msra.mxu0 0.0
    %2006 = vmatprep.subr.mxu0 0.0
    %2007 = vmatpush1.msra.mxu0 0.0
    %2008 = vmatprep.subr.mxu0 0.0
    %2009 = vmatpush1.msra.mxu0 0.0
    %2010 = vmatprep.subr.mxu0 0.0
    %2011 = vmatpush1.msra.mxu0 0.0
    %2012 = vmatprep.subr.mxu0 0.0
    %2013 = vmatpush1.msra.mxu0 0.0
    %2014 = vmatprep.subr.mxu0 0.0
    %2015 = vmatpush1.msra.mxu0 0.0
    %2016 = vmatprep.subr.mxu0 0.0
    %2017 = vmatpush1.msra.mxu0 0.0
    %2018 = vmatprep.subr.mxu0 0.0
    %2019 = vmatpush1.msra.mxu0 0.0
    %2020 = vmatprep.subr.mxu0 0.0
    %2021 = vmatpush1.msra.mxu0 0.0
    %2022 = vmatprep.subr.mxu0 0.0
    %2023 = vmatpush1.msra.mxu0 0.0
    %2024 = vmatprep.subr.mxu0 0.0
    %2025 = vmatpush1.msra.mxu0 0.0
    %2026 = vmatprep.subr.mxu0 0.0
    %2027 = vmatpush1.msra.mxu0 0.0
    %2028 = vmatprep.subr.mxu0 0.0
    %2029 = vmatpush1.msra.mxu0 0.0
    %2030 = vmatprep.subr.mxu0 0.0
    %2031 = vmatpush1.msra.mxu0 0.0
    %2032 = vmatprep.subr.mxu0 0.0
    %2033 = vmatpush1.msra.mxu0 0.0
    %2034 = vmatprep.subr.mxu0 0.0
    %2035 = vmatpush1.msra.mxu0 0.0
    %2036 = vmatprep.subr.mxu0 0.0
    %2037 = vmatpush1.msra.mxu0 0.0
    %2038 = vmatprep.subr.mxu0 0.0
    %2039 = vmatpush1.msra.mxu0 0.0
    %2040 = vmatprep.subr.mxu0 0.0
    %2041 = vmatpush1.msra.mxu0 0.0
    %2042 = vmatprep.subr.mxu0 0.0
    %2043 = vmatpush1.msra.mxu0 0.0
    %2044 = vmatprep.mubr.f32.mxu0 0.0
    %2045 = vmatmul.mubr.f32.gmra.mrb[0].mxu0 %v1978
    %v2046 = vpop.f32.mrb[0].mxu0
    %v2047 = vadd.f32 0.0, %v2046
    %v2048 = vpop.f32.mrb[0].mxu0
    %2049 = vdwg.mxu0
    %2051 = vrot.lane.b32.xlu0 %v2047, 32
    %v2052 = vpop.permute.xlu0 %2051
    %v2054 = vadd.f32 %v1786, %v2052
    %2056 = vrot.lane.b32.xlu0 %v648, 32
    %v2057 = vpop.permute.xlu0 %2056
    %v2059 = vadd.f32 %v2054, %v2057
    %v2060 = vmax.f32 %v2059, 0.0
    %2062 = vrot.lane.b32.xlu0 %v2060, 96
    %v2063 = vpop.permute.xlu0 %2062
    %v2064 = vsel %vm294, %v2063, 0
    %2066 = vmatprep.subr.mxu0 0.0
    %2067 = vmatpush1.msra.mxu0 %v687
    %2068 = vmatprep.subr.mxu0 0.0
    %2069 = vmatpush1.msra.mxu0 %v688
    %2070 = vmatprep.subr.mxu0 0.0
    %2071 = vmatpush1.msra.mxu0 %v689
    %2072 = vmatprep.subr.mxu0 0.0
    %2073 = vmatpush1.msra.mxu0 %v690
    %2074 = vmatprep.subr.mxu0 0.0
    %2075 = vmatpush1.msra.mxu0 0.0
    %2076 = vmatprep.subr.mxu0 0.0
    %2077 = vmatpush1.msra.mxu0 0.0
    %2078 = vmatprep.subr.mxu0 0.0
    %2079 = vmatpush1.msra.mxu0 0.0
    %2080 = vmatprep.subr.mxu0 0.0
    %2081 = vmatpush1.msra.mxu0 0.0
    %2082 = vmatprep.subr.mxu0 0.0
    %2083 = vmatpush1.msra.mxu0 0.0
    %2084 = vmatprep.subr.mxu0 0.0
    %2085 = vmatpush1.msra.mxu0 0.0
    %2086 = vmatprep.subr.mxu0 0.0
    %2087 = vmatpush1.msra.mxu0 0.0
    %2088 = vmatprep.subr.mxu0 0.0
    %2089 = vmatpush1.msra.mxu0 0.0
    %2090 = vmatprep.subr.mxu0 0.0
    %2091 = vmatpush1.msra.mxu0 0.0
    %2092 = vmatprep.subr.mxu0 0.0
    %2093 = vmatpush1.msra.mxu0 0.0
    %2094 = vmatprep.subr.mxu0 0.0
    %2095 = vmatpush1.msra.mxu0 0.0
    %2096 = vmatprep.subr.mxu0 0.0
    %2097 = vmatpush1.msra.mxu0 0.0
    %2098 = vmatprep.subr.mxu0 0.0
    %2099 = vmatpush1.msra.mxu0 0.0
    %2100 = vmatprep.subr.mxu0 0.0
    %2101 = vmatpush1.msra.mxu0 0.0
    %2102 = vmatprep.subr.mxu0 0.0
    %2103 = vmatpush1.msra.mxu0 0.0
    %2104 = vmatprep.subr.mxu0 0.0
    %2105 = vmatpush1.msra.mxu0 0.0
    %2106 = vmatprep.subr.mxu0 0.0
    %2107 = vmatpush1.msra.mxu0 0.0
    %2108 = vmatprep.subr.mxu0 0.0
    %2109 = vmatpush1.msra.mxu0 0.0
    %2110 = vmatprep.subr.mxu0 0.0
    %2111 = vmatpush1.msra.mxu0 0.0
    %2112 = vmatprep.subr.mxu0 0.0
    %2113 = vmatpush1.msra.mxu0 0.0
    %2114 = vmatprep.subr.mxu0 0.0
    %2115 = vmatpush1.msra.mxu0 0.0
    %2116 = vmatprep.subr.mxu0 0.0
    %2117 = vmatpush1.msra.mxu0 0.0
    %2118 = vmatprep.subr.mxu0 0.0
    %2119 = vmatpush1.msra.mxu0 0.0
    %2120 = vmatprep.subr.mxu0 0.0
    %2121 = vmatpush1.msra.mxu0 0.0
    %2122 = vmatprep.subr.mxu0 0.0
    %2123 = vmatpush1.msra.mxu0 0.0
    %2124 = vmatprep.subr.mxu0 0.0
    %2125 = vmatpush1.msra.mxu0 0.0
    %2126 = vmatprep.subr.mxu0 0.0
    %2127 = vmatpush1.msra.mxu0 0.0
    %2128 = vmatprep.subr.mxu0 0.0
    %2129 = vmatpush1.msra.mxu0 0.0
    %2130 = vmatprep.mubr.f32.mxu0 0.0
    %2131 = vmatmul.mubr.f32.gmra.mrb[0].mxu0 %v2064
    %v2132 = vpop.f32.mrb[0].mxu0
    %v2133 = vadd.f32 %v1065, %v2132
    %v2134 = vpop.f32.mrb[0].mxu0
    %2135 = vdwg.mxu0
    %v2136 = vmax.f32 %v2133, 0.0
    %v2138 = vsel %vm294, %v2136, 0
    %2140 = vmatprep.subr.mxu0 0.0
    %2141 = vmatpush1.msra.mxu0 %v692
    %2142 = vmatprep.subr.mxu0 0.0
    %2143 = vmatpush1.msra.mxu0 %v693
    %2144 = vmatprep.subr.mxu0 0.0
    %2145 = vmatpush1.msra.mxu0 %v694
    %2146 = vmatprep.subr.mxu0 0.0
    %2147 = vmatpush1.msra.mxu0 %v695
    %2148 = vmatprep.subr.mxu0 0.0
    %2149 = vmatpush1.msra.mxu0 0.0
    %2150 = vmatprep.subr.mxu0 0.0
    %2151 = vmatpush1.msra.mxu0 0.0
    %2152 = vmatprep.subr.mxu0 0.0
    %2153 = vmatpush1.msra.mxu0 0.0
    %2154 = vmatprep.subr.mxu0 0.0
    %2155 = vmatpush1.msra.mxu0 0.0
    %2156 = vmatprep.subr.mxu0 0.0
    %2157 = vmatpush1.msra.mxu0 0.0
    %2158 = vmatprep.subr.mxu0 0.0
    %2159 = vmatpush1.msra.mxu0 0.0
    %2160 = vmatprep.subr.mxu0 0.0
    %2161 = vmatpush1.msra.mxu0 0.0
    %2162 = vmatprep.subr.mxu0 0.0
    %2163 = vmatpush1.msra.mxu0 0.0
    %2164 = vmatprep.subr.mxu0 0.0
    %2165 = vmatpush1.msra.mxu0 0.0
    %2166 = vmatprep.subr.mxu0 0.0
    %2167 = vmatpush1.msra.mxu0 0.0
    %2168 = vmatprep.subr.mxu0 0.0
    %2169 = vmatpush1.msra.mxu0 0.0
    %2170 = vmatprep.subr.mxu0 0.0
    %2171 = vmatpush1.msra.mxu0 0.0
    %2172 = vmatprep.subr.mxu0 0.0
    %2173 = vmatpush1.msra.mxu0 0.0
    %2174 = vmatprep.subr.mxu0 0.0
    %2175 = vmatpush1.msra.mxu0 0.0
    %2176 = vmatprep.subr.mxu0 0.0
    %2177 = vmatpush1.msra.mxu0 0.0
    %2178 = vmatprep.subr.mxu0 0.0
    %2179 = vmatpush1.msra.mxu0 0.0
    %2180 = vmatprep.subr.mxu0 0.0
    %2181 = vmatpush1.msra.mxu0 0.0
    %2182 = vmatprep.subr.mxu0 0.0
    %2183 = vmatpush1.msra.mxu0 0.0
    %2184 = vmatprep.subr.mxu0 0.0
    %2185 = vmatpush1.msra.mxu0 0.0
    %2186 = vmatprep.subr.mxu0 0.0
    %2187 = vmatpush1.msra.mxu0 0.0
    %2188 = vmatprep.subr.mxu0 0.0
    %2189 = vmatpush1.msra.mxu0 0.0
    %2190 = vmatprep.subr.mxu0 0.0
    %2191 = vmatpush1.msra.mxu0 0.0
    %2192 = vmatprep.subr.mxu0 0.0
    %2193 = vmatpush1.msra.mxu0 0.0
    %2194 = vmatprep.subr.mxu0 0.0
    %2195 = vmatpush1.msra.mxu0 0.0
    %2196 = vmatprep.subr.mxu0 0.0
    %2197 = vmatpush1.msra.mxu0 0.0
    %2198 = vmatprep.subr.mxu0 0.0
    %2199 = vmatpush1.msra.mxu0 0.0
    %2200 = vmatprep.subr.mxu0 0.0
    %2201 = vmatpush1.msra.mxu0 0.0
    %2202 = vmatprep.subr.mxu0 0.0
    %2203 = vmatpush1.msra.mxu0 0.0
    %2204 = vmatprep.mubr.f32.mxu0 0.0
    %2205 = vmatmul.mubr.f32.gmra.mrb[0].mxu0 %v2138
    %v2206 = vpop.f32.mrb[0].mxu0
    %v2207 = vadd.f32 %v1147, %v2206
    %v2208 = vpop.f32.mrb[0].mxu0
    %2209 = vdwg.mxu0
    %v2211 = vsel %vm294, %v2207, 0
    %2213 = vmatprep.subr.mxu0 0.0
    %2214 = vmatpush1.msra.mxu0 %v671
    %2215 = vmatprep.subr.mxu0 0.0
    %2216 = vmatpush1.msra.mxu0 %v672
    %2217 = vmatprep.subr.mxu0 0.0
    %2218 = vmatpush1.msra.mxu0 %v673
    %2219 = vmatprep.subr.mxu0 0.0
    %2220 = vmatpush1.msra.mxu0 %v674
    %2221 = vmatprep.subr.mxu0 0.0
    %2222 = vmatpush1.msra.mxu0 0.0
    %2223 = vmatprep.subr.mxu0 0.0
    %2224 = vmatpush1.msra.mxu0 0.0
    %2225 = vmatprep.subr.mxu0 0.0
    %2226 = vmatpush1.msra.mxu0 0.0
    %2227 = vmatprep.subr.mxu0 0.0
    %2228 = vmatpush1.msra.mxu0 0.0
    %2229 = vmatprep.subr.mxu0 0.0
    %2230 = vmatpush1.msra.mxu0 0.0
    %2231 = vmatprep.subr.mxu0 0.0
    %2232 = vmatpush1.msra.mxu0 0.0
    %2233 = vmatprep.subr.mxu0 0.0
    %2234 = vmatpush1.msra.mxu0 0.0
    %2235 = vmatprep.subr.mxu0 0.0
    %2236 = vmatpush1.msra.mxu0 0.0
    %2237 = vmatprep.subr.mxu0 0.0
    %2238 = vmatpush1.msra.mxu0 0.0
    %2239 = vmatprep.subr.mxu0 0.0
    %2240 = vmatpush1.msra.mxu0 0.0
    %2241 = vmatprep.subr.mxu0 0.0
    %2242 = vmatpush1.msra.mxu0 0.0
    %2243 = vmatprep.subr.mxu0 0.0
    %2244 = vmatpush1.msra.mxu0 0.0
    %2245 = vmatprep.subr.mxu0 0.0
    %2246 = vmatpush1.msra.mxu0 0.0
    %2247 = vmatprep.subr.mxu0 0.0
    %2248 = vmatpush1.msra.mxu0 0.0
    %2249 = vmatprep.subr.mxu0 0.0
    %2250 = vmatpush1.msra.mxu0 0.0
    %2251 = vmatprep.subr.mxu0 0.0
    %2252 = vmatpush1.msra.mxu0 0.0
    %2253 = vmatprep.subr.mxu0 0.0
    %2254 = vmatpush1.msra.mxu0 0.0
    %2255 = vmatprep.subr.mxu0 0.0
    %2256 = vmatpush1.msra.mxu0 0.0
    %2257 = vmatprep.subr.mxu0 0.0
    %2258 = vmatpush1.msra.mxu0 0.0
    %2259 = vmatprep.subr.mxu0 0.0
    %2260 = vmatpush1.msra.mxu0 0.0
    %2261 = vmatprep.subr.mxu0 0.0
    %2262 = vmatpush1.msra.mxu0 0.0
    %2263 = vmatprep.subr.mxu0 0.0
    %2264 = vmatpush1.msra.mxu0 0.0
    %2265 = vmatprep.subr.mxu0 0.0
    %2266 = vmatpush1.msra.mxu0 0.0
    %2267 = vmatprep.subr.mxu0 0.0
    %2268 = vmatpush1.msra.mxu0 0.0
    %2269 = vmatprep.subr.mxu0 0.0
    %2270 = vmatpush1.msra.mxu0 0.0
    %2271 = vmatprep.subr.mxu0 0.0
    %2272 = vmatpush1.msra.mxu0 0.0
    %2273 = vmatprep.subr.mxu0 0.0
    %2274 = vmatpush1.msra.mxu0 0.0
    %2275 = vmatprep.subr.mxu0 0.0
    %2276 = vmatpush1.msra.mxu0 0.0
    %2277 = vmatprep.mubr.f32.mxu0 0.0
    %2278 = vmatmul.mubr.f32.gmra.mrb[0].mxu0 %v2211
    %v2279 = vpop.f32.mrb[0].mxu0
    %v2280 = vadd.f32 0.0, %v2279
    %v2281 = vpop.f32.mrb[0].mxu0
    %2282 = vdwg.mxu0
    %v2283 = vadd.f32 %v525, %v2280
    %v2284 = vmax.f32 %v2283, 0.0
    %v2286 = vsel %vm294, %v2284, 0
    %2288 = vmatprep.subr.mxu0 0.0
    %2289 = vmatpush1.msra.mxu0 %v675
    %2290 = vmatprep.subr.mxu0 0.0
    %2291 = vmatpush1.msra.mxu0 %v676
    %2292 = vmatprep.subr.mxu0 0.0
    %2293 = vmatpush1.msra.mxu0 %v677
    %2294 = vmatprep.subr.mxu0 0.0
    %2295 = vmatpush1.msra.mxu0 %v678
    %2296 = vmatprep.subr.mxu0 0.0
    %2297 = vmatpush1.msra.mxu0 0.0
    %2298 = vmatprep.subr.mxu0 0.0
    %2299 = vmatpush1.msra.mxu0 0.0
    %2300 = vmatprep.subr.mxu0 0.0
    %2301 = vmatpush1.msra.mxu0 0.0
    %2302 = vmatprep.subr.mxu0 0.0
    %2303 = vmatpush1.msra.mxu0 0.0
    %2304 = vmatprep.subr.mxu0 0.0
    %2305 = vmatpush1.msra.mxu0 0.0
    %2306 = vmatprep.subr.mxu0 0.0
    %2307 = vmatpush1.msra.mxu0 0.0
    %2308 = vmatprep.subr.mxu0 0.0
    %2309 = vmatpush1.msra.mxu0 0.0
    %2310 = vmatprep.subr.mxu0 0.0
    %2311 = vmatpush1.msra.mxu0 0.0
    %2312 = vmatprep.subr.mxu0 0.0
    %2313 = vmatpush1.msra.mxu0 0.0
    %2314 = vmatprep.subr.mxu0 0.0
    %2315 = vmatpush1.msra.mxu0 0.0
    %2316 = vmatprep.subr.mxu0 0.0
    %2317 = vmatpush1.msra.mxu0 0.0
    %2318 = vmatprep.subr.mxu0 0.0
    %2319 = vmatpush1.msra.mxu0 0.0
    %2320 = vmatprep.subr.mxu0 0.0
    %2321 = vmatpush1.msra.mxu0 0.0
    %2322 = vmatprep.subr.mxu0 0.0
    %2323 = vmatpush1.msra.mxu0 0.0
    %2324 = vmatprep.subr.mxu0 0.0
    %2325 = vmatpush1.msra.mxu0 0.0
    %2326 = vmatprep.subr.mxu0 0.0
    %2327 = vmatpush1.msra.mxu0 0.0
    %2328 = vmatprep.subr.mxu0 0.0
    %2329 = vmatpush1.msra.mxu0 0.0
    %2330 = vmatprep.subr.mxu0 0.0
    %2331 = vmatpush1.msra.mxu0 0.0
    %2332 = vmatprep.subr.mxu0 0.0
    %2333 = vmatpush1.msra.mxu0 0.0
    %2334 = vmatprep.subr.mxu0 0.0
    %2335 = vmatpush1.msra.mxu0 0.0
    %2336 = vmatprep.subr.mxu0 0.0
    %2337 = vmatpush1.msra.mxu0 0.0
    %2338 = vmatprep.subr.mxu0 0.0
    %2339 = vmatpush1.msra.mxu0 0.0
    %2340 = vmatprep.subr.mxu0 0.0
    %2341 = vmatpush1.msra.mxu0 0.0
    %2342 = vmatprep.subr.mxu0 0.0
    %2343 = vmatpush1.msra.mxu0 0.0
    %2344 = vmatprep.subr.mxu0 0.0
    %2345 = vmatpush1.msra.mxu0 0.0
    %2346 = vmatprep.subr.mxu0 0.0
    %2347 = vmatpush1.msra.mxu0 0.0
    %2348 = vmatprep.subr.mxu0 0.0
    %2349 = vmatpush1.msra.mxu0 0.0
    %2350 = vmatprep.subr.mxu0 0.0
    %2351 = vmatpush1.msra.mxu0 0.0
    %2352 = vmatprep.mubr.f32.mxu0 0.0
    %2353 = vmatmul.mubr.f32.gmra.mrb[0].mxu0 %v2286
    %v2354 = vpop.f32.mrb[0].mxu0
    %v2355 = vadd.f32 %v781, %v2354
    %v2356 = vpop.f32.mrb[0].mxu0
    %2357 = vdwg.mxu0
    %v2358 = vmax.f32 %v2355, 0.0
    %v2360 = vsel %vm294, %v2358, 0
    %2362 = vmatprep.subr.mxu0 0.0
    %2363 = vmatpush1.msra.mxu0 %v680
    %2364 = vmatprep.subr.mxu0 0.0
    %2365 = vmatpush1.msra.mxu0 %v681
    %2366 = vmatprep.subr.mxu0 0.0
    %2367 = vmatpush1.msra.mxu0 %v682
    %2368 = vmatprep.subr.mxu0 0.0
    %2369 = vmatpush1.msra.mxu0 %v683
    %2370 = vmatprep.subr.mxu0 0.0
    %2371 = vmatpush1.msra.mxu0 0.0
    %2372 = vmatprep.subr.mxu0 0.0
    %2373 = vmatpush1.msra.mxu0 0.0
    %2374 = vmatprep.subr.mxu0 0.0
    %2375 = vmatpush1.msra.mxu0 0.0
    %2376 = vmatprep.subr.mxu0 0.0
    %2377 = vmatpush1.msra.mxu0 0.0
    %2378 = vmatprep.subr.mxu0 0.0
    %2379 = vmatpush1.msra.mxu0 0.0
    %2380 = vmatprep.subr.mxu0 0.0
    %2381 = vmatpush1.msra.mxu0 0.0
    %2382 = vmatprep.subr.mxu0 0.0
    %2383 = vmatpush1.msra.mxu0 0.0
    %2384 = vmatprep.subr.mxu0 0.0
    %2385 = vmatpush1.msra.mxu0 0.0
    %2386 = vmatprep.subr.mxu0 0.0
    %2387 = vmatpush1.msra.mxu0 0.0
    %2388 = vmatprep.subr.mxu0 0.0
    %2389 = vmatpush1.msra.mxu0 0.0
    %2390 = vmatprep.subr.mxu0 0.0
    %2391 = vmatpush1.msra.mxu0 0.0
    %2392 = vmatprep.subr.mxu0 0.0
    %2393 = vmatpush1.msra.mxu0 0.0
    %2394 = vmatprep.subr.mxu0 0.0
    %2395 = vmatpush1.msra.mxu0 0.0
    %2396 = vmatprep.subr.mxu0 0.0
    %2397 = vmatpush1.msra.mxu0 0.0
    %2398 = vmatprep.subr.mxu0 0.0
    %2399 = vmatpush1.msra.mxu0 0.0
    %2400 = vmatprep.subr.mxu0 0.0
    %2401 = vmatpush1.msra.mxu0 0.0
    %2402 = vmatprep.subr.mxu0 0.0
    %2403 = vmatpush1.msra.mxu0 0.0
    %2404 = vmatprep.subr.mxu0 0.0
    %2405 = vmatpush1.msra.mxu0 0.0
    %2406 = vmatprep.subr.mxu0 0.0
    %2407 = vmatpush1.msra.mxu0 0.0
    %2408 = vmatprep.subr.mxu0 0.0
    %2409 = vmatpush1.msra.mxu0 0.0
    %2410 = vmatprep.subr.mxu0 0.0
    %2411 = vmatpush1.msra.mxu0 0.0
    %2412 = vmatprep.subr.mxu0 0.0
    %2413 = vmatpush1.msra.mxu0 0.0
    %2414 = vmatprep.subr.mxu0 0.0
    %2415 = vmatpush1.msra.mxu0 0.0
    %2416 = vmatprep.subr.mxu0 0.0
    %2417 = vmatpush1.msra.mxu0 0.0
    %2418 = vmatprep.subr.mxu0 0.0
    %2419 = vmatpush1.msra.mxu0 0.0
    %2420 = vmatprep.subr.mxu0 0.0
    %2421 = vmatpush1.msra.mxu0 0.0
    %2422 = vmatprep.subr.mxu0 0.0
    %2423 = vmatpush1.msra.mxu0 0.0
    %2424 = vmatprep.subr.mxu0 0.0
    %2425 = vmatpush1.msra.mxu0 0.0
    %2426 = vmatprep.mubr.f32.mxu0 0.0
    %2427 = vmatmul.mubr.f32.gmra.mrb[0].mxu0 %v2360
    %v2428 = vpop.f32.mrb[0].mxu0
    %v2429 = vadd.f32 %v861, %v2428
    %v2430 = vpop.f32.mrb[0].mxu0
    %2431 = vdwg.mxu0
    %v2432 = vmax.f32 %v2429, 0.0
    %vm2433 = vcmp.ne.f32.partialorder %v2429, %v2429
    %v2434 = vadd.f32 %v2429, 0.0
    %v2435 = vand.u32 2147483647, %v2429
    %v2436 = vsub.f32 0.0, %v2435
    %v2437 = vmul.f32 %v2436, 1.442695
    %v2438 = vpow.pop %v2437
    %v2439 = vadd.f32 %v2438, 1.0
    %v2440 = vlog2.pop %v2439
    %v2441 = vmul.f32 %v2440, 0.6931472
    %v2442 = vmul.f32 -0.5, %v2438
    %v2443 = vadd.f32 %v2442, 1.0
    %v2444 = vmul.f32 %v2443, %v2438
    %v2445 = vand.u32 2147483647, %v2438
    %vm2446 = vcmp.lt.f32.partialorder %v2445, 0.0004427343
    %v2447 = vsel %vm2446, %v2444, %v2441
    %v2448 = vadd.f32 %v2432, %v2447
    %v2449 = vsel %vm2433, %v2434, %v2448
    %v2450 = vadd.f32 %v2449, 1e-05
    %2452 = vrot.lane.b32.xlu0 %v668, 16
    %v2453 = vpop.permute.xlu0 %2452
    %v2455 = vmul.f32 %v2450, %v2453
    %2457 = vrot.lane.b32.xlu0 %v2455, 112
    %v2458 = vpop.permute.xlu0 %2457
    %v2460 = vadd.f32 %v2429, %v2458
    %2462 = vrot.lane.b32.xlu0 %v2460, 32
    %v2463 = vpop.permute.xlu0 %2462
    %2465 = vrot.lane.b32.xlu0 %v2207, 48
    %v2466 = vpop.permute.xlu0 %2465
    %v2468 = vsel %vm163, %v2429, %v2450
    %v2469 = vsel %vm294, %v2468, %v2463
    %v2470 = vsel %vm974, %v2469, %v2466
    %2471 = vst.msk [vmem:[%s69 + $0x18] sm:$0xff] %vm976, %v2470
    %v2472 = vsel %vm163, %v2460, 0
    %2474 = vmatprep.subr.mxu0 0.0
    %2475 = vmatpush1.msra.mxu0 %v685
    %2476 = vmatprep.subr.mxu0 0.0
    %2477 = vmatpush1.msra.mxu0 %v686
    %2478 = vmatprep.subr.mxu0 0.0
    %2479 = vmatpush1.msra.mxu0 0.0
    %2480 = vmatprep.subr.mxu0 0.0
    %2481 = vmatpush1.msra.mxu0 0.0
    %2482 = vmatprep.subr.mxu0 0.0
    %2483 = vmatpush1.msra.mxu0 0.0
    %2484 = vmatprep.subr.mxu0 0.0
    %2485 = vmatpush1.msra.mxu0 0.0
    %2486 = vmatprep.subr.mxu0 0.0
    %2487 = vmatpush1.msra.mxu0 0.0
    %2488 = vmatprep.subr.mxu0 0.0
    %2489 = vmatpush1.msra.mxu0 0.0
    %2490 = vmatprep.subr.mxu0 0.0
    %2491 = vmatpush1.msra.mxu0 0.0
    %2492 = vmatprep.subr.mxu0 0.0
    %2493 = vmatpush1.msra.mxu0 0.0
    %2494 = vmatprep.subr.mxu0 0.0
    %2495 = vmatpush1.msra.mxu0 0.0
    %2496 = vmatprep.subr.mxu0 0.0
    %2497 = vmatpush1.msra.mxu0 0.0
    %2498 = vmatprep.subr.mxu0 0.0
    %2499 = vmatpush1.msra.mxu0 0.0
    %2500 = vmatprep.subr.mxu0 0.0
    %2501 = vmatpush1.msra.mxu0 0.0
    %2502 = vmatprep.subr.mxu0 0.0
    %2503 = vmatpush1.msra.mxu0 0.0
    %2504 = vmatprep.subr.mxu0 0.0
    %2505 = vmatpush1.msra.mxu0 0.0
    %2506 = vmatprep.subr.mxu0 0.0
    %2507 = vmatpush1.msra.mxu0 0.0
    %2508 = vmatprep.subr.mxu0 0.0
    %2509 = vmatpush1.msra.mxu0 0.0
    %2510 = vmatprep.subr.mxu0 0.0
    %2511 = vmatpush1.msra.mxu0 0.0
    %2512 = vmatprep.subr.mxu0 0.0
    %2513 = vmatpush1.msra.mxu0 0.0
    %2514 = vmatprep.subr.mxu0 0.0
    %2515 = vmatpush1.msra.mxu0 0.0
    %2516 = vmatprep.subr.mxu0 0.0
    %2517 = vmatpush1.msra.mxu0 0.0
    %2518 = vmatprep.subr.mxu0 0.0
    %2519 = vmatpush1.msra.mxu0 0.0
    %2520 = vmatprep.subr.mxu0 0.0
    %2521 = vmatpush1.msra.mxu0 0.0
    %2522 = vmatprep.subr.mxu0 0.0
    %2523 = vmatpush1.msra.mxu0 0.0
    %2524 = vmatprep.subr.mxu0 0.0
    %2525 = vmatpush1.msra.mxu0 0.0
    %2526 = vmatprep.subr.mxu0 0.0
    %2527 = vmatpush1.msra.mxu0 0.0
    %2528 = vmatprep.subr.mxu0 0.0
    %2529 = vmatpush1.msra.mxu0 0.0
    %2530 = vmatprep.subr.mxu0 0.0
    %2531 = vmatpush1.msra.mxu0 0.0
    %2532 = vmatprep.subr.mxu0 0.0
    %2533 = vmatpush1.msra.mxu0 0.0
    %2534 = vmatprep.subr.mxu0 0.0
    %2535 = vmatpush1.msra.mxu0 0.0
    %2536 = vmatprep.subr.mxu0 0.0
    %2537 = vmatpush1.msra.mxu0 0.0
    %2538 = vmatprep.mubr.f32.mxu0 0.0
    %2539 = vmatmul.mubr.f32.gmra.mrb[0].mxu0 %v2472
    %v2540 = vpop.f32.mrb[0].mxu0
    %v2541 = vadd.f32 0.0, %v2540
    %v2542 = vpop.f32.mrb[0].mxu0
    %2543 = vdwg.mxu0
    %2545 = vrot.lane.b32.xlu0 %v2541, 32
    %v2546 = vpop.permute.xlu0 %2545
    %v2548 = vadd.f32 %v2280, %v2546
    %2550 = vrot.lane.b32.xlu0 %v653, 32
    %v2551 = vpop.permute.xlu0 %2550
    %v2553 = vadd.f32 %v2548, %v2551
    %v2554 = vmax.f32 %v2553, 0.0
    %2556 = vrot.lane.b32.xlu0 %v2554, 96
    %v2557 = vpop.permute.xlu0 %2556
    %v2558 = vsel %vm294, %v2557, 0
    %2560 = vmatprep.subr.mxu0 0.0
    %2561 = vmatpush1.msra.mxu0 %v687
    %2562 = vmatprep.subr.mxu0 0.0
    %2563 = vmatpush1.msra.mxu0 %v688
    %2564 = vmatprep.subr.mxu0 0.0
    %2565 = vmatpush1.msra.mxu0 %v689
    %2566 = vmatprep.subr.mxu0 0.0
    %2567 = vmatpush1.msra.mxu0 %v690
    %2568 = vmatprep.subr.mxu0 0.0
    %2569 = vmatpush1.msra.mxu0 0.0
    %2570 = vmatprep.subr.mxu0 0.0
    %2571 = vmatpush1.msra.mxu0 0.0
    %2572 = vmatprep.subr.mxu0 0.0
    %2573 = vmatpush1.msra.mxu0 0.0
    %2574 = vmatprep.subr.mxu0 0.0
    %2575 = vmatpush1.msra.mxu0 0.0
    %2576 = vmatprep.subr.mxu0 0.0
    %2577 = vmatpush1.msra.mxu0 0.0
    %2578 = vmatprep.subr.mxu0 0.0
    %2579 = vmatpush1.msra.mxu0 0.0
    %2580 = vmatprep.subr.mxu0 0.0
    %2581 = vmatpush1.msra.mxu0 0.0
    %2582 = vmatprep.subr.mxu0 0.0
    %2583 = vmatpush1.msra.mxu0 0.0
    %2584 = vmatprep.subr.mxu0 0.0
    %2585 = vmatpush1.msra.mxu0 0.0
    %2586 = vmatprep.subr.mxu0 0.0
    %2587 = vmatpush1.msra.mxu0 0.0
    %2588 = vmatprep.subr.mxu0 0.0
    %2589 = vmatpush1.msra.mxu0 0.0
    %2590 = vmatprep.subr.mxu0 0.0
    %2591 = vmatpush1.msra.mxu0 0.0
    %2592 = vmatprep.subr.mxu0 0.0
    %2593 = vmatpush1.msra.mxu0 0.0
    %2594 = vmatprep.subr.mxu0 0.0
    %2595 = vmatpush1.msra.mxu0 0.0
    %2596 = vmatprep.subr.mxu0 0.0
    %2597 = vmatpush1.msra.mxu0 0.0
    %2598 = vmatprep.subr.mxu0 0.0
    %2599 = vmatpush1.msra.mxu0 0.0
    %2600 = vmatprep.subr.mxu0 0.0
    %2601 = vmatpush1.msra.mxu0 0.0
    %2602 = vmatprep.subr.mxu0 0.0
    %2603 = vmatpush1.msra.mxu0 0.0
    %2604 = vmatprep.subr.mxu0 0.0
    %2605 = vmatpush1.msra.mxu0 0.0
    %2606 = vmatprep.subr.mxu0 0.0
    %2607 = vmatpush1.msra.mxu0 0.0
    %2608 = vmatprep.subr.mxu0 0.0
    %2609 = vmatpush1.msra.mxu0 0.0
    %2610 = vmatprep.subr.mxu0 0.0
    %2611 = vmatpush1.msra.mxu0 0.0
    %2612 = vmatprep.subr.mxu0 0.0
    %2613 = vmatpush1.msra.mxu0 0.0
    %2614 = vmatprep.subr.mxu0 0.0
    %2615 = vmatpush1.msra.mxu0 0.0
    %2616 = vmatprep.subr.mxu0 0.0
    %2617 = vmatpush1.msra.mxu0 0.0
    %2618 = vmatprep.subr.mxu0 0.0
    %2619 = vmatpush1.msra.mxu0 0.0
    %2620 = vmatprep.subr.mxu0 0.0
    %2621 = vmatpush1.msra.mxu0 0.0
    %2622 = vmatprep.subr.mxu0 0.0
    %2623 = vmatpush1.msra.mxu0 0.0
    %2624 = vmatprep.mubr.f32.mxu0 0.0
    %2625 = vmatmul.mubr.f32.gmra.mrb[0].mxu0 %v2558
    %v2626 = vpop.f32.mrb[0].mxu0
    %v2627 = vadd.f32 %v1065, %v2626
    %v2628 = vpop.f32.mrb[0].mxu0
    %2629 = vdwg.mxu0
    %v2630 = vmax.f32 %v2627, 0.0
    %v2632 = vsel %vm294, %v2630, 0
    %2634 = vmatprep.subr.mxu0 0.0
    %2635 = vmatpush1.msra.mxu0 %v692
    %2636 = vmatprep.subr.mxu0 0.0
    %2637 = vmatpush1.msra.mxu0 %v693
    %2638 = vmatprep.subr.mxu0 0.0
    %2639 = vmatpush1.msra.mxu0 %v694
    %2640 = vmatprep.subr.mxu0 0.0
    %2641 = vmatpush1.msra.mxu0 %v695
    %2642 = vmatprep.subr.mxu0 0.0
    %2643 = vmatpush1.msra.mxu0 0.0
    %2644 = vmatprep.subr.mxu0 0.0
    %2645 = vmatpush1.msra.mxu0 0.0
    %2646 = vmatprep.subr.mxu0 0.0
    %2647 = vmatpush1.msra.mxu0 0.0
    %2648 = vmatprep.subr.mxu0 0.0
    %2649 = vmatpush1.msra.mxu0 0.0
    %2650 = vmatprep.subr.mxu0 0.0
    %2651 = vmatpush1.msra.mxu0 0.0
    %2652 = vmatprep.subr.mxu0 0.0
    %2653 = vmatpush1.msra.mxu0 0.0
    %2654 = vmatprep.subr.mxu0 0.0
    %2655 = vmatpush1.msra.mxu0 0.0
    %2656 = vmatprep.subr.mxu0 0.0
    %2657 = vmatpush1.msra.mxu0 0.0
    %2658 = vmatprep.subr.mxu0 0.0
    %2659 = vmatpush1.msra.mxu0 0.0
    %2660 = vmatprep.subr.mxu0 0.0
    %2661 = vmatpush1.msra.mxu0 0.0
    %2662 = vmatprep.subr.mxu0 0.0
    %2663 = vmatpush1.msra.mxu0 0.0
    %2664 = vmatprep.subr.mxu0 0.0
    %2665 = vmatpush1.msra.mxu0 0.0
    %2666 = vmatprep.subr.mxu0 0.0
    %2667 = vmatpush1.msra.mxu0 0.0
    %2668 = vmatprep.subr.mxu0 0.0
    %2669 = vmatpush1.msra.mxu0 0.0
    %2670 = vmatprep.subr.mxu0 0.0
    %2671 = vmatpush1.msra.mxu0 0.0
    %2672 = vmatprep.subr.mxu0 0.0
    %2673 = vmatpush1.msra.mxu0 0.0
    %2674 = vmatprep.subr.mxu0 0.0
    %2675 = vmatpush1.msra.mxu0 0.0
    %2676 = vmatprep.subr.mxu0 0.0
    %2677 = vmatpush1.msra.mxu0 0.0
    %2678 = vmatprep.subr.mxu0 0.0
    %2679 = vmatpush1.msra.mxu0 0.0
    %2680 = vmatprep.subr.mxu0 0.0
    %2681 = vmatpush1.msra.mxu0 0.0
    %2682 = vmatprep.subr.mxu0 0.0
    %2683 = vmatpush1.msra.mxu0 0.0
    %2684 = vmatprep.subr.mxu0 0.0
    %2685 = vmatpush1.msra.mxu0 0.0
    %2686 = vmatprep.subr.mxu0 0.0
    %2687 = vmatpush1.msra.mxu0 0.0
    %2688 = vmatprep.subr.mxu0 0.0
    %2689 = vmatpush1.msra.mxu0 0.0
    %2690 = vmatprep.subr.mxu0 0.0
    %2691 = vmatpush1.msra.mxu0 0.0
    %2692 = vmatprep.subr.mxu0 0.0
    %2693 = vmatpush1.msra.mxu0 0.0
    %2694 = vmatprep.subr.mxu0 0.0
    %2695 = vmatpush1.msra.mxu0 0.0
    %2696 = vmatprep.subr.mxu0 0.0
    %2697 = vmatpush1.msra.mxu0 0.0
    %2698 = vmatprep.mubr.f32.mxu0 0.0
    %2699 = vmatmul.mubr.f32.gmra.mrb[0].mxu0 %v2632
    %v2700 = vpop.f32.mrb[0].mxu0
    %v2701 = vadd.f32 %v1147, %v2700
    %v2702 = vpop.f32.mrb[0].mxu0
    %2703 = vdwg.mxu0
    %v2705 = vsel %vm294, %v2701, 0
    %2707 = vmatprep.subr.mxu0 0.0
    %2708 = vmatpush1.msra.mxu0 %v671
    %2709 = vmatprep.subr.mxu0 0.0
    %2710 = vmatpush1.msra.mxu0 %v672
    %2711 = vmatprep.subr.mxu0 0.0
    %2712 = vmatpush1.msra.mxu0 %v673
    %2713 = vmatprep.subr.mxu0 0.0
    %2714 = vmatpush1.msra.mxu0 %v674
    %2715 = vmatprep.subr.mxu0 0.0
    %2716 = vmatpush1.msra.mxu0 0.0
    %2717 = vmatprep.subr.mxu0 0.0
    %2718 = vmatpush1.msra.mxu0 0.0
    %2719 = vmatprep.subr.mxu0 0.0
    %2720 = vmatpush1.msra.mxu0 0.0
    %2721 = vmatprep.subr.mxu0 0.0
    %2722 = vmatpush1.msra.mxu0 0.0
    %2723 = vmatprep.subr.mxu0 0.0
    %2724 = vmatpush1.msra.mxu0 0.0
    %2725 = vmatprep.subr.mxu0 0.0
    %2726 = vmatpush1.msra.mxu0 0.0
    %2727 = vmatprep.subr.mxu0 0.0
    %2728 = vmatpush1.msra.mxu0 0.0
    %2729 = vmatprep.subr.mxu0 0.0
    %2730 = vmatpush1.msra.mxu0 0.0
    %2731 = vmatprep.subr.mxu0 0.0
    %2732 = vmatpush1.msra.mxu0 0.0
    %2733 = vmatprep.subr.mxu0 0.0
    %2734 = vmatpush1.msra.mxu0 0.0
    %2735 = vmatprep.subr.mxu0 0.0
    %2736 = vmatpush1.msra.mxu0 0.0
    %2737 = vmatprep.subr.mxu0 0.0
    %2738 = vmatpush1.msra.mxu0 0.0
    %2739 = vmatprep.subr.mxu0 0.0
    %2740 = vmatpush1.msra.mxu0 0.0
    %2741 = vmatprep.subr.mxu0 0.0
    %2742 = vmatpush1.msra.mxu0 0.0
    %2743 = vmatprep.subr.mxu0 0.0
    %2744 = vmatpush1.msra.mxu0 0.0
    %2745 = vmatprep.subr.mxu0 0.0
    %2746 = vmatpush1.msra.mxu0 0.0
    %2747 = vmatprep.subr.mxu0 0.0
    %2748 = vmatpush1.msra.mxu0 0.0
    %2749 = vmatprep.subr.mxu0 0.0
    %2750 = vmatpush1.msra.mxu0 0.0
    %2751 = vmatprep.subr.mxu0 0.0
    %2752 = vmatpush1.msra.mxu0 0.0
    %2753 = vmatprep.subr.mxu0 0.0
    %2754 = vmatpush1.msra.mxu0 0.0
    %2755 = vmatprep.subr.mxu0 0.0
    %2756 = vmatpush1.msra.mxu0 0.0
    %2757 = vmatprep.subr.mxu0 0.0
    %2758 = vmatpush1.msra.mxu0 0.0
    %2759 = vmatprep.subr.mxu0 0.0
    %2760 = vmatpush1.msra.mxu0 0.0
    %2761 = vmatprep.subr.mxu0 0.0
    %2762 = vmatpush1.msra.mxu0 0.0
    %2763 = vmatprep.subr.mxu0 0.0
    %2764 = vmatpush1.msra.mxu0 0.0
    %2765 = vmatprep.subr.mxu0 0.0
    %2766 = vmatpush1.msra.mxu0 0.0
    %2767 = vmatprep.subr.mxu0 0.0
    %2768 = vmatpush1.msra.mxu0 0.0
    %2769 = vmatprep.subr.mxu0 0.0
    %2770 = vmatpush1.msra.mxu0 0.0
    %2771 = vmatprep.mubr.f32.mxu0 0.0
    %2772 = vmatmul.mubr.f32.gmra.mrb[0].mxu0 %v2705
    %v2773 = vpop.f32.mrb[0].mxu0
    %v2774 = vadd.f32 0.0, %v2773
    %v2775 = vpop.f32.mrb[0].mxu0
    %2776 = vdwg.mxu0
    %v2777 = vadd.f32 %v530, %v2774
    %v2778 = vmax.f32 %v2777, 0.0
    %v2780 = vsel %vm294, %v2778, 0
    %2782 = vmatprep.subr.mxu0 0.0
    %2783 = vmatpush1.msra.mxu0 %v675
    %2784 = vmatprep.subr.mxu0 0.0
    %2785 = vmatpush1.msra.mxu0 %v676
    %2786 = vmatprep.subr.mxu0 0.0
    %2787 = vmatpush1.msra.mxu0 %v677
    %2788 = vmatprep.subr.mxu0 0.0
    %2789 = vmatpush1.msra.mxu0 %v678
    %2790 = vmatprep.subr.mxu0 0.0
    %2791 = vmatpush1.msra.mxu0 0.0
    %2792 = vmatprep.subr.mxu0 0.0
    %2793 = vmatpush1.msra.mxu0 0.0
    %2794 = vmatprep.subr.mxu0 0.0
    %2795 = vmatpush1.msra.mxu0 0.0
    %2796 = vmatprep.subr.mxu0 0.0
    %2797 = vmatpush1.msra.mxu0 0.0
    %2798 = vmatprep.subr.mxu0 0.0
    %2799 = vmatpush1.msra.mxu0 0.0
    %2800 = vmatprep.subr.mxu0 0.0
    %2801 = vmatpush1.msra.mxu0 0.0
    %2802 = vmatprep.subr.mxu0 0.0
    %2803 = vmatpush1.msra.mxu0 0.0
    %2804 = vmatprep.subr.mxu0 0.0
    %2805 = vmatpush1.msra.mxu0 0.0
    %2806 = vmatprep.subr.mxu0 0.0
    %2807 = vmatpush1.msra.mxu0 0.0
    %2808 = vmatprep.subr.mxu0 0.0
    %2809 = vmatpush1.msra.mxu0 0.0
    %2810 = vmatprep.subr.mxu0 0.0
    %2811 = vmatpush1.msra.mxu0 0.0
    %2812 = vmatprep.subr.mxu0 0.0
    %2813 = vmatpush1.msra.mxu0 0.0
    %2814 = vmatprep.subr.mxu0 0.0
    %2815 = vmatpush1.msra.mxu0 0.0
    %2816 = vmatprep.subr.mxu0 0.0
    %2817 = vmatpush1.msra.mxu0 0.0
    %2818 = vmatprep.subr.mxu0 0.0
    %2819 = vmatpush1.msra.mxu0 0.0
    %2820 = vmatprep.subr.mxu0 0.0
    %2821 = vmatpush1.msra.mxu0 0.0
    %2822 = vmatprep.subr.mxu0 0.0
    %2823 = vmatpush1.msra.mxu0 0.0
    %2824 = vmatprep.subr.mxu0 0.0
    %2825 = vmatpush1.msra.mxu0 0.0
    %2826 = vmatprep.subr.mxu0 0.0
    %2827 = vmatpush1.msra.mxu0 0.0
    %2828 = vmatprep.subr.mxu0 0.0
    %2829 = vmatpush1.msra.mxu0 0.0
    %2830 = vmatprep.subr.mxu0 0.0
    %2831 = vmatpush1.msra.mxu0 0.0
    %2832 = vmatprep.subr.mxu0 0.0
    %2833 = vmatpush1.msra.mxu0 0.0
    %2834 = vmatprep.subr.mxu0 0.0
    %2835 = vmatpush1.msra.mxu0 0.0
    %2836 = vmatprep.subr.mxu0 0.0
    %2837 = vmatpush1.msra.mxu0 0.0
    %2838 = vmatprep.subr.mxu0 0.0
    %2839 = vmatpush1.msra.mxu0 0.0
    %2840 = vmatprep.subr.mxu0 0.0
    %2841 = vmatpush1.msra.mxu0 0.0
    %2842 = vmatprep.subr.mxu0 0.0
    %2843 = vmatpush1.msra.mxu0 0.0
    %2844 = vmatprep.subr.mxu0 0.0
    %2845 = vmatpush1.msra.mxu0 0.0
    %2846 = vmatprep.mubr.f32.mxu0 0.0
    %2847 = vmatmul.mubr.f32.gmra.mrb[0].mxu0 %v2780
    %v2848 = vpop.f32.mrb[0].mxu0
    %v2849 = vadd.f32 %v781, %v2848
    %v2850 = vpop.f32.mrb[0].mxu0
    %2851 = vdwg.mxu0
    %v2852 = vmax.f32 %v2849, 0.0
    %v2854 = vsel %vm294, %v2852, 0
    %2856 = vmatprep.subr.mxu0 0.0
    %2857 = vmatpush1.msra.mxu0 %v680
    %2858 = vmatprep.subr.mxu0 0.0
    %2859 = vmatpush1.msra.mxu0 %v681
    %2860 = vmatprep.subr.mxu0 0.0
    %2861 = vmatpush1.msra.mxu0 %v682
    %2862 = vmatprep.subr.mxu0 0.0
    %2863 = vmatpush1.msra.mxu0 %v683
    %2864 = vmatprep.subr.mxu0 0.0
    %2865 = vmatpush1.msra.mxu0 0.0
    %2866 = vmatprep.subr.mxu0 0.0
    %2867 = vmatpush1.msra.mxu0 0.0
    %2868 = vmatprep.subr.mxu0 0.0
    %2869 = vmatpush1.msra.mxu0 0.0
    %2870 = vmatprep.subr.mxu0 0.0
    %2871 = vmatpush1.msra.mxu0 0.0
    %2872 = vmatprep.subr.mxu0 0.0
    %2873 = vmatpush1.msra.mxu0 0.0
    %2874 = vmatprep.subr.mxu0 0.0
    %2875 = vmatpush1.msra.mxu0 0.0
    %2876 = vmatprep.subr.mxu0 0.0
    %2877 = vmatpush1.msra.mxu0 0.0
    %2878 = vmatprep.subr.mxu0 0.0
    %2879 = vmatpush1.msra.mxu0 0.0
    %2880 = vmatprep.subr.mxu0 0.0
    %2881 = vmatpush1.msra.mxu0 0.0
    %2882 = vmatprep.subr.mxu0 0.0
    %2883 = vmatpush1.msra.mxu0 0.0
    %2884 = vmatprep.subr.mxu0 0.0
    %2885 = vmatpush1.msra.mxu0 0.0
    %2886 = vmatprep.subr.mxu0 0.0
    %2887 = vmatpush1.msra.mxu0 0.0
    %2888 = vmatprep.subr.mxu0 0.0
    %2889 = vmatpush1.msra.mxu0 0.0
    %2890 = vmatprep.subr.mxu0 0.0
    %2891 = vmatpush1.msra.mxu0 0.0
    %2892 = vmatprep.subr.mxu0 0.0
    %2893 = vmatpush1.msra.mxu0 0.0
    %2894 = vmatprep.subr.mxu0 0.0
    %2895 = vmatpush1.msra.mxu0 0.0
    %2896 = vmatprep.subr.mxu0 0.0
    %2897 = vmatpush1.msra.mxu0 0.0
    %2898 = vmatprep.subr.mxu0 0.0
    %2899 = vmatpush1.msra.mxu0 0.0
    %2900 = vmatprep.subr.mxu0 0.0
    %2901 = vmatpush1.msra.mxu0 0.0
    %2902 = vmatprep.subr.mxu0 0.0
    %2903 = vmatpush1.msra.mxu0 0.0
    %2904 = vmatprep.subr.mxu0 0.0
    %2905 = vmatpush1.msra.mxu0 0.0
    %2906 = vmatprep.subr.mxu0 0.0
    %2907 = vmatpush1.msra.mxu0 0.0
    %2908 = vmatprep.subr.mxu0 0.0
    %2909 = vmatpush1.msra.mxu0 0.0
    %2910 = vmatprep.subr.mxu0 0.0
    %2911 = vmatpush1.msra.mxu0 0.0
    %2912 = vmatprep.subr.mxu0 0.0
    %2913 = vmatpush1.msra.mxu0 0.0
    %2914 = vmatprep.subr.mxu0 0.0
    %2915 = vmatpush1.msra.mxu0 0.0
    %2916 = vmatprep.subr.mxu0 0.0
    %2917 = vmatpush1.msra.mxu0 0.0
    %2918 = vmatprep.subr.mxu0 0.0
    %2919 = vmatpush1.msra.mxu0 0.0
    %2920 = vmatprep.mubr.f32.mxu0 0.0
    %2921 = vmatmul.mubr.f32.gmra.mrb[0].mxu0 %v2854
    %v2922 = vpop.f32.mrb[0].mxu0
    %v2923 = vadd.f32 %v861, %v2922
    %v2924 = vpop.f32.mrb[0].mxu0
    %2925 = vdwg.mxu0
    %v2926 = vmax.f32 %v2923, 0.0
    %vm2927 = vcmp.ne.f32.partialorder %v2923, %v2923
    %v2928 = vadd.f32 %v2923, 0.0
    %v2929 = vand.u32 2147483647, %v2923
    %v2930 = vsub.f32 0.0, %v2929
    %v2931 = vmul.f32 %v2930, 1.442695
    %v2932 = vpow.pop %v2931
    %v2933 = vadd.f32 %v2932, 1.0
    %v2934 = vlog2.pop %v2933
    %v2935 = vmul.f32 %v2934, 0.6931472
    %v2936 = vmul.f32 -0.5, %v2932
    %v2937 = vadd.f32 %v2936, 1.0
    %v2938 = vmul.f32 %v2937, %v2932
    %v2939 = vand.u32 2147483647, %v2932
    %vm2940 = vcmp.lt.f32.partialorder %v2939, 0.0004427343
    %v2941 = vsel %vm2940, %v2938, %v2935
    %v2942 = vadd.f32 %v2926, %v2941
    %v2943 = vsel %vm2927, %v2928, %v2942
    %v2944 = vadd.f32 %v2943, 1e-05
    %2946 = vrot.lane.b32.xlu0 %v669, 16
    %v2947 = vpop.permute.xlu0 %2946
    %v2949 = vmul.f32 %v2944, %v2947
    %2951 = vrot.lane.b32.xlu0 %v2949, 112
    %v2952 = vpop.permute.xlu0 %2951
    %v2954 = vadd.f32 %v2923, %v2952
    %2956 = vrot.lane.b32.xlu0 %v2954, 32
    %v2957 = vpop.permute.xlu0 %2956
    %2959 = vrot.lane.b32.xlu0 %v2701, 48
    %v2960 = vpop.permute.xlu0 %2959
    %v2962 = vsel %vm163, %v2923, %v2944
    %v2963 = vsel %vm294, %v2962, %v2957
    %v2964 = vsel %vm974, %v2963, %v2960
    %2965 = vst.msk [vmem:[%s69 + $0x20] sm:$0xff] %vm976, %v2964
    %v2966 = vsel %vm163, %v2954, 0
    %2968 = vmatprep.subr.mxu0 0.0
    %2969 = vmatpush1.msra.mxu0 %v685
    %2970 = vmatprep.subr.mxu0 0.0
    %2971 = vmatpush1.msra.mxu0 %v686
    %2972 = vmatprep.subr.mxu0 0.0
    %2973 = vmatpush1.msra.mxu0 0.0
    %2974 = vmatprep.subr.mxu0 0.0
    %2975 = vmatpush1.msra.mxu0 0.0
    %2976 = vmatprep.subr.mxu0 0.0
    %2977 = vmatpush1.msra.mxu0 0.0
    %2978 = vmatprep.subr.mxu0 0.0
    %2979 = vmatpush1.msra.mxu0 0.0
    %2980 = vmatprep.subr.mxu0 0.0
    %2981 = vmatpush1.msra.mxu0 0.0
    %2982 = vmatprep.subr.mxu0 0.0
    %2983 = vmatpush1.msra.mxu0 0.0
    %2984 = vmatprep.subr.mxu0 0.0
    %2985 = vmatpush1.msra.mxu0 0.0
    %2986 = vmatprep.subr.mxu0 0.0
    %2987 = vmatpush1.msra.mxu0 0.0
    %2988 = vmatprep.subr.mxu0 0.0
    %2989 = vmatpush1.msra.mxu0 0.0
    %2990 = vmatprep.subr.mxu0 0.0
    %2991 = vmatpush1.msra.mxu0 0.0
    %2992 = vmatprep.subr.mxu0 0.0
    %2993 = vmatpush1.msra.mxu0 0.0
    %2994 = vmatprep.subr.mxu0 0.0
    %2995 = vmatpush1.msra.mxu0 0.0
    %2996 = vmatprep.subr.mxu0 0.0
    %2997 = vmatpush1.msra.mxu0 0.0
    %2998 = vmatprep.subr.mxu0 0.0
    %2999 = vmatpush1.msra.mxu0 0.0
    %3000 = vmatprep.subr.mxu0 0.0
    %3001 = vmatpush1.msra.mxu0 0.0
    %3002 = vmatprep.subr.mxu0 0.0
    %3003 = vmatpush1.msra.mxu0 0.0
    %3004 = vmatprep.subr.mxu0 0.0
    %3005 = vmatpush1.msra.mxu0 0.0
    %3006 = vmatprep.subr.mxu0 0.0
    %3007 = vmatpush1.msra.mxu0 0.0
    %3008 = vmatprep.subr.mxu0 0.0
    %3009 = vmatpush1.msra.mxu0 0.0
    %3010 = vmatprep.subr.mxu0 0.0
    %3011 = vmatpush1.msra.mxu0 0.0
    %3012 = vmatprep.subr.mxu0 0.0
    %3013 = vmatpush1.msra.mxu0 0.0
    %3014 = vmatprep.subr.mxu0 0.0
    %3015 = vmatpush1.msra.mxu0 0.0
    %3016 = vmatprep.subr.mxu0 0.0
    %3017 = vmatpush1.msra.mxu0 0.0
    %3018 = vmatprep.subr.mxu0 0.0
    %3019 = vmatpush1.msra.mxu0 0.0
    %3020 = vmatprep.subr.mxu0 0.0
    %3021 = vmatpush1.msra.mxu0 0.0
    %3022 = vmatprep.subr.mxu0 0.0
    %3023 = vmatpush1.msra.mxu0 0.0
    %3024 = vmatprep.subr.mxu0 0.0
    %3025 = vmatpush1.msra.mxu0 0.0
    %3026 = vmatprep.subr.mxu0 0.0
    %3027 = vmatpush1.msra.mxu0 0.0
    %3028 = vmatprep.subr.mxu0 0.0
    %3029 = vmatpush1.msra.mxu0 0.0
    %3030 = vmatprep.subr.mxu0 0.0
    %3031 = vmatpush1.msra.mxu0 0.0
    %3032 = vmatprep.mubr.f32.mxu0 0.0
    %3033 = vmatmul.mubr.f32.gmra.mrb[0].mxu0 %v2966
    %v3034 = vpop.f32.mrb[0].mxu0
    %v3035 = vadd.f32 0.0, %v3034
    %v3036 = vpop.f32.mrb[0].mxu0
    %3037 = vdwg.mxu0
    %3039 = vrot.lane.b32.xlu0 %v3035, 32
    %v3040 = vpop.permute.xlu0 %3039
    %v3042 = vadd.f32 %v2774, %v3040
    %3044 = vrot.lane.b32.xlu0 %v658, 32
    %v3045 = vpop.permute.xlu0 %3044
    %v3047 = vadd.f32 %v3042, %v3045
    %v3048 = vmax.f32 %v3047, 0.0
    %3050 = vrot.lane.b32.xlu0 %v3048, 96
    %v3051 = vpop.permute.xlu0 %3050
    %v3052 = vsel %vm294, %v3051, 0
    %3054 = vmatprep.subr.mxu0 0.0
    %3055 = vmatpush1.msra.mxu0 %v687
    %3056 = vmatprep.subr.mxu0 0.0
    %3057 = vmatpush1.msra.mxu0 %v688
    %3058 = vmatprep.subr.mxu0 0.0
    %3059 = vmatpush1.msra.mxu0 %v689
    %3060 = vmatprep.subr.mxu0 0.0
    %3061 = vmatpush1.msra.mxu0 %v690
    %3062 = vmatprep.subr.mxu0 0.0
    %3063 = vmatpush1.msra.mxu0 0.0
    %3064 = vmatprep.subr.mxu0 0.0
    %3065 = vmatpush1.msra.mxu0 0.0
    %3066 = vmatprep.subr.mxu0 0.0
    %3067 = vmatpush1.msra.mxu0 0.0
    %3068 = vmatprep.subr.mxu0 0.0
    %3069 = vmatpush1.msra.mxu0 0.0
    %3070 = vmatprep.subr.mxu0 0.0
    %3071 = vmatpush1.msra.mxu0 0.0
    %3072 = vmatprep.subr.mxu0 0.0
    %3073 = vmatpush1.msra.mxu0 0.0
    %3074 = vmatprep.subr.mxu0 0.0
    %3075 = vmatpush1.msra.mxu0 0.0
    %3076 = vmatprep.subr.mxu0 0.0
    %3077 = vmatpush1.msra.mxu0 0.0
    %3078 = vmatprep.subr.mxu0 0.0
    %3079 = vmatpush1.msra.mxu0 0.0
    %3080 = vmatprep.subr.mxu0 0.0
    %3081 = vmatpush1.msra.mxu0 0.0
    %3082 = vmatprep.subr.mxu0 0.0
    %3083 = vmatpush1.msra.mxu0 0.0
    %3084 = vmatprep.subr.mxu0 0.0
    %3085 = vmatpush1.msra.mxu0 0.0
    %3086 = vmatprep.subr.mxu0 0.0
    %3087 = vmatpush1.msra.mxu0 0.0
    %3088 = vmatprep.subr.mxu0 0.0
    %3089 = vmatpush1.msra.mxu0 0.0
    %3090 = vmatprep.subr.mxu0 0.0
    %3091 = vmatpush1.msra.mxu0 0.0
    %3092 = vmatprep.subr.mxu0 0.0
    %3093 = vmatpush1.msra.mxu0 0.0
    %3094 = vmatprep.subr.mxu0 0.0
    %3095 = vmatpush1.msra.mxu0 0.0
    %3096 = vmatprep.subr.mxu0 0.0
    %3097 = vmatpush1.msra.mxu0 0.0
    %3098 = vmatprep.subr.mxu0 0.0
    %3099 = vmatpush1.msra.mxu0 0.0
    %3100 = vmatprep.subr.mxu0 0.0
    %3101 = vmatpush1.msra.mxu0 0.0
    %3102 = vmatprep.subr.mxu0 0.0
    %3103 = vmatpush1.msra.mxu0 0.0
    %3104 = vmatprep.subr.mxu0 0.0
    %3105 = vmatpush1.msra.mxu0 0.0
    %3106 = vmatprep.subr.mxu0 0.0
    %3107 = vmatpush1.msra.mxu0 0.0
    %3108 = vmatprep.subr.mxu0 0.0
    %3109 = vmatpush1.msra.mxu0 0.0
    %3110 = vmatprep.subr.mxu0 0.0
    %3111 = vmatpush1.msra.mxu0 0.0
    %3112 = vmatprep.subr.mxu0 0.0
    %3113 = vmatpush1.msra.mxu0 0.0
    %3114 = vmatprep.subr.mxu0 0.0
    %3115 = vmatpush1.msra.mxu0 0.0
    %3116 = vmatprep.subr.mxu0 0.0
    %3117 = vmatpush1.msra.mxu0 0.0
    %3118 = vmatprep.mubr.f32.mxu0 0.0
    %3119 = vmatmul.mubr.f32.gmra.mrb[0].mxu0 %v3052
    %v3120 = vpop.f32.mrb[0].mxu0
    %v3121 = vadd.f32 %v1065, %v3120
    %v3122 = vpop.f32.mrb[0].mxu0
    %3123 = vdwg.mxu0
    %v3124 = vmax.f32 %v3121, 0.0
    %v3126 = vsel %vm294, %v3124, 0
    %3128 = vmatprep.subr.mxu0 0.0
    %3129 = vmatpush1.msra.mxu0 %v692
    %3130 = vmatprep.subr.mxu0 0.0
    %3131 = vmatpush1.msra.mxu0 %v693
    %3132 = vmatprep.subr.mxu0 0.0
    %3133 = vmatpush1.msra.mxu0 %v694
    %3134 = vmatprep.subr.mxu0 0.0
    %3135 = vmatpush1.msra.mxu0 %v695
    %3136 = vmatprep.subr.mxu0 0.0
    %3137 = vmatpush1.msra.mxu0 0.0
    %3138 = vmatprep.subr.mxu0 0.0
    %3139 = vmatpush1.msra.mxu0 0.0
    %3140 = vmatprep.subr.mxu0 0.0
    %3141 = vmatpush1.msra.mxu0 0.0
    %3142 = vmatprep.subr.mxu0 0.0
    %3143 = vmatpush1.msra.mxu0 0.0
    %3144 = vmatprep.subr.mxu0 0.0
    %3145 = vmatpush1.msra.mxu0 0.0
    %3146 = vmatprep.subr.mxu0 0.0
    %3147 = vmatpush1.msra.mxu0 0.0
    %3148 = vmatprep.subr.mxu0 0.0
    %3149 = vmatpush1.msra.mxu0 0.0
    %3150 = vmatprep.subr.mxu0 0.0
    %3151 = vmatpush1.msra.mxu0 0.0
    %3152 = vmatprep.subr.mxu0 0.0
    %3153 = vmatpush1.msra.mxu0 0.0
    %3154 = vmatprep.subr.mxu0 0.0
    %3155 = vmatpush1.msra.mxu0 0.0
    %3156 = vmatprep.subr.mxu0 0.0
    %3157 = vmatpush1.msra.mxu0 0.0
    %3158 = vmatprep.subr.mxu0 0.0
    %3159 = vmatpush1.msra.mxu0 0.0
    %3160 = vmatprep.subr.mxu0 0.0
    %3161 = vmatpush1.msra.mxu0 0.0
    %3162 = vmatprep.subr.mxu0 0.0
    %3163 = vmatpush1.msra.mxu0 0.0
    %3164 = vmatprep.subr.mxu0 0.0
    %3165 = vmatpush1.msra.mxu0 0.0
    %3166 = vmatprep.subr.mxu0 0.0
    %3167 = vmatpush1.msra.mxu0 0.0
    %3168 = vmatprep.subr.mxu0 0.0
    %3169 = vmatpush1.msra.mxu0 0.0
    %3170 = vmatprep.subr.mxu0 0.0
    %3171 = vmatpush1.msra.mxu0 0.0
    %3172 = vmatprep.subr.mxu0 0.0
    %3173 = vmatpush1.msra.mxu0 0.0
    %3174 = vmatprep.subr.mxu0 0.0
    %3175 = vmatpush1.msra.mxu0 0.0
    %3176 = vmatprep.subr.mxu0 0.0
    %3177 = vmatpush1.msra.mxu0 0.0
    %3178 = vmatprep.subr.mxu0 0.0
    %3179 = vmatpush1.msra.mxu0 0.0
    %3180 = vmatprep.subr.mxu0 0.0
    %3181 = vmatpush1.msra.mxu0 0.0
    %3182 = vmatprep.subr.mxu0 0.0
    %3183 = vmatpush1.msra.mxu0 0.0
    %3184 = vmatprep.subr.mxu0 0.0
    %3185 = vmatpush1.msra.mxu0 0.0
    %3186 = vmatprep.subr.mxu0 0.0
    %3187 = vmatpush1.msra.mxu0 0.0
    %3188 = vmatprep.subr.mxu0 0.0
    %3189 = vmatpush1.msra.mxu0 0.0
    %3190 = vmatprep.subr.mxu0 0.0
    %3191 = vmatpush1.msra.mxu0 0.0
    %3192 = vmatprep.mubr.f32.mxu0 0.0
    %3193 = vmatmul.mubr.f32.gmra.mrb[0].mxu0 %v3126
    %v3194 = vpop.f32.mrb[0].mxu0
    %v3195 = vadd.f32 %v1147, %v3194
    %v3196 = vpop.f32.mrb[0].mxu0
    %3197 = vdwg.mxu0
    %v3199 = vsel %vm294, %v3195, 0
    %3201 = vmatprep.subr.mxu0 0.0
    %3202 = vmatpush1.msra.mxu0 %v671
    %3203 = vmatprep.subr.mxu0 0.0
    %3204 = vmatpush1.msra.mxu0 %v672
    %3205 = vmatprep.subr.mxu0 0.0
    %3206 = vmatpush1.msra.mxu0 %v673
    %3207 = vmatprep.subr.mxu0 0.0
    %3208 = vmatpush1.msra.mxu0 %v674
    %3209 = vmatprep.subr.mxu0 0.0
    %3210 = vmatpush1.msra.mxu0 0.0
    %3211 = vmatprep.subr.mxu0 0.0
    %3212 = vmatpush1.msra.mxu0 0.0
    %3213 = vmatprep.subr.mxu0 0.0
    %3214 = vmatpush1.msra.mxu0 0.0
    %3215 = vmatprep.subr.mxu0 0.0
    %3216 = vmatpush1.msra.mxu0 0.0
    %3217 = vmatprep.subr.mxu0 0.0
    %3218 = vmatpush1.msra.mxu0 0.0
    %3219 = vmatprep.subr.mxu0 0.0
    %3220 = vmatpush1.msra.mxu0 0.0
    %3221 = vmatprep.subr.mxu0 0.0
    %3222 = vmatpush1.msra.mxu0 0.0
    %3223 = vmatprep.subr.mxu0 0.0
    %3224 = vmatpush1.msra.mxu0 0.0
    %3225 = vmatprep.subr.mxu0 0.0
    %3226 = vmatpush1.msra.mxu0 0.0
    %3227 = vmatprep.subr.mxu0 0.0
    %3228 = vmatpush1.msra.mxu0 0.0
    %3229 = vmatprep.subr.mxu0 0.0
    %3230 = vmatpush1.msra.mxu0 0.0
    %3231 = vmatprep.subr.mxu0 0.0
    %3232 = vmatpush1.msra.mxu0 0.0
    %3233 = vmatprep.subr.mxu0 0.0
    %3234 = vmatpush1.msra.mxu0 0.0
    %3235 = vmatprep.subr.mxu0 0.0
    %3236 = vmatpush1.msra.mxu0 0.0
    %3237 = vmatprep.subr.mxu0 0.0
    %3238 = vmatpush1.msra.mxu0 0.0
    %3239 = vmatprep.subr.mxu0 0.0
    %3240 = vmatpush1.msra.mxu0 0.0
    %3241 = vmatprep.subr.mxu0 0.0
    %3242 = vmatpush1.msra.mxu0 0.0
    %3243 = vmatprep.subr.mxu0 0.0
    %3244 = vmatpush1.msra.mxu0 0.0
    %3245 = vmatprep.subr.mxu0 0.0
    %3246 = vmatpush1.msra.mxu0 0.0
    %3247 = vmatprep.subr.mxu0 0.0
    %3248 = vmatpush1.msra.mxu0 0.0
    %3249 = vmatprep.subr.mxu0 0.0
    %3250 = vmatpush1.msra.mxu0 0.0
    %3251 = vmatprep.subr.mxu0 0.0
    %3252 = vmatpush1.msra.mxu0 0.0
    %3253 = vmatprep.subr.mxu0 0.0
    %3254 = vmatpush1.msra.mxu0 0.0
    %3255 = vmatprep.subr.mxu0 0.0
    %3256 = vmatpush1.msra.mxu0 0.0
    %3257 = vmatprep.subr.mxu0 0.0
    %3258 = vmatpush1.msra.mxu0 0.0
    %3259 = vmatprep.subr.mxu0 0.0
    %3260 = vmatpush1.msra.mxu0 0.0
    %3261 = vmatprep.subr.mxu0 0.0
    %3262 = vmatpush1.msra.mxu0 0.0
    %3263 = vmatprep.subr.mxu0 0.0
    %3264 = vmatpush1.msra.mxu0 0.0
    %3265 = vmatprep.mubr.f32.mxu0 0.0
    %3266 = vmatmul.mubr.f32.gmra.mrb[0].mxu0 %v3199
    %v3267 = vpop.f32.mrb[0].mxu0
    %v3268 = vadd.f32 0.0, %v3267
    %v3269 = vpop.f32.mrb[0].mxu0
    %3270 = vdwg.mxu0
    %v3271 = vadd.f32 %v535, %v3268
    %v3272 = vmax.f32 %v3271, 0.0
    %v3274 = vsel %vm294, %v3272, 0
    %3276 = vmatprep.subr.mxu0 0.0
    %3277 = vmatpush1.msra.mxu0 %v675
    %3278 = vmatprep.subr.mxu0 0.0
    %3279 = vmatpush1.msra.mxu0 %v676
    %3280 = vmatprep.subr.mxu0 0.0
    %3281 = vmatpush1.msra.mxu0 %v677
    %3282 = vmatprep.subr.mxu0 0.0
    %3283 = vmatpush1.msra.mxu0 %v678
    %3284 = vmatprep.subr.mxu0 0.0
    %3285 = vmatpush1.msra.mxu0 0.0
    %3286 = vmatprep.subr.mxu0 0.0
    %3287 = vmatpush1.msra.mxu0 0.0
    %3288 = vmatprep.subr.mxu0 0.0
    %3289 = vmatpush1.msra.mxu0 0.0
    %3290 = vmatprep.subr.mxu0 0.0
    %3291 = vmatpush1.msra.mxu0 0.0
    %3292 = vmatprep.subr.mxu0 0.0
    %3293 = vmatpush1.msra.mxu0 0.0
    %3294 = vmatprep.subr.mxu0 0.0
    %3295 = vmatpush1.msra.mxu0 0.0
    %3296 = vmatprep.subr.mxu0 0.0
    %3297 = vmatpush1.msra.mxu0 0.0
    %3298 = vmatprep.subr.mxu0 0.0
    %3299 = vmatpush1.msra.mxu0 0.0
    %3300 = vmatprep.subr.mxu0 0.0
    %3301 = vmatpush1.msra.mxu0 0.0
    %3302 = vmatprep.subr.mxu0 0.0
    %3303 = vmatpush1.msra.mxu0 0.0
    %3304 = vmatprep.subr.mxu0 0.0
    %3305 = vmatpush1.msra.mxu0 0.0
    %3306 = vmatprep.subr.mxu0 0.0
    %3307 = vmatpush1.msra.mxu0 0.0
    %3308 = vmatprep.subr.mxu0 0.0
    %3309 = vmatpush1.msra.mxu0 0.0
    %3310 = vmatprep.subr.mxu0 0.0
    %3311 = vmatpush1.msra.mxu0 0.0
    %3312 = vmatprep.subr.mxu0 0.0
    %3313 = vmatpush1.msra.mxu0 0.0
    %3314 = vmatprep.subr.mxu0 0.0
    %3315 = vmatpush1.msra.mxu0 0.0
    %3316 = vmatprep.subr.mxu0 0.0
    %3317 = vmatpush1.msra.mxu0 0.0
    %3318 = vmatprep.subr.mxu0 0.0
    %3319 = vmatpush1.msra.mxu0 0.0
    %3320 = vmatprep.subr.mxu0 0.0
    %3321 = vmatpush1.msra.mxu0 0.0
    %3322 = vmatprep.subr.mxu0 0.0
    %3323 = vmatpush1.msra.mxu0 0.0
    %3324 = vmatprep.subr.mxu0 0.0
    %3325 = vmatpush1.msra.mxu0 0.0
    %3326 = vmatprep.subr.mxu0 0.0
    %3327 = vmatpush1.msra.mxu0 0.0
    %3328 = vmatprep.subr.mxu0 0.0
    %3329 = vmatpush1.msra.mxu0 0.0
    %3330 = vmatprep.subr.mxu0 0.0
    %3331 = vmatpush1.msra.mxu0 0.0
    %3332 = vmatprep.subr.mxu0 0.0
    %3333 = vmatpush1.msra.mxu0 0.0
    %3334 = vmatprep.subr.mxu0 0.0
    %3335 = vmatpush1.msra.mxu0 0.0
    %3336 = vmatprep.subr.mxu0 0.0
    %3337 = vmatpush1.msra.mxu0 0.0
    %3338 = vmatprep.subr.mxu0 0.0
    %3339 = vmatpush1.msra.mxu0 0.0
    %3340 = vmatprep.mubr.f32.mxu0 0.0
    %3341 = vmatmul.mubr.f32.gmra.mrb[0].mxu0 %v3274
    %v3342 = vpop.f32.mrb[0].mxu0
    %v3343 = vadd.f32 %v781, %v3342
    %v3344 = vpop.f32.mrb[0].mxu0
    %3345 = vdwg.mxu0
    %v3346 = vmax.f32 %v3343, 0.0
    %v3348 = vsel %vm294, %v3346, 0
    %3350 = vmatprep.subr.mxu0 0.0
    %3351 = vmatpush1.msra.mxu0 %v680
    %3352 = vmatprep.subr.mxu0 0.0
    %3353 = vmatpush1.msra.mxu0 %v681
    %3354 = vmatprep.subr.mxu0 0.0
    %3355 = vmatpush1.msra.mxu0 %v682
    %3356 = vmatprep.subr.mxu0 0.0
    %3357 = vmatpush1.msra.mxu0 %v683
    %3358 = vmatprep.subr.mxu0 0.0
    %3359 = vmatpush1.msra.mxu0 0.0
    %3360 = vmatprep.subr.mxu0 0.0
    %3361 = vmatpush1.msra.mxu0 0.0
    %3362 = vmatprep.subr.mxu0 0.0
    %3363 = vmatpush1.msra.mxu0 0.0
    %3364 = vmatprep.subr.mxu0 0.0
    %3365 = vmatpush1.msra.mxu0 0.0
    %3366 = vmatprep.subr.mxu0 0.0
    %3367 = vmatpush1.msra.mxu0 0.0
    %3368 = vmatprep.subr.mxu0 0.0
    %3369 = vmatpush1.msra.mxu0 0.0
    %3370 = vmatprep.subr.mxu0 0.0
    %3371 = vmatpush1.msra.mxu0 0.0
    %3372 = vmatprep.subr.mxu0 0.0
    %3373 = vmatpush1.msra.mxu0 0.0
    %3374 = vmatprep.subr.mxu0 0.0
    %3375 = vmatpush1.msra.mxu0 0.0
    %3376 = vmatprep.subr.mxu0 0.0
    %3377 = vmatpush1.msra.mxu0 0.0
    %3378 = vmatprep.subr.mxu0 0.0
    %3379 = vmatpush1.msra.mxu0 0.0
    %3380 = vmatprep.subr.mxu0 0.0
    %3381 = vmatpush1.msra.mxu0 0.0
    %3382 = vmatprep.subr.mxu0 0.0
    %3383 = vmatpush1.msra.mxu0 0.0
    %3384 = vmatprep.subr.mxu0 0.0
    %3385 = vmatpush1.msra.mxu0 0.0
    %3386 = vmatprep.subr.mxu0 0.0
    %3387 = vmatpush1.msra.mxu0 0.0
    %3388 = vmatprep.subr.mxu0 0.0
    %3389 = vmatpush1.msra.mxu0 0.0
    %3390 = vmatprep.subr.mxu0 0.0
    %3391 = vmatpush1.msra.mxu0 0.0
    %3392 = vmatprep.subr.mxu0 0.0
    %3393 = vmatpush1.msra.mxu0 0.0
    %3394 = vmatprep.subr.mxu0 0.0
    %3395 = vmatpush1.msra.mxu0 0.0
    %3396 = vmatprep.subr.mxu0 0.0
    %3397 = vmatpush1.msra.mxu0 0.0
    %3398 = vmatprep.subr.mxu0 0.0
    %3399 = vmatpush1.msra.mxu0 0.0
    %3400 = vmatprep.subr.mxu0 0.0
    %3401 = vmatpush1.msra.mxu0 0.0
    %3402 = vmatprep.subr.mxu0 0.0
    %3403 = vmatpush1.msra.mxu0 0.0
    %3404 = vmatprep.subr.mxu0 0.0
    %3405 = vmatpush1.msra.mxu0 0.0
    %3406 = vmatprep.subr.mxu0 0.0
    %3407 = vmatpush1.msra.mxu0 0.0
    %3408 = vmatprep.subr.mxu0 0.0
    %3409 = vmatpush1.msra.mxu0 0.0
    %3410 = vmatprep.subr.mxu0 0.0
    %3411 = vmatpush1.msra.mxu0 0.0
    %3412 = vmatprep.subr.mxu0 0.0
    %3413 = vmatpush1.msra.mxu0 0.0
    %3414 = vmatprep.mubr.f32.mxu0 0.0
    %3415 = vmatmul.mubr.f32.gmra.mrb[0].mxu0 %v3348
    %v3416 = vpop.f32.mrb[0].mxu0
    %v3417 = vadd.f32 %v861, %v3416
    %v3418 = vpop.f32.mrb[0].mxu0
    %3419 = vdwg.mxu0
    %v3420 = vmax.f32 %v3417, 0.0
    %vm3421 = vcmp.ne.f32.partialorder %v3417, %v3417
    %v3422 = vadd.f32 %v3417, 0.0
    %v3423 = vand.u32 2147483647, %v3417
    %v3424 = vsub.f32 0.0, %v3423
    %v3425 = vmul.f32 %v3424, 1.442695
    %v3426 = vpow.pop %v3425
    %v3427 = vadd.f32 %v3426, 1.0
    %v3428 = vlog2.pop %v3427
    %v3429 = vmul.f32 %v3428, 0.6931472
    %v3430 = vmul.f32 -0.5, %v3426
    %v3431 = vadd.f32 %v3430, 1.0
    %v3432 = vmul.f32 %v3431, %v3426
    %v3433 = vand.u32 2147483647, %v3426
    %vm3434 = vcmp.lt.f32.partialorder %v3433, 0.0004427343
    %v3435 = vsel %vm3434, %v3432, %v3429
    %v3436 = vadd.f32 %v3420, %v3435
    %v3437 = vsel %vm3421, %v3422, %v3436
    %v3438 = vadd.f32 %v3437, 1e-05
    %3440 = vrot.lane.b32.xlu0 %v670, 16
    %v3441 = vpop.permute.xlu0 %3440
    %v3443 = vmul.f32 %v3438, %v3441
    %3445 = vrot.lane.b32.xlu0 %v3443, 112
    %v3446 = vpop.permute.xlu0 %3445
    %v3448 = vadd.f32 %v3417, %v3446
    %3450 = vrot.lane.b32.xlu0 %v3448, 32
    %v3451 = vpop.permute.xlu0 %3450
    %3453 = vrot.lane.b32.xlu0 %v3195, 48
    %v3454 = vpop.permute.xlu0 %3453
    %v3456 = vsel %vm163, %v3417, %v3438
    %v3457 = vsel %vm294, %v3456, %v3451
    %v3458 = vsel %vm974, %v3457, %v3454
    %3459 = vst.msk [vmem:[%s69 + $0x28] sm:$0xff] %vm976, %v3458
    %v3460 = vld [vmem:[%s69] sm:$0xff]
    %v3461 = vld [vmem:[%s69 + $0x8] sm:$0xff]
    %v3462 = vld [vmem:[%s69 + $0x10] sm:$0xff]
    %v3463 = vld [vmem:[%s69 + $0x18] sm:$0xff]
    %v3464 = vld [vmem:[%s69 + $0x20] sm:$0xff]
    %v3465 = vld [vmem:[%s31] sm:$0xff]
    %v3466 = vld [vmem:[%s31 + $0x8] sm:$0xff]
    %v3467 = vld [vmem:[%s31 + $0x10] sm:$0xff]
    %v3468 = vld [vmem:[%s31 + $0x18] sm:$0xff]
    %v3469 = vld [vmem:[%s33] sm:$0x1]
    %v3471 = vlaneseq
    %v3472 = vshrl.u32 %v3471, 7
    %v3473 = vsub.s32 0, %v3472
    %v3474 = vrot.slane %v3469, %v3473
    %3481 = vrot.lane.b32.xlu0 %v3460, 80
    %v3482 = vpop.permute.xlu0 %3481
    %3483 = vrot.lane.b32.xlu0 %v3461, 80
    %v3484 = vpop.permute.xlu0 %3483
    %3485 = vrot.lane.b32.xlu0 %v3462, 80
    %v3486 = vpop.permute.xlu0 %3485
    %3487 = vrot.lane.b32.xlu0 %v3463, 80
    %v3488 = vpop.permute.xlu0 %3487
    %3489 = vrot.lane.b32.xlu0 %v3464, 80
    %v3490 = vpop.permute.xlu0 %3489
    %v3491 = vsel %vm294, %v3482, 0
    %v3493 = vsel %vm294, %v3484, 0
    %v3495 = vsel %vm294, %v3486, 0
    %v3497 = vsel %vm294, %v3488, 0
    %v3499 = vsel %vm294, %v3490, 0
    %3501 = vmatprep.subr.mxu0 0.0
    %3502 = vmatpush1.msra.mxu0 %v3465
    %3503 = vmatprep.subr.mxu0 0.0
    %3504 = vmatpush1.msra.mxu0 %v3466
    %3505 = vmatprep.subr.mxu0 0.0
    %3506 = vmatpush1.msra.mxu0 %v3467
    %3507 = vmatprep.subr.mxu0 0.0
    %3508 = vmatpush1.msra.mxu0 %v3468
    %3509 = vmatprep.subr.mxu0 0.0
    %3510 = vmatpush1.msra.mxu0 0.0
    %3511 = vmatprep.subr.mxu0 0.0
    %3512 = vmatpush1.msra.mxu0 0.0
    %3513 = vmatprep.subr.mxu0 0.0
    %3514 = vmatpush1.msra.mxu0 0.0
    %3515 = vmatprep.subr.mxu0 0.0
    %3516 = vmatpush1.msra.mxu0 0.0
    %3517 = vmatprep.subr.mxu0 0.0
    %3518 = vmatpush1.msra.mxu0 0.0
    %3519 = vmatprep.subr.mxu0 0.0
    %3520 = vmatpush1.msra.mxu0 0.0
    %3521 = vmatprep.subr.mxu0 0.0
    %3522 = vmatpush1.msra.mxu0 0.0
    %3523 = vmatprep.subr.mxu0 0.0
    %3524 = vmatpush1.msra.mxu0 0.0
    %3525 = vmatprep.subr.mxu0 0.0
    %3526 = vmatpush1.msra.mxu0 0.0
    %3527 = vmatprep.subr.mxu0 0.0
    %3528 = vmatpush1.msra.mxu0 0.0
    %3529 = vmatprep.subr.mxu0 0.0
    %3530 = vmatpush1.msra.mxu0 0.0
    %3531 = vmatprep.subr.mxu0 0.0
    %3532 = vmatpush1.msra.mxu0 0.0
    %3533 = vmatprep.subr.mxu0 0.0
    %3534 = vmatpush1.msra.mxu0 0.0
    %3535 = vmatprep.subr.mxu0 0.0
    %3536 = vmatpush1.msra.mxu0 0.0
    %3537 = vmatprep.subr.mxu0 0.0
    %3538 = vmatpush1.msra.mxu0 0.0
    %3539 = vmatprep.subr.mxu0 0.0
    %3540 = vmatpush1.msra.mxu0 0.0
    %3541 = vmatprep.subr.mxu0 0.0
    %3542 = vmatpush1.msra.mxu0 0.0
    %3543 = vmatprep.subr.mxu0 0.0
    %3544 = vmatpush1.msra.mxu0 0.0
    %3545 = vmatprep.subr.mxu0 0.0
    %3546 = vmatpush1.msra.mxu0 0.0
    %3547 = vmatprep.subr.mxu0 0.0
    %3548 = vmatpush1.msra.mxu0 0.0
    %3549 = vmatprep.subr.mxu0 0.0
    %3550 = vmatpush1.msra.mxu0 0.0
    %3551 = vmatprep.subr.mxu0 0.0
    %3552 = vmatpush1.msra.mxu0 0.0
    %3553 = vmatprep.subr.mxu0 0.0
    %3554 = vmatpush1.msra.mxu0 0.0
    %3555 = vmatprep.subr.mxu0 0.0
    %3556 = vmatpush1.msra.mxu0 0.0
    %3557 = vmatprep.subr.mxu0 0.0
    %3558 = vmatpush1.msra.mxu0 0.0
    %3559 = vmatprep.subr.mxu0 0.0
    %3560 = vmatpush1.msra.mxu0 0.0
    %3561 = vmatprep.subr.mxu0 0.0
    %3562 = vmatpush1.msra.mxu0 0.0
    %3563 = vmatprep.subr.mxu0 0.0
    %3564 = vmatpush1.msra.mxu0 0.0
    %3565 = vmatprep.mubr.f32.mxu0 0.0
    %3566 = vmatmul.mubr.f32.gmra.mrb[0].mxu0 %v3491
    %v3567 = vpop.f32.mrb[0].mxu0
    %v3568 = vadd.f32 %v3474, %v3567
    %v3569 = vpop.f32.mrb[0].mxu0
    %3570 = vmatprep.mubr.f32.mxu0 0.0
    %3571 = vmatmul.mubr.f32.gmra.mrb[0].mxu0 %v3493
    %v3572 = vpop.f32.mrb[0].mxu0
    %v3573 = vadd.f32 %v3474, %v3572
    %v3574 = vpop.f32.mrb[0].mxu0
    %3575 = vmatprep.mubr.f32.mxu0 0.0
    %3576 = vmatmul.mubr.f32.gmra.mrb[0].mxu0 %v3495
    %v3577 = vpop.f32.mrb[0].mxu0
    %v3578 = vadd.f32 %v3474, %v3577
    %v3579 = vpop.f32.mrb[0].mxu0
    %3580 = vmatprep.mubr.f32.mxu0 0.0
    %3581 = vmatmul.mubr.f32.gmra.mrb[0].mxu0 %v3497
    %v3582 = vpop.f32.mrb[0].mxu0
    %v3583 = vadd.f32 %v3474, %v3582
    %v3584 = vpop.f32.mrb[0].mxu0
    %3585 = vmatprep.mubr.f32.mxu0 0.0
    %3586 = vmatmul.mubr.f32.gmra.mrb[0].mxu0 %v3499
    %v3587 = vpop.f32.mrb[0].mxu0
    %v3588 = vadd.f32 %v3474, %v3587
    %v3589 = vpop.f32.mrb[0].mxu0
    %3590 = vdwg.mxu0
    %v3591 = vmax.f32 %v3568, 0.0
    %v3592 = vmax.f32 %v3573, 0.0
    %v3593 = vmax.f32 %v3578, 0.0
    %v3594 = vmax.f32 %v3583, 0.0
    %v3595 = vmax.f32 %v3588, 0.0
    %v3596 = vld [vmem:[%s35] sm:$0xff]
    %v3597 = vld [vmem:[%s35 + $0x8] sm:$0xff]
    %v3598 = vld [vmem:[%s35 + $0x10] sm:$0xff]
    %v3599 = vld [vmem:[%s35 + $0x18] sm:$0xff]
    %v3600 = vld [vmem:[%s37] sm:$0x1]
    %v3602 = vlaneseq
    %v3603 = vshrl.u32 %v3602, 7
    %v3604 = vsub.s32 0, %v3603
    %v3605 = vrot.slane %v3600, %v3604
    %v3608 = vsel %vm294, %v3591, 0
    %v3611 = vsel %vm294, %v3592, 0
    %v3614 = vsel %vm294, %v3593, 0
    %v3617 = vsel %vm294, %v3594, 0
    %v3620 = vsel %vm294, %v3595, 0
    %3622 = vmatprep.subr.mxu0 0.0
    %3623 = vmatpush1.msra.mxu0 %v3596
    %3624 = vmatprep.subr.mxu0 0.0
    %3625 = vmatpush1.msra.mxu0 %v3597
    %3626 = vmatprep.subr.mxu0 0.0
    %3627 = vmatpush1.msra.mxu0 %v3598
    %3628 = vmatprep.subr.mxu0 0.0
    %3629 = vmatpush1.msra.mxu0 %v3599
    %3630 = vmatprep.subr.mxu0 0.0
    %3631 = vmatpush1.msra.mxu0 0.0
    %3632 = vmatprep.subr.mxu0 0.0
    %3633 = vmatpush1.msra.mxu0 0.0
    %3634 = vmatprep.subr.mxu0 0.0
    %3635 = vmatpush1.msra.mxu0 0.0
    %3636 = vmatprep.subr.mxu0 0.0
    %3637 = vmatpush1.msra.mxu0 0.0
    %3638 = vmatprep.subr.mxu0 0.0
    %3639 = vmatpush1.msra.mxu0 0.0
    %3640 = vmatprep.subr.mxu0 0.0
    %3641 = vmatpush1.msra.mxu0 0.0
    %3642 = vmatprep.subr.mxu0 0.0
    %3643 = vmatpush1.msra.mxu0 0.0
    %3644 = vmatprep.subr.mxu0 0.0
    %3645 = vmatpush1.msra.mxu0 0.0
    %3646 = vmatprep.subr.mxu0 0.0
    %3647 = vmatpush1.msra.mxu0 0.0
    %3648 = vmatprep.subr.mxu0 0.0
    %3649 = vmatpush1.msra.mxu0 0.0
    %3650 = vmatprep.subr.mxu0 0.0
    %3651 = vmatpush1.msra.mxu0 0.0
    %3652 = vmatprep.subr.mxu0 0.0
    %3653 = vmatpush1.msra.mxu0 0.0
    %3654 = vmatprep.subr.mxu0 0.0
    %3655 = vmatpush1.msra.mxu0 0.0
    %3656 = vmatprep.subr.mxu0 0.0
    %3657 = vmatpush1.msra.mxu0 0.0
    %3658 = vmatprep.subr.mxu0 0.0
    %3659 = vmatpush1.msra.mxu0 0.0
    %3660 = vmatprep.subr.mxu0 0.0
    %3661 = vmatpush1.msra.mxu0 0.0
    %3662 = vmatprep.subr.mxu0 0.0
    %3663 = vmatpush1.msra.mxu0 0.0
    %3664 = vmatprep.subr.mxu0 0.0
    %3665 = vmatpush1.msra.mxu0 0.0
    %3666 = vmatprep.subr.mxu0 0.0
    %3667 = vmatpush1.msra.mxu0 0.0
    %3668 = vmatprep.subr.mxu0 0.0
    %3669 = vmatpush1.msra.mxu0 0.0
    %3670 = vmatprep.subr.mxu0 0.0
    %3671 = vmatpush1.msra.mxu0 0.0
    %3672 = vmatprep.subr.mxu0 0.0
    %3673 = vmatpush1.msra.mxu0 0.0
    %3674 = vmatprep.subr.mxu0 0.0
    %3675 = vmatpush1.msra.mxu0 0.0
    %3676 = vmatprep.subr.mxu0 0.0
    %3677 = vmatpush1.msra.mxu0 0.0
    %3678 = vmatprep.subr.mxu0 0.0
    %3679 = vmatpush1.msra.mxu0 0.0
    %3680 = vmatprep.subr.mxu0 0.0
    %3681 = vmatpush1.msra.mxu0 0.0
    %3682 = vmatprep.subr.mxu0 0.0
    %3683 = vmatpush1.msra.mxu0 0.0
    %3684 = vmatprep.subr.mxu0 0.0
    %3685 = vmatpush1.msra.mxu0 0.0
    %3686 = vmatprep.mubr.f32.mxu0 0.0
    %3687 = vmatmul.mubr.f32.gmra.mrb[0].mxu0 %v3608
    %v3688 = vpop.f32.mrb[0].mxu0
    %v3689 = vadd.f32 %v3605, %v3688
    %v3690 = vpop.f32.mrb[0].mxu0
    %3691 = vmatprep.mubr.f32.mxu0 0.0
    %3692 = vmatmul.mubr.f32.gmra.mrb[0].mxu0 %v3611
    %v3693 = vpop.f32.mrb[0].mxu0
    %v3694 = vadd.f32 %v3605, %v3693
    %v3695 = vpop.f32.mrb[0].mxu0
    %3696 = vmatprep.mubr.f32.mxu0 0.0
    %3697 = vmatmul.mubr.f32.gmra.mrb[0].mxu0 %v3614
    %v3698 = vpop.f32.mrb[0].mxu0
    %v3699 = vadd.f32 %v3605, %v3698
    %v3700 = vpop.f32.mrb[0].mxu0
    %3701 = vmatprep.mubr.f32.mxu0 0.0
    %3702 = vmatmul.mubr.f32.gmra.mrb[0].mxu0 %v3617
    %v3703 = vpop.f32.mrb[0].mxu0
    %v3704 = vadd.f32 %v3605, %v3703
    %v3705 = vpop.f32.mrb[0].mxu0
    %3706 = vmatprep.mubr.f32.mxu0 0.0
    %3707 = vmatmul.mubr.f32.gmra.mrb[0].mxu0 %v3620
    %v3708 = vpop.f32.mrb[0].mxu0
    %v3709 = vadd.f32 %v3605, %v3708
    %v3710 = vpop.f32.mrb[0].mxu0
    %3711 = vdwg.mxu0
    %v3712 = vmax.f32 %v3689, 0.0
    %v3713 = vmax.f32 %v3694, 0.0
    %v3714 = vmax.f32 %v3699, 0.0
    %v3715 = vmax.f32 %v3704, 0.0
    %v3716 = vmax.f32 %v3709, 0.0
    %v3717 = vld [vmem:[%s39] sm:$0xff]
    %v3718 = vld [vmem:[%s39 + $0x8] sm:$0xff]
    %v3719 = vld [vmem:[%s39 + $0x10] sm:$0xff]
    %v3720 = vld [vmem:[%s39 + $0x18] sm:$0xff]
    %v3721 = vld [vmem:[%s41] sm:$0x1]
    %v3723 = vlaneseq
    %v3724 = vshrl.u32 %v3723, 7
    %v3725 = vsub.s32 0, %v3724
    %v3726 = vrot.slane %v3721, %v3725
    %v3729 = vsel %vm294, %v3712, 0
    %v3732 = vsel %vm294, %v3713, 0
    %v3735 = vsel %vm294, %v3714, 0
    %v3738 = vsel %vm294, %v3715, 0
    %v3741 = vsel %vm294, %v3716, 0
    %3743 = vmatprep.subr.mxu0 0.0
    %3744 = vmatpush1.msra.mxu0 %v3717
    %3745 = vmatprep.subr.mxu0 0.0
    %3746 = vmatpush1.msra.mxu0 %v3718
    %3747 = vmatprep.subr.mxu0 0.0
    %3748 = vmatpush1.msra.mxu0 %v3719
    %3749 = vmatprep.subr.mxu0 0.0
    %3750 = vmatpush1.msra.mxu0 %v3720
    %3751 = vmatprep.subr.mxu0 0.0
    %3752 = vmatpush1.msra.mxu0 0.0
    %3753 = vmatprep.subr.mxu0 0.0
    %3754 = vmatpush1.msra.mxu0 0.0
    %3755 = vmatprep.subr.mxu0 0.0
    %3756 = vmatpush1.msra.mxu0 0.0
    %3757 = vmatprep.subr.mxu0 0.0
    %3758 = vmatpush1.msra.mxu0 0.0
    %3759 = vmatprep.subr.mxu0 0.0
    %3760 = vmatpush1.msra.mxu0 0.0
    %3761 = vmatprep.subr.mxu0 0.0
    %3762 = vmatpush1.msra.mxu0 0.0
    %3763 = vmatprep.subr.mxu0 0.0
    %3764 = vmatpush1.msra.mxu0 0.0
    %3765 = vmatprep.subr.mxu0 0.0
    %3766 = vmatpush1.msra.mxu0 0.0
    %3767 = vmatprep.subr.mxu0 0.0
    %3768 = vmatpush1.msra.mxu0 0.0
    %3769 = vmatprep.subr.mxu0 0.0
    %3770 = vmatpush1.msra.mxu0 0.0
    %3771 = vmatprep.subr.mxu0 0.0
    %3772 = vmatpush1.msra.mxu0 0.0
    %3773 = vmatprep.subr.mxu0 0.0
    %3774 = vmatpush1.msra.mxu0 0.0
    %3775 = vmatprep.subr.mxu0 0.0
    %3776 = vmatpush1.msra.mxu0 0.0
    %3777 = vmatprep.subr.mxu0 0.0
    %3778 = vmatpush1.msra.mxu0 0.0
    %3779 = vmatprep.subr.mxu0 0.0
    %3780 = vmatpush1.msra.mxu0 0.0
    %3781 = vmatprep.subr.mxu0 0.0
    %3782 = vmatpush1.msra.mxu0 0.0
    %3783 = vmatprep.subr.mxu0 0.0
    %3784 = vmatpush1.msra.mxu0 0.0
    %3785 = vmatprep.subr.mxu0 0.0
    %3786 = vmatpush1.msra.mxu0 0.0
    %3787 = vmatprep.subr.mxu0 0.0
    %3788 = vmatpush1.msra.mxu0 0.0
    %3789 = vmatprep.subr.mxu0 0.0
    %3790 = vmatpush1.msra.mxu0 0.0
    %3791 = vmatprep.subr.mxu0 0.0
    %3792 = vmatpush1.msra.mxu0 0.0
    %3793 = vmatprep.subr.mxu0 0.0
    %3794 = vmatpush1.msra.mxu0 0.0
    %3795 = vmatprep.subr.mxu0 0.0
    %3796 = vmatpush1.msra.mxu0 0.0
    %3797 = vmatprep.subr.mxu0 0.0
    %3798 = vmatpush1.msra.mxu0 0.0
    %3799 = vmatprep.subr.mxu0 0.0
    %3800 = vmatpush1.msra.mxu0 0.0
    %3801 = vmatprep.subr.mxu0 0.0
    %3802 = vmatpush1.msra.mxu0 0.0
    %3803 = vmatprep.subr.mxu0 0.0
    %3804 = vmatpush1.msra.mxu0 0.0
    %3805 = vmatprep.subr.mxu0 0.0
    %3806 = vmatpush1.msra.mxu0 0.0
    %3807 = vmatprep.mubr.f32.mxu0 0.0
    %3808 = vmatmul.mubr.f32.gmra.mrb[0].mxu0 %v3729
    %v3809 = vpop.f32.mrb[0].mxu0
    %v3810 = vadd.f32 %v3726, %v3809
    %v3811 = vpop.f32.mrb[0].mxu0
    %3812 = vmatprep.mubr.f32.mxu0 0.0
    %3813 = vmatmul.mubr.f32.gmra.mrb[0].mxu0 %v3732
    %v3814 = vpop.f32.mrb[0].mxu0
    %v3815 = vadd.f32 %v3726, %v3814
    %v3816 = vpop.f32.mrb[0].mxu0
    %3817 = vmatprep.mubr.f32.mxu0 0.0
    %3818 = vmatmul.mubr.f32.gmra.mrb[0].mxu0 %v3735
    %v3819 = vpop.f32.mrb[0].mxu0
    %v3820 = vadd.f32 %v3726, %v3819
    %v3821 = vpop.f32.mrb[0].mxu0
    %3822 = vmatprep.mubr.f32.mxu0 0.0
    %3823 = vmatmul.mubr.f32.gmra.mrb[0].mxu0 %v3738
    %v3824 = vpop.f32.mrb[0].mxu0
    %v3825 = vadd.f32 %v3726, %v3824
    %v3826 = vpop.f32.mrb[0].mxu0
    %3827 = vmatprep.mubr.f32.mxu0 0.0
    %3828 = vmatmul.mubr.f32.gmra.mrb[0].mxu0 %v3741
    %v3829 = vpop.f32.mrb[0].mxu0
    %v3830 = vadd.f32 %v3726, %v3829
    %v3831 = vpop.f32.mrb[0].mxu0
    %3832 = vdwg.mxu0
    %3833 = vst.msk [vmem:[%s71] sm:$0xff] %vm294, %v3810
    %3834 = vst.msk [vmem:[%s71 + $0x8] sm:$0xff] %vm294, %v3815
    %3835 = vst.msk [vmem:[%s71 + $0x10] sm:$0xff] %vm294, %v3820
    %3836 = vst.msk [vmem:[%s71 + $0x18] sm:$0xff] %vm294, %v3825
    %3837 = vst.msk [vmem:[%s71 + $0x20] sm:$0xff] %vm294, %v3830
    %v3838 = vld [vmem:[%s69] sm:$0xff]
    %v3839 = vld [vmem:[%s69 + $0x8] sm:$0xff]
    %v3840 = vld [vmem:[%s69 + $0x10] sm:$0xff]
    %v3841 = vld [vmem:[%s69 + $0x18] sm:$0xff]
    %v3842 = vld [vmem:[%s69 + $0x20] sm:$0xff]
    %v3843 = vld [vmem:[%s69 + $0x28] sm:$0xff]
    %v3844 = vld [vmem:[%s57] sm:$0xff]
    %v3845 = vld [vmem:[%s57 + $0x8] sm:$0xff]
    %v3846 = vld [vmem:[%s57 + $0x10] sm:$0xff]
    %v3847 = vld [vmem:[%s57 + $0x18] sm:$0xff]
    %v3848 = vld [vmem:[%s57 + $0x20] sm:$0xff]
    %v3849 = vld [vmem:[%s57 + $0x28] sm:$0xff]
    %v3850 = vld [vmem:[%s59] sm:$0x1]
    %v3852 = vlaneseq
    %v3853 = vshrl.u32 %v3852, 7
    %v3854 = vsub.s32 0, %v3853
    %v3855 = vrot.slane %v3850, %v3854
    %3863 = vrot.lane.b32.xlu0 %v3838, 96
    %v3864 = vpop.permute.xlu0 %3863
    %3865 = vrot.lane.b32.xlu0 %v3839, 96
    %v3866 = vpop.permute.xlu0 %3865
    %3867 = vrot.lane.b32.xlu0 %v3840, 96
    %v3868 = vpop.permute.xlu0 %3867
    %3869 = vrot.lane.b32.xlu0 %v3841, 96
    %v3870 = vpop.permute.xlu0 %3869
    %3871 = vrot.lane.b32.xlu0 %v3842, 96
    %v3872 = vpop.permute.xlu0 %3871
    %3873 = vrot.lane.b32.xlu0 %v3843, 96
    %v3874 = vpop.permute.xlu0 %3873
    %v3875 = vsel %vm974, %v3864, 0
    %v3877 = vsel %vm974, %v3866, 0
    %v3879 = vsel %vm974, %v3868, 0
    %v3881 = vsel %vm974, %v3870, 0
    %v3883 = vsel %vm974, %v3872, 0
    %v3885 = vsel %vm974, %v3874, 0
    %3887 = vmatprep.subr.mxu0 0.0
    %3888 = vmatpush1.msra.mxu0 %v3844
    %3889 = vmatprep.subr.mxu0 0.0
    %3890 = vmatpush1.msra.mxu0 %v3845
    %3891 = vmatprep.subr.mxu0 0.0
    %3892 = vmatpush1.msra.mxu0 %v3846
    %3893 = vmatprep.subr.mxu0 0.0
    %3894 = vmatpush1.msra.mxu0 %v3847
    %3895 = vmatprep.subr.mxu0 0.0
    %3896 = vmatpush1.msra.mxu0 %v3848
    %3897 = vmatprep.subr.mxu0 0.0
    %3898 = vmatpush1.msra.mxu0 %v3849
    %3899 = vmatprep.subr.mxu0 0.0
    %3900 = vmatpush1.msra.mxu0 0.0
    %3901 = vmatprep.subr.mxu0 0.0
    %3902 = vmatpush1.msra.mxu0 0.0
    %3903 = vmatprep.subr.mxu0 0.0
    %3904 = vmatpush1.msra.mxu0 0.0
    %3905 = vmatprep.subr.mxu0 0.0
    %3906 = vmatpush1.msra.mxu0 0.0
    %3907 = vmatprep.subr.mxu0 0.0
    %3908 = vmatpush1.msra.mxu0 0.0
    %3909 = vmatprep.subr.mxu0 0.0
    %3910 = vmatpush1.msra.mxu0 0.0
    %3911 = vmatprep.subr.mxu0 0.0
    %3912 = vmatpush1.msra.mxu0 0.0
    %3913 = vmatprep.subr.mxu0 0.0
    %3914 = vmatpush1.msra.mxu0 0.0
    %3915 = vmatprep.subr.mxu0 0.0
    %3916 = vmatpush1.msra.mxu0 0.0
    %3917 = vmatprep.subr.mxu0 0.0
    %3918 = vmatpush1.msra.mxu0 0.0
    %3919 = vmatprep.subr.mxu0 0.0
    %3920 = vmatpush1.msra.mxu0 0.0
    %3921 = vmatprep.subr.mxu0 0.0
    %3922 = vmatpush1.msra.mxu0 0.0
    %3923 = vmatprep.subr.mxu0 0.0
    %3924 = vmatpush1.msra.mxu0 0.0
    %3925 = vmatprep.subr.mxu0 0.0
    %3926 = vmatpush1.msra.mxu0 0.0
    %3927 = vmatprep.subr.mxu0 0.0
    %3928 = vmatpush1.msra.mxu0 0.0
    %3929 = vmatprep.subr.mxu0 0.0
    %3930 = vmatpush1.msra.mxu0 0.0
    %3931 = vmatprep.subr.mxu0 0.0
    %3932 = vmatpush1.msra.mxu0 0.0
    %3933 = vmatprep.subr.mxu0 0.0
    %3934 = vmatpush1.msra.mxu0 0.0
    %3935 = vmatprep.subr.mxu0 0.0
    %3936 = vmatpush1.msra.mxu0 0.0
    %3937 = vmatprep.subr.mxu0 0.0
    %3938 = vmatpush1.msra.mxu0 0.0
    %3939 = vmatprep.subr.mxu0 0.0
    %3940 = vmatpush1.msra.mxu0 0.0
    %3941 = vmatprep.subr.mxu0 0.0
    %3942 = vmatpush1.msra.mxu0 0.0
    %3943 = vmatprep.subr.mxu0 0.0
    %3944 = vmatpush1.msra.mxu0 0.0
    %3945 = vmatprep.subr.mxu0 0.0
    %3946 = vmatpush1.msra.mxu0 0.0
    %3947 = vmatprep.subr.mxu0 0.0
    %3948 = vmatpush1.msra.mxu0 0.0
    %3949 = vmatprep.subr.mxu0 0.0
    %3950 = vmatpush1.msra.mxu0 0.0
    %3951 = vmatprep.mubr.f32.mxu0 0.0
    %3952 = vmatmul.mubr.f32.gmra.mrb[0].mxu0 %v3875
    %v3953 = vpop.f32.mrb[0].mxu0
    %v3954 = vadd.f32 %v3855, %v3953
    %v3955 = vpop.f32.mrb[0].mxu0
    %3956 = vmatprep.mubr.f32.mxu0 0.0
    %3957 = vmatmul.mubr.f32.gmra.mrb[0].mxu0 %v3877
    %v3958 = vpop.f32.mrb[0].mxu0
    %v3959 = vadd.f32 %v3855, %v3958
    %v3960 = vpop.f32.mrb[0].mxu0
    %3961 = vmatprep.mubr.f32.mxu0 0.0
    %3962 = vmatmul.mubr.f32.gmra.mrb[0].mxu0 %v3879
    %v3963 = vpop.f32.mrb[0].mxu0
    %v3964 = vadd.f32 %v3855, %v3963
    %v3965 = vpop.f32.mrb[0].mxu0
    %3966 = vmatprep.mubr.f32.mxu0 0.0
    %3967 = vmatmul.mubr.f32.gmra.mrb[0].mxu0 %v3881
    %v3968 = vpop.f32.mrb[0].mxu0
    %v3969 = vadd.f32 %v3855, %v3968
    %v3970 = vpop.f32.mrb[0].mxu0
    %3971 = vmatprep.mubr.f32.mxu0 0.0
    %3972 = vmatmul.mubr.f32.gmra.mrb[0].mxu0 %v3883
    %v3973 = vpop.f32.mrb[0].mxu0
    %v3974 = vadd.f32 %v3855, %v3973
    %v3975 = vpop.f32.mrb[0].mxu0
    %3976 = vmatprep.mubr.f32.mxu0 0.0
    %3977 = vmatmul.mubr.f32.gmra.mrb[0].mxu0 %v3885
    %v3978 = vpop.f32.mrb[0].mxu0
    %v3979 = vadd.f32 %v3855, %v3978
    %v3980 = vpop.f32.mrb[0].mxu0
    %3981 = vdwg.mxu0
    %v3982 = vmax.f32 %v3954, 0.0
    %v3983 = vmax.f32 %v3959, 0.0
    %v3984 = vmax.f32 %v3964, 0.0
    %v3985 = vmax.f32 %v3969, 0.0
    %v3986 = vmax.f32 %v3974, 0.0
    %v3987 = vmax.f32 %v3979, 0.0
    %v3988 = vld [vmem:[%s61] sm:$0xff]
    %v3989 = vld [vmem:[%s61 + $0x8] sm:$0xff]
    %v3990 = vld [vmem:[%s61 + $0x10] sm:$0xff]
    %v3991 = vld [vmem:[%s61 + $0x18] sm:$0xff]
    %v3992 = vld [vmem:[%s63] sm:$0x1]
    %v3994 = vlaneseq
    %v3995 = vshrl.u32 %v3994, 7
    %v3996 = vsub.s32 0, %v3995
    %v3997 = vrot.slane %v3992, %v3996
    %v4000 = vsel %vm294, %v3982, 0
    %v4003 = vsel %vm294, %v3983, 0
    %v4006 = vsel %vm294, %v3984, 0
    %v4009 = vsel %vm294, %v3985, 0
    %v4012 = vsel %vm294, %v3986, 0
    %v4015 = vsel %vm294, %v3987, 0
    %4017 = vmatprep.subr.mxu0 0.0
    %4018 = vmatpush1.msra.mxu0 %v3988
    %4019 = vmatprep.subr.mxu0 0.0
    %4020 = vmatpush1.msra.mxu0 %v3989
    %4021 = vmatprep.subr.mxu0 0.0
    %4022 = vmatpush1.msra.mxu0 %v3990
    %4023 = vmatprep.subr.mxu0 0.0
    %4024 = vmatpush1.msra.mxu0 %v3991
    %4025 = vmatprep.subr.mxu0 0.0
    %4026 = vmatpush1.msra.mxu0 0.0
    %4027 = vmatprep.subr.mxu0 0.0
    %4028 = vmatpush1.msra.mxu0 0.0
    %4029 = vmatprep.subr.mxu0 0.0
    %4030 = vmatpush1.msra.mxu0 0.0
    %4031 = vmatprep.subr.mxu0 0.0
    %4032 = vmatpush1.msra.mxu0 0.0
    %4033 = vmatprep.subr.mxu0 0.0
    %4034 = vmatpush1.msra.mxu0 0.0
    %4035 = vmatprep.subr.mxu0 0.0
    %4036 = vmatpush1.msra.mxu0 0.0
    %4037 = vmatprep.subr.mxu0 0.0
    %4038 = vmatpush1.msra.mxu0 0.0
    %4039 = vmatprep.subr.mxu0 0.0
    %4040 = vmatpush1.msra.mxu0 0.0
    %4041 = vmatprep.subr.mxu0 0.0
    %4042 = vmatpush1.msra.mxu0 0.0
    %4043 = vmatprep.subr.mxu0 0.0
    %4044 = vmatpush1.msra.mxu0 0.0
    %4045 = vmatprep.subr.mxu0 0.0
    %4046 = vmatpush1.msra.mxu0 0.0
    %4047 = vmatprep.subr.mxu0 0.0
    %4048 = vmatpush1.msra.mxu0 0.0
    %4049 = vmatprep.subr.mxu0 0.0
    %4050 = vmatpush1.msra.mxu0 0.0
    %4051 = vmatprep.subr.mxu0 0.0
    %4052 = vmatpush1.msra.mxu0 0.0
    %4053 = vmatprep.subr.mxu0 0.0
    %4054 = vmatpush1.msra.mxu0 0.0
    %4055 = vmatprep.subr.mxu0 0.0
    %4056 = vmatpush1.msra.mxu0 0.0
    %4057 = vmatprep.subr.mxu0 0.0
    %4058 = vmatpush1.msra.mxu0 0.0
    %4059 = vmatprep.subr.mxu0 0.0
    %4060 = vmatpush1.msra.mxu0 0.0
    %4061 = vmatprep.subr.mxu0 0.0
    %4062 = vmatpush1.msra.mxu0 0.0
    %4063 = vmatprep.subr.mxu0 0.0
    %4064 = vmatpush1.msra.mxu0 0.0
    %4065 = vmatprep.subr.mxu0 0.0
    %4066 = vmatpush1.msra.mxu0 0.0
    %4067 = vmatprep.subr.mxu0 0.0
    %4068 = vmatpush1.msra.mxu0 0.0
    %4069 = vmatprep.subr.mxu0 0.0
    %4070 = vmatpush1.msra.mxu0 0.0
    %4071 = vmatprep.subr.mxu0 0.0
    %4072 = vmatpush1.msra.mxu0 0.0
    %4073 = vmatprep.subr.mxu0 0.0
    %4074 = vmatpush1.msra.mxu0 0.0
    %4075 = vmatprep.subr.mxu0 0.0
    %4076 = vmatpush1.msra.mxu0 0.0
    %4077 = vmatprep.subr.mxu0 0.0
    %4078 = vmatpush1.msra.mxu0 0.0
    %4079 = vmatprep.subr.mxu0 0.0
    %4080 = vmatpush1.msra.mxu0 0.0
    %4081 = vmatprep.mubr.f32.mxu0 0.0
    %4082 = vmatmul.mubr.f32.gmra.mrb[0].mxu0 %v4000
    %v4083 = vpop.f32.mrb[0].mxu0
    %v4084 = vadd.f32 %v3997, %v4083
    %v4085 = vpop.f32.mrb[0].mxu0
    %4086 = vmatprep.mubr.f32.mxu0 0.0
    %4087 = vmatmul.mubr.f32.gmra.mrb[0].mxu0 %v4003
    %v4088 = vpop.f32.mrb[0].mxu0
    %v4089 = vadd.f32 %v3997, %v4088
    %v4090 = vpop.f32.mrb[0].mxu0
    %4091 = vmatprep.mubr.f32.mxu0 0.0
    %4092 = vmatmul.mubr.f32.gmra.mrb[0].mxu0 %v4006
    %v4093 = vpop.f32.mrb[0].mxu0
    %v4094 = vadd.f32 %v3997, %v4093
    %v4095 = vpop.f32.mrb[0].mxu0
    %4096 = vmatprep.mubr.f32.mxu0 0.0
    %4097 = vmatmul.mubr.f32.gmra.mrb[0].mxu0 %v4009
    %v4098 = vpop.f32.mrb[0].mxu0
    %v4099 = vadd.f32 %v3997, %v4098
    %v4100 = vpop.f32.mrb[0].mxu0
    %4101 = vmatprep.mubr.f32.mxu0 0.0
    %4102 = vmatmul.mubr.f32.gmra.mrb[0].mxu0 %v4012
    %v4103 = vpop.f32.mrb[0].mxu0
    %v4104 = vadd.f32 %v3997, %v4103
    %v4105 = vpop.f32.mrb[0].mxu0
    %4106 = vmatprep.mubr.f32.mxu0 0.0
    %4107 = vmatmul.mubr.f32.gmra.mrb[0].mxu0 %v4015
    %v4108 = vpop.f32.mrb[0].mxu0
    %v4109 = vadd.f32 %v3997, %v4108
    %v4110 = vpop.f32.mrb[0].mxu0
    %4111 = vdwg.mxu0
    %v4112 = vmax.f32 %v4084, 0.0
    %v4113 = vmax.f32 %v4089, 0.0
    %v4114 = vmax.f32 %v4094, 0.0
    %v4115 = vmax.f32 %v4099, 0.0
    %v4116 = vmax.f32 %v4104, 0.0
    %v4117 = vmax.f32 %v4109, 0.0
    %v4118 = vld [vmem:[%s65] sm:$0xff]
    %v4119 = vld [vmem:[%s65 + $0x8] sm:$0xff]
    %v4120 = vld [vmem:[%s65 + $0x10] sm:$0xff]
    %v4121 = vld [vmem:[%s65 + $0x18] sm:$0xff]
    %v4122 = vld [vmem:[%s67] sm:$0x1]
    %v4124 = vlaneseq
    %v4125 = vshrl.u32 %v4124, 7
    %v4126 = vsub.s32 0, %v4125
    %v4127 = vrot.slane %v4122, %v4126
    %v4130 = vsel %vm294, %v4112, 0
    %v4133 = vsel %vm294, %v4113, 0
    %v4136 = vsel %vm294, %v4114, 0
    %v4139 = vsel %vm294, %v4115, 0
    %v4142 = vsel %vm294, %v4116, 0
    %v4145 = vsel %vm294, %v4117, 0
    %4147 = vmatprep.subr.mxu0 0.0
    %4148 = vmatpush1.msra.mxu0 %v4118
    %4149 = vmatprep.subr.mxu0 0.0
    %4150 = vmatpush1.msra.mxu0 %v4119
    %4151 = vmatprep.subr.mxu0 0.0
    %4152 = vmatpush1.msra.mxu0 %v4120
    %4153 = vmatprep.subr.mxu0 0.0
    %4154 = vmatpush1.msra.mxu0 %v4121
    %4155 = vmatprep.subr.mxu0 0.0
    %4156 = vmatpush1.msra.mxu0 0.0
    %4157 = vmatprep.subr.mxu0 0.0
    %4158 = vmatpush1.msra.mxu0 0.0
    %4159 = vmatprep.subr.mxu0 0.0
    %4160 = vmatpush1.msra.mxu0 0.0
    %4161 = vmatprep.subr.mxu0 0.0
    %4162 = vmatpush1.msra.mxu0 0.0
    %4163 = vmatprep.subr.mxu0 0.0
    %4164 = vmatpush1.msra.mxu0 0.0
    %4165 = vmatprep.subr.mxu0 0.0
    %4166 = vmatpush1.msra.mxu0 0.0
    %4167 = vmatprep.subr.mxu0 0.0
    %4168 = vmatpush1.msra.mxu0 0.0
    %4169 = vmatprep.subr.mxu0 0.0
    %4170 = vmatpush1.msra.mxu0 0.0
    %4171 = vmatprep.subr.mxu0 0.0
    %4172 = vmatpush1.msra.mxu0 0.0
    %4173 = vmatprep.subr.mxu0 0.0
    %4174 = vmatpush1.msra.mxu0 0.0
    %4175 = vmatprep.subr.mxu0 0.0
    %4176 = vmatpush1.msra.mxu0 0.0
    %4177 = vmatprep.subr.mxu0 0.0
    %4178 = vmatpush1.msra.mxu0 0.0
    %4179 = vmatprep.subr.mxu0 0.0
    %4180 = vmatpush1.msra.mxu0 0.0
    %4181 = vmatprep.subr.mxu0 0.0
    %4182 = vmatpush1.msra.mxu0 0.0
    %4183 = vmatprep.subr.mxu0 0.0
    %4184 = vmatpush1.msra.mxu0 0.0
    %4185 = vmatprep.subr.mxu0 0.0
    %4186 = vmatpush1.msra.mxu0 0.0
    %4187 = vmatprep.subr.mxu0 0.0
    %4188 = vmatpush1.msra.mxu0 0.0
    %4189 = vmatprep.subr.mxu0 0.0
    %4190 = vmatpush1.msra.mxu0 0.0
    %4191 = vmatprep.subr.mxu0 0.0
    %4192 = vmatpush1.msra.mxu0 0.0
    %4193 = vmatprep.subr.mxu0 0.0
    %4194 = vmatpush1.msra.mxu0 0.0
    %4195 = vmatprep.subr.mxu0 0.0
    %4196 = vmatpush1.msra.mxu0 0.0
    %4197 = vmatprep.subr.mxu0 0.0
    %4198 = vmatpush1.msra.mxu0 0.0
    %4199 = vmatprep.subr.mxu0 0.0
    %4200 = vmatpush1.msra.mxu0 0.0
    %4201 = vmatprep.subr.mxu0 0.0
    %4202 = vmatpush1.msra.mxu0 0.0
    %4203 = vmatprep.subr.mxu0 0.0
    %4204 = vmatpush1.msra.mxu0 0.0
    %4205 = vmatprep.subr.mxu0 0.0
    %4206 = vmatpush1.msra.mxu0 0.0
    %4207 = vmatprep.subr.mxu0 0.0
    %4208 = vmatpush1.msra.mxu0 0.0
    %4209 = vmatprep.subr.mxu0 0.0
    %4210 = vmatpush1.msra.mxu0 0.0
    %4211 = vmatprep.mubr.f32.mxu0 0.0
    %4212 = vmatmul.mubr.f32.gmra.mrb[0].mxu0 %v4130
    %v4213 = vpop.f32.mrb[0].mxu0
    %v4214 = vadd.f32 %v4127, %v4213
    %v4215 = vpop.f32.mrb[0].mxu0
    %4216 = vmatprep.mubr.f32.mxu0 0.0
    %4217 = vmatmul.mubr.f32.gmra.mrb[0].mxu0 %v4133
    %v4218 = vpop.f32.mrb[0].mxu0
    %v4219 = vadd.f32 %v4127, %v4218
    %v4220 = vpop.f32.mrb[0].mxu0
    %4221 = vmatprep.mubr.f32.mxu0 0.0
    %4222 = vmatmul.mubr.f32.gmra.mrb[0].mxu0 %v4136
    %v4223 = vpop.f32.mrb[0].mxu0
    %v4224 = vadd.f32 %v4127, %v4223
    %v4225 = vpop.f32.mrb[0].mxu0
    %4226 = vmatprep.mubr.f32.mxu0 0.0
    %4227 = vmatmul.mubr.f32.gmra.mrb[0].mxu0 %v4139
    %v4228 = vpop.f32.mrb[0].mxu0
    %v4229 = vadd.f32 %v4127, %v4228
    %v4230 = vpop.f32.mrb[0].mxu0
    %4231 = vmatprep.mubr.f32.mxu0 0.0
    %4232 = vmatmul.mubr.f32.gmra.mrb[0].mxu0 %v4142
    %v4233 = vpop.f32.mrb[0].mxu0
    %v4234 = vadd.f32 %v4127, %v4233
    %v4235 = vpop.f32.mrb[0].mxu0
    %4236 = vmatprep.mubr.f32.mxu0 0.0
    %4237 = vmatmul.mubr.f32.gmra.mrb[0].mxu0 %v4145
    %v4238 = vpop.f32.mrb[0].mxu0
    %v4239 = vadd.f32 %v4127, %v4238
    %v4240 = vpop.f32.mrb[0].mxu0
    %4241 = vdwg.mxu0
    %4242 = vst.msk [vmem:[#allocation2] sm:$0xff] %vm163, %v4214
    %4243 = vst.msk [vmem:[#allocation2 + $0x8] sm:$0xff] %vm163, %v4219
    %4244 = vst.msk [vmem:[#allocation2 + $0x10] sm:$0xff] %vm163, %v4224
    %4245 = vst.msk [vmem:[#allocation2 + $0x18] sm:$0xff] %vm163, %v4229
    %4246 = vst.msk [vmem:[#allocation2 + $0x20] sm:$0xff] %vm163, %v4234
    %4247 = vst.msk [vmem:[#allocation2 + $0x28] sm:$0xff] %vm163, %v4239
    // Predicated region
    $region138: #{rssm_world_model_forward.1} parent=1 // pred_check
      _
    $region139: #{rssm_world_model_forward.1} parent=1 // pred_check_branch
      %4249 = sbr.rel (0) target = $region141
    $region140: #{rssm_world_model_forward.1} parent=1 // pred_region
      _
    $region141: #{rssm_world_model_forward.1} parent=1 // pred_fallthru
      _
    // Predicated region
    $region142: #{rssm_world_model_forward.1} parent=1 // pred_check
      _
    $region143: #{rssm_world_model_forward.1} parent=1 // pred_check_branch
      %4251 = sbr.rel (0) target = $region145
    $region144: #{rssm_world_model_forward.1} parent=1 // pred_region
      _
    $region145: #{rssm_world_model_forward.1} parent=1 // pred_fallthru
      _
    // Predicated region
    $region146: #{rssm_world_model_forward.1} parent=1 // pred_check
      _
    $region147: #{rssm_world_model_forward.1} parent=1 // pred_check_branch
      %4253 = sbr.rel (0) target = $region149
    $region148: #{rssm_world_model_forward.1} parent=1 // pred_region
      %s4255 = ssub.s32 768, 768
      %4256 = vsyncadd [#allocation3], %s4255
      %s4257 = sshll.u32 [#allocation2], 4
      %s4258 = int_to_ptr.vmem [resolvable:$true] %s4257
      %4263 = dma.vmem_to_hbm [thread:$0]  %s4258, 768, %s73, [#allocation3], 128, 128, 8
    $region149: #{rssm_world_model_forward.1} parent=1 // pred_fallthru
      _
    // Predicated region
    $region150: #{rssm_world_model_forward.1} parent=1 // pred_check
      _
    $region151: #{rssm_world_model_forward.1} parent=1 // pred_check_branch
      %4265 = sbr.rel (0) target = $region153
    $region152: #{rssm_world_model_forward.1} parent=1 // pred_region
      _
    $region153: #{rssm_world_model_forward.1} parent=1 // pred_fallthru
      _
    // Predicated region
    $region154: #{rssm_world_model_forward.1} parent=1 // pred_check
      _
    $region155: #{rssm_world_model_forward.1} parent=1 // pred_check_branch
      %4267 = sbr.rel (0) target = $region157
    $region156: #{rssm_world_model_forward.1} parent=1 // pred_region
      _
    $region157: #{rssm_world_model_forward.1} parent=1 // pred_fallthru
      _
    // Predicated region
    $region158: #{rssm_world_model_forward.1} parent=1 // pred_check
      _
    $region159: #{rssm_world_model_forward.1} parent=1 // pred_check_branch
      %4269 = sbr.rel (0) target = $region161
    $region160: #{rssm_world_model_forward.1} parent=1 // pred_region
      %4270 = dma.done [#allocation3], 768
    $region161: #{rssm_world_model_forward.1} parent=1 // pred_fallthru
      _
    %4271 = vsyncpa [#allocation3], 1

</llo_original>
